<compile_context>
chip_gen: v7x
topology: tpu7x:2x2x1
jax: 0.10.0
libtpu: 0.0.40
codegen_flags: <defaults>
</compile_context>

<pallas_src>
import math
from functools import partial

import jax
import jax.numpy as jnp
from jax import lax
from jax.experimental import pallas as pl
from jax.experimental.pallas import tpu as pltpu


_NEG_LARGE = -1e30   # finite stand-in for -inf: exp() underflows to exactly 0.


def _flash_attention_kernel(q_ref, k_ref, v_ref, o_ref, m_sc, l_sc, acc_sc, *,
                            scale, mask_flag, n_heads, e_dim, d_dim,
                            l_tile, s_tile, mxu_dtype):
    """One grid step: (batch b, head-group g, q-tile qi, kv-tile ki).

    q_ref: (1, l_tile, hb*E)   k_ref: (1, s_tile, hb*E)   v_ref: (1, s_tile, hb*D)
    o_ref: (1, l_tile, hb*D)   resident across the KV axis, written on the last kv step
    m_sc / l_sc: (hb, l_tile, 1) f32 running max / denominator per head
    acc_sc:      (l_tile, hb*D)  f32 unnormalized output accumulator
    """
    ki = pl.program_id(3)
    nk = pl.num_programs(3)

    @pl.when(ki == 0)
    def _init():
        m_sc[...] = jnp.full_like(m_sc, _NEG_LARGE)
        l_sc[...] = jnp.zeros_like(l_sc)
        acc_sc[...] = jnp.zeros_like(acc_sc)

    q_start = pl.program_id(2) * l_tile
    k_start = ki * s_tile

    def process(apply_mask):
        # Fold the softmax scale into Q (one (l_tile, hb*E) VPU pass instead of
        # per-head (l_tile, s_tile) passes); MXU operands are cast to mxu_dtype
        # (bf16 by default) with f32 accumulation.
        q_all = (q_ref[0] * scale).astype(mxu_dtype)
        k_all = k_ref[0].astype(mxu_dtype)
        v_all = v_ref[0].astype(mxu_dtype)

        if apply_mask:
            row = q_start + lax.broadcasted_iota(jnp.int32, (l_tile, s_tile), 0)
            col = k_start + lax.broadcasted_iota(jnp.int32, (l_tile, s_tile), 1)
            causal = col > row                     # hoisted out of the head loop

        # TODO(synk): when E, D < 128 these per-head column slices of the
        # lane-dense slab are not 128-lane aligned and may lower to lane
        # shuffles; if the bundle dump shows vrot/vxpose here, switch to a
        # 128-aligned head grouping or a fori_loop over heads.
        for h in range(n_heads):                   # static unroll; hb is kept small
            qh = q_all[:, h * e_dim:(h + 1) * e_dim]       # (l_tile, E)
            kh = k_all[:, h * e_dim:(h + 1) * e_dim]       # (s_tile, E)
            vh = v_all[:, h * d_dim:(h + 1) * d_dim]       # (s_tile, D)

            # scores = q @ k^T without materializing k^T ('nt' contraction, MXU).
            s = lax.dot_general(qh, kh, (((1,), (1,)), ((), ())),
                                preferred_element_type=jnp.float32)  # (l_tile, s_tile) f32
            if apply_mask:
                s = jnp.where(causal, _NEG_LARGE, s)

            # Online-softmax update; all elementwise math stays in f32.
            m_prev = m_sc[h]                                          # (l_tile, 1)
            m_new = jnp.maximum(m_prev, jnp.max(s, axis=-1, keepdims=True))
            alpha = jnp.exp(m_prev - m_new)
            p = jnp.exp(s - m_new)                                    # unnormalized probs
            l_sc[h] = alpha * l_sc[h] + jnp.sum(p, axis=-1, keepdims=True)
            m_sc[h] = m_new

            # Post-matmul normalization: accumulate P@V unnormalized.
            pv = jnp.dot(p.astype(mxu_dtype), vh,
                         preferred_element_type=jnp.float32)          # (l_tile, D)
            acc_sc[:, h * d_dim:(h + 1) * d_dim] = (
                alpha * acc_sc[:, h * d_dim:(h + 1) * d_dim] + pv)

    if mask_flag:
        q_end = q_start + (l_tile - 1)
        k_end = k_start + (s_tile - 1)

        # Diagonal (partially-masked) tiles: apply the triangular mask.
        @pl.when(jnp.logical_and(k_start <= q_end, k_end > q_start))
        def _diag():
            process(apply_mask=True)

        # Fully visible tiles: skip mask construction and the where pass.
        @pl.when(k_end <= q_start)
        def _full():
            process(apply_mask=False)

        # Fully masked tiles (k_start > q_end) are skipped entirely.
    else:
        process(apply_mask=False)

    @pl.when(ki == nk - 1)
    def _finalize():
        # Per-head direct stores (no lane concat).  Exact reciprocal: it runs
        # on an (l_tile, 1) tensor, so approx=True would buy nothing.
        for h in range(n_heads):
            inv = pl.reciprocal(l_sc[h])                              # (l_tile, 1)
            o_ref[0, :, h * d_dim:(h + 1) * d_dim] = (
                acc_sc[:, h * d_dim:(h + 1) * d_dim] * inv).astype(o_ref.dtype)


def _largest_divisor_tile(n, target):
    """Largest divisor of n that is <= target and a multiple of 8, else n (full dim)."""
    if n <= target:
        return n
    for t in range(min(target, n), 0, -1):
        if n % t == 0 and t % 8 == 0:
            return t
    return n


def _choose_heads_per_block(H, E, D, max_lanes=512):
    """Largest head group such that the block last dim stays lane-friendly
    (a multiple of 128 when hb < H) and hb*max(E, D) stays within a lane budget."""
    best = None
    for hb in range(1, H + 1):
        if H % hb:
            continue
        lane_ok = (hb == H) or (hb * E % 128 == 0 and hb * D % 128 == 0)
        if lane_ok and hb * max(E, D) <= max_lanes:
            best = hb
    return best if best is not None else H


def full_attention(queries, keys, values, attn_mask=None, *,
                   mask_flag=True, scale=None, heads_per_block=None,
                   l_tile=None, s_tile=None, mxu_dtype=jnp.bfloat16):
    """Pallas implementation of FullAttention.forward (output_attention=False).

    queries: (B, L, H, E), keys: (B, S, H, E), values: (B, S, H, D)
    returns: (V, None) with V of shape (B, L, H, D).  Dropout = identity
    (inference).  mxu_dtype is the MXU operand dtype (bf16 by default, f32
    accumulation); pass jnp.float32 for bit-accurate matmuls.
    """
    if attn_mask is not None:
        # TODO(synk): arbitrary user-provided attention masks not implemented.
        raise NotImplementedError("only the built-in triangular causal mask is supported")

    B, L, H, E = queries.shape
    Bk, S, Hk, Ek = keys.shape
    Bv, Sv, Hv, D = values.shape
    assert (B, H, E) == (Bk, Hk, Ek) and (Bk, S) == (Bv, Sv) and Hv == H
    if mask_flag:
        # TriangularCausalMask is an L x L mask: only valid for self-attention.
        assert L == S, "mask_flag=True requires L == S (TriangularCausalMask semantics)"

    scl = float(scale) if scale is not None else 1.0 / math.sqrt(E)

    # ---- per-chip tile sizing -------------------------------------------
    try:
        vmem_cap = int(pltpu.get_tpu_info().vmem_capacity_bytes)
    except Exception:
        vmem_cap = 64 << 20                      # conservative (v7x-sized) fallback
    if vmem_cap >= (96 << 20):                   # v5e / v6e: 128 MiB physical VMEM
        lt_target, st_target = 256, 512
    else:                                        # v7x: 64 MiB physical VMEM
        lt_target, st_target = 128, 256

    hb = heads_per_block if heads_per_block is not None else _choose_heads_per_block(H, E, D)
    assert H % hb == 0, "heads_per_block must divide H"
    if hb < H:
        assert hb * E % 128 == 0 and hb * D % 128 == 0, \
            "when heads_per_block < H, hb*E and hb*D must be multiples of 128"
    G = H // hb

    lt = l_tile if l_tile is not None else _largest_divisor_tile(L, lt_target)
    st = s_tile if s_tile is not None else _largest_divisor_tile(S, st_target)
    assert L % lt == 0 and (lt % 8 == 0 or lt == L)
    assert S % st == 0 and (st % 8 == 0 or st == S)
    nL, nK = L // lt, S // st

    # ---- explicit VMEM budget: double-buffered blocks + scratch + live temps
    isz = jnp.dtype(queries.dtype).itemsize
    blocks = (lt * hb * E + st * hb * E + st * hb * D + lt * hb * D) * isz
    scratch = (lt * hb * D + 2 * hb * lt * 128) * 4          # acc + lane-padded m/l
    temps = 4 * lt * st * 4 + 3 * (lt + st) * hb * max(E, D) * 4
    need = 2 * blocks + scratch + temps
    vmem_limit = min(int(vmem_cap * 3 // 4), max(32 << 20, 2 * need))

    # Free reinterpretation of the native (B, seq, H, E) layout as lane-dense
    # (B, seq, H*E) slabs: no HBM transposes on Q/K/V; the (B, L, H*D) kernel
    # output reshapes for free back to the torch layout (B, L, H, D).
    q2 = queries.reshape(B, L, H * E)
    k2 = keys.reshape(B, S, H * E)
    v2 = values.reshape(B, S, H * D)

    kernel = partial(_flash_attention_kernel, scale=scl, mask_flag=mask_flag,
                     n_heads=hb, e_dim=E, d_dim=D, l_tile=lt, s_tile=st,
                     mxu_dtype=mxu_dtype)

    out = pl.pallas_call(
        kernel,
        out_shape=jax.ShapeDtypeStruct((B, L, H * D), queries.dtype),
        # KV axis innermost ("arbitrary"): Q / O / flash accumulators stay
        # resident across it; K/V blocks stream through, double-buffered.
        grid=(B, G, nL, nK),
        in_specs=[
            pl.BlockSpec((1, lt, hb * E), lambda b, g, qi, ki: (b, qi, g)),
            pl.BlockSpec((1, st, hb * E), lambda b, g, qi, ki: (b, ki, g)),
            pl.BlockSpec((1, st, hb * D), lambda b, g, qi, ki: (b, ki, g)),
        ],
        out_specs=pl.BlockSpec((1, lt, hb * D), lambda b, g, qi, ki: (b, qi, g)),
        scratch_shapes=[
            pltpu.VMEM((hb, lt, 1), jnp.float32),    # running max (per head)
            pltpu.VMEM((hb, lt, 1), jnp.float32),    # running denominator (per head)
            pltpu.VMEM((lt, hb * D), jnp.float32),   # unnormalized output accumulator
        ],
        compiler_params=pltpu.CompilerParams(
            dimension_semantics=("parallel", "parallel", "parallel", "arbitrary"),
            vmem_limit_bytes=vmem_limit),
    )(q2, k2, v2)

    V = out.reshape(B, L, H, D)
    return V, None


def _reference(queries, keys, values, *, mask_flag=True, scale=None):
    """Pure-JAX reference mirroring the torch code (dropout = identity)."""
    B, L, H, E = queries.shape
    scl = scale if scale is not None else 1.0 / math.sqrt(E)
    scores = jnp.einsum('blhe,bshe->bhls', queries, keys)
    if mask_flag:
        S = keys.shape[1]
        causal = jnp.triu(jnp.ones((L, S), dtype=bool), k=1)
        scores = jnp.where(causal[None, None], -jnp.inf, scores)
    A = jax.nn.softmax(scl * scores, axis=-1)
    return jnp.einsum('bhls,bshd->blhd', A, values)


if __name__ == "__main__":
    key = jax.random.PRNGKey(0)
    B, L, S, H, E, D = 2, 128, 128, 4, 32, 32   # H*E = H*D = 128 -> lane-dense slabs
    kq, kk, kv = jax.random.split(key, 3)
    queries = jax.random.normal(kq, (B, L, H, E), dtype=jnp.float32)
    keys = jax.random.normal(kk, (B, S, H, E), dtype=jnp.float32)
    values = jax.random.normal(kv, (B, S, H, D), dtype=jnp.float32)

    # 1) Causal, f32 MXU, small explicit tiles -> exercises the flash
    #    accumulator, causal tile skipping and the diagonal-tile mask path.
    V, attn = full_attention(queries, keys, values, mask_flag=True,
                             l_tile=32, s_tile=32, mxu_dtype=jnp.float32)
    V = jax.block_until_ready(V)
    V_ref = _reference(queries, keys, values, mask_flag=True)
    assert V.shape == (B, L, H, D) and attn is None
    assert jnp.allclose(V, V_ref, atol=1e-4, rtol=1e-4), "causal f32 mismatch"

    # 2) Causal, default (per-chip) tiles, default bf16 MXU operands with f32
    #    accumulation; tolerance reflects bf16 operand quantization only.
    Vb, _ = full_attention(queries, keys, values, mask_flag=True)
    Vb = jax.block_until_ready(Vb)
    assert jnp.allclose(Vb, V_ref, atol=2e-2, rtol=2e-2), "causal bf16-MXU mismatch"

    # 3) Non-causal path, f32 MXU, mixed tile sizes.
    Vn, _ = full_attention(queries, keys, values, mask_flag=False,
                           l_tile=64, s_tile=32, mxu_dtype=jnp.float32)
    Vn = jax.block_until_ready(Vn)
    Vn_ref = _reference(queries, keys, values, mask_flag=False)
    assert jnp.allclose(Vn, Vn_ref, atol=1e-4, rtol=1e-4), "non-causal mismatch"

    print("KERNEL_OK")
</pallas_src>

<mosaic_0001>
module attributes {stable_mosaic.version = 11 : i64} {
  func.func @_flash_attention_kernel(%arg0: i32, %arg1: i32, %arg2: i32, %arg3: i32, %arg4: memref<1x32x128xf32, #tpu.memory_space<vmem>>, %arg5: memref<1x32x128xf32, #tpu.memory_space<vmem>>, %arg6: memref<1x32x128xf32, #tpu.memory_space<vmem>>, %arg7: memref<1x32x128xf32, #tpu.memory_space<vmem>>, %arg8: memref<4x32x1xf32, #tpu.memory_space<vmem>>, %arg9: memref<4x32x1xf32, #tpu.memory_space<vmem>>, %arg10: memref<32x128xf32, #tpu.memory_space<vmem>>) attributes {dimension_semantics = [#tpu.dimension_semantics<parallel>, #tpu.dimension_semantics<parallel>, #tpu.dimension_semantics<parallel>, #tpu.dimension_semantics<arbitrary>], iteration_bounds = array<i64: 2, 1, 4, 4>, scalar_prefetch = 0 : i64, scratch_operands = 3 : i64, tpu.core_type = #tpu.core_type<tc>, window_params = [{transform_indices = @transform_0, window_bounds = array<i64: 1, 32, 128>}, {transform_indices = @transform_1, window_bounds = array<i64: 1, 32, 128>}, {transform_indices = @transform_2, window_bounds = array<i64: 1, 32, 128>}, {transform_indices = @transform_3, window_bounds = array<i64: 1, 32, 128>}]} {
    %c0_i32 = arith.constant 0 : i32
    %0 = arith.cmpi eq, %arg3, %c0_i32 : i32
    %1 = arith.extui %0 : i1 to i32
    %c0_i32_0 = arith.constant 0 : i32
    %2 = arith.cmpi ne, %1, %c0_i32_0 : i32
    scf.if %2 {
      %cst = arith.constant -1.000000e+30 : f32
      %18 = vector.broadcast %cst : f32 to vector<4x32x1xf32>
      %c0 = arith.constant 0 : index
      %c0_6 = arith.constant 0 : index
      %c0_7 = arith.constant 0 : index
      %19 = vector.load %arg8[%c0, %c0_6, %c0_7] : memref<4x32x1xf32, #tpu.memory_space<vmem>>, vector<4x32x1xf32>
      tpu.vector_store %arg8[%c0, %c0_6, %c0_7], %18 {strides = array<i32>} : memref<4x32x1xf32, #tpu.memory_space<vmem>>, vector<4x32x1xf32>,
      %cst_8 = arith.constant 0.000000e+00 : f32
      %20 = vector.broadcast %cst_8 : f32 to vector<4x32x1xf32>
      %c0_9 = arith.constant 0 : index
      %c0_10 = arith.constant 0 : index
      %c0_11 = arith.constant 0 : index
      %21 = vector.load %arg9[%c0_9, %c0_10, %c0_11] : memref<4x32x1xf32, #tpu.memory_space<vmem>>, vector<4x32x1xf32>
      tpu.vector_store %arg9[%c0_9, %c0_10, %c0_11], %20 {strides = array<i32>} : memref<4x32x1xf32, #tpu.memory_space<vmem>>, vector<4x32x1xf32>,
      %cst_12 = arith.constant 0.000000e+00 : f32
      %22 = vector.broadcast %cst_12 : f32 to vector<32x128xf32>
      %c0_13 = arith.constant 0 : index
      %c0_14 = arith.constant 0 : index
      %23 = vector.load %arg10[%c0_13, %c0_14] : memref<32x128xf32, #tpu.memory_space<vmem>>, vector<32x128xf32>
      tpu.vector_store %arg10[%c0_13, %c0_14], %22 {strides = array<i32>} : memref<32x128xf32, #tpu.memory_space<vmem>>, vector<32x128xf32>,
    } else {
    }
    %c32_i32 = arith.constant 32 : i32
    %3 = arith.muli %arg2, %c32_i32 : i32
    %c32_i32_1 = arith.constant 32 : i32
    %4 = arith.muli %arg3, %c32_i32_1 : i32
    %c31_i32 = arith.constant 31 : i32
    %5 = arith.addi %3, %c31_i32 : i32
    %c31_i32_2 = arith.constant 31 : i32
    %6 = arith.addi %4, %c31_i32_2 : i32
    %7 = arith.cmpi sle, %4, %5 : i32
    %8 = arith.cmpi sgt, %6, %3 : i32
    %9 = arith.andi %7, %8 : i1
    %10 = arith.extui %9 : i1 to i32
    %c0_i32_3 = arith.constant 0 : i32
    %11 = arith.cmpi ne, %10, %c0_i32_3 : i32
    scf.if %11 {
      %c0 = arith.constant 0 : index
      %c0_6 = arith.constant 0 : index
      %c0_7 = arith.constant 0 : index
      %18 = vector.load %arg4[%c0, %c0_6, %c0_7] : memref<1x32x128xf32, #tpu.memory_space<vmem>>, vector<1x32x128xf32>
      %19 = vector.shape_cast %18 : vector<1x32x128xf32> to vector<32x128xf32>
      %cst = arith.constant 0.176776692 : f32
      %20 = vector.broadcast %cst : f32 to vector<32x128xf32>
      %21 = arith.mulf %19, %20 : vector<32x128xf32>
      %c0_8 = arith.constant 0 : index
      %c0_9 = arith.constant 0 : index
      %c0_10 = arith.constant 0 : index
      %22 = vector.load %arg5[%c0_8, %c0_9, %c0_10] : memref<1x32x128xf32, #tpu.memory_space<vmem>>, vector<1x32x128xf32>
      %23 = vector.shape_cast %22 : vector<1x32x128xf32> to vector<32x128xf32>
      %c0_11 = arith.constant 0 : index
      %c0_12 = arith.constant 0 : index
      %c0_13 = arith.constant 0 : index
      %24 = vector.load %arg6[%c0_11, %c0_12, %c0_13] : memref<1x32x128xf32, #tpu.memory_space<vmem>>, vector<1x32x128xf32>
      %25 = vector.shape_cast %24 : vector<1x32x128xf32> to vector<32x128xf32>
      %26 = tpu.iota {dimensions = array<i32: 0>} : vector<32x32xi32>
      %27 = vector.broadcast %3 : i32 to vector<32x32xi32>
      %28 = arith.addi %27, %26 : vector<32x32xi32>
      %29 = tpu.iota {dimensions = array<i32: 1>} : vector<32x32xi32>
      %30 = vector.broadcast %4 : i32 to vector<32x32xi32>
      %31 = arith.addi %30, %29 : vector<32x32xi32>
      %32 = arith.cmpi sgt, %31, %28 : vector<32x32xi32>
      %33 = vector.extract_strided_slice %21 {offsets = [0, 0], sizes = [32, 32], strides = [1, 1]} : vector<32x128xf32> to vector<32x32xf32>
      %34 = vector.extract_strided_slice %23 {offsets = [0, 0], sizes = [32, 32], strides = [1, 1]} : vector<32x128xf32> to vector<32x32xf32>
      %35 = vector.extract_strided_slice %25 {offsets = [0, 0], sizes = [32, 32], strides = [1, 1]} : vector<32x128xf32> to vector<32x32xf32>
      %cst_14 = arith.constant dense<0.000000e+00> : vector<32x32xf32>
      %36 = tpu.matmul %33, %34, %cst_14 {dimension_numbers = #tpu.dot_dimension_numbers<[1], [1], [0], [0], [0, 0, 1, 0], [], []>} : vector<32x32xf32>, vector<32x32xf32>, vector<32x32xf32> -> vector<32x32xf32>
      %cst_15 = arith.constant -1.000000e+30 : f32
      %37 = vector.broadcast %cst_15 : f32 to vector<32x32xf32>
      %38 = arith.select %32, %37, %36 : vector<32x32xi1>, vector<32x32xf32>
      %c0_16 = arith.constant 0 : index
      %c0_17 = arith.constant 0 : index
      %c0_18 = arith.constant 0 : index
      %39 = vector.load %arg8[%c0_16, %c0_17, %c0_18] : memref<4x32x1xf32, #tpu.memory_space<vmem>>, vector<1x32x1xf32>
      %40 = vector.shape_cast %39 : vector<1x32x1xf32> to vector<32x1xf32>
      %cst_19 = arith.constant dense<0xFF800000> : vector<32xf32>
      %41 = vector.multi_reduction <maximumf>, %38, %cst_19 [1] : vector<32x32xf32> to vector<32xf32>
      %42 = vector.shape_cast %41 : vector<32xf32> to vector<32x1xf32>
      %43 = arith.maximumf %40, %42 : vector<32x1xf32>
      %44 = arith.subf %40, %43 : vector<32x1xf32>
      %45 = math.exp %44 : vector<32x1xf32>
      %46 = vector.broadcast %43 : vector<32x1xf32> to vector<32x32xf32>
      %47 = arith.subf %38, %46 : vector<32x32xf32>
      %48 = math.exp %47 : vector<32x32xf32>
      %c0_20 = arith.constant 0 : index
      %c0_21 = arith.constant 0 : index
      %c0_22 = arith.constant 0 : index
      %49 = vector.load %arg9[%c0_20, %c0_21, %c0_22] : memref<4x32x1xf32, #tpu.memory_space<vmem>>, vector<1x32x1xf32>
      %50 = vector.shape_cast %49 : vector<1x32x1xf32> to vector<32x1xf32>
      %51 = arith.mulf %45, %50 : vector<32x1xf32>
      %cst_23 = arith.constant dense<0.000000e+00> : vector<32xf32>
      %52 = vector.multi_reduction <add>, %48, %cst_23 [1] : vector<32x32xf32> to vector<32xf32>
      %53 = vector.shape_cast %52 : vector<32xf32> to vector<32x1xf32>
      %54 = arith.addf %51, %53 : vector<32x1xf32>
      %c0_24 = arith.constant 0 : index
      %c0_25 = arith.constant 0 : index
      %c0_26 = arith.constant 0 : index
      %55 = vector.load %arg9[%c0_24, %c0_25, %c0_26] : memref<4x32x1xf32, #tpu.memory_space<vmem>>, vector<1x32x1xf32>
      %56 = vector.shape_cast %55 : vector<1x32x1xf32> to vector<32x1xf32>
      %57 = vector.shape_cast %54 : vector<32x1xf32> to vector<1x32x1xf32>
      tpu.vector_store %arg9[%c0_24, %c0_25, %c0_26], %57 {strides = array<i32>} : memref<4x32x1xf32, #tpu.memory_space<vmem>>, vector<1x32x1xf32>,
      %c0_27 = arith.constant 0 : index
      %c0_28 = arith.constant 0 : index
      %c0_29 = arith.constant 0 : index
      %58 = vector.load %arg8[%c0_27, %c0_28, %c0_29] : memref<4x32x1xf32, #tpu.memory_space<vmem>>, vector<1x32x1xf32>
      %59 = vector.shape_cast %58 : vector<1x32x1xf32> to vector<32x1xf32>
      %60 = vector.shape_cast %43 : vector<32x1xf32> to vector<1x32x1xf32>
      tpu.vector_store %arg8[%c0_27, %c0_28, %c0_29], %60 {strides = array<i32>} : memref<4x32x1xf32, #tpu.memory_space<vmem>>, vector<1x32x1xf32>,
      %cst_30 = arith.constant dense<0.000000e+00> : vector<32x32xf32>
      %61 = tpu.matmul %48, %35, %cst_30 {dimension_numbers = #tpu.dot_dimension_numbers<[1], [0], [0], [1], [0, 0, 1, 1], [], []>} : vector<32x32xf32>, vector<32x32xf32>, vector<32x32xf32> -> vector<32x32xf32>
      %c0_31 = arith.constant 0 : index
      %c0_32 = arith.constant 0 : index
      %62 = vector.load %arg10[%c0_31, %c0_32] : memref<32x128xf32, #tpu.memory_space<vmem>>, vector<32x32xf32>
      %63 = vector.broadcast %45 : vector<32x1xf32> to vector<32x32xf32>
      %64 = arith.mulf %63, %62 : vector<32x32xf32>
      %65 = arith.addf %64, %61 : vector<32x32xf32>
      %c0_33 = arith.constant 0 : index
      %c0_34 = arith.constant 0 : index
      %66 = vector.load %arg10[%c0_33, %c0_34] : memref<32x128xf32, #tpu.memory_space<vmem>>, vector<32x32xf32>
      tpu.vector_store %arg10[%c0_33, %c0_34], %65 {strides = array<i32>} : memref<32x128xf32, #tpu.memory_space<vmem>>, vector<32x32xf32>,
      %67 = vector.extract_strided_slice %21 {offsets = [0, 32], sizes = [32, 32], strides = [1, 1]} : vector<32x128xf32> to vector<32x32xf32>
      %68 = vector.extract_strided_slice %23 {offsets = [0, 32], sizes = [32, 32], strides = [1, 1]} : vector<32x128xf32> to vector<32x32xf32>
      %69 = vector.extract_strided_slice %25 {offsets = [0, 32], sizes = [32, 32], strides = [1, 1]} : vector<32x128xf32> to vector<32x32xf32>
      %cst_35 = arith.constant dense<0.000000e+00> : vector<32x32xf32>
      %70 = tpu.matmul %67, %68, %cst_35 {dimension_numbers = #tpu.dot_dimension_numbers<[1], [1], [0], [0], [0, 0, 1, 0], [], []>} : vector<32x32xf32>, vector<32x32xf32>, vector<32x32xf32> -> vector<32x32xf32>
      %cst_36 = arith.constant -1.000000e+30 : f32
      %71 = vector.broadcast %cst_36 : f32 to vector<32x32xf32>
      %72 = arith.select %32, %71, %70 : vector<32x32xi1>, vector<32x32xf32>
      %c1 = arith.constant 1 : index
      %c0_37 = arith.constant 0 : index
      %c0_38 = arith.constant 0 : index
      %73 = vector.load %arg8[%c1, %c0_37, %c0_38] : memref<4x32x1xf32, #tpu.memory_space<vmem>>, vector<1x32x1xf32>
      %74 = vector.shape_cast %73 : vector<1x32x1xf32> to vector<32x1xf32>
      %cst_39 = arith.constant dense<0xFF800000> : vector<32xf32>
      %75 = vector.multi_reduction <maximumf>, %72, %cst_39 [1] : vector<32x32xf32> to vector<32xf32>
      %76 = vector.shape_cast %75 : vector<32xf32> to vector<32x1xf32>
      %77 = arith.maximumf %74, %76 : vector<32x1xf32>
      %78 = arith.subf %74, %77 : vector<32x1xf32>
      %79 = math.exp %78 : vector<32x1xf32>
      %80 = vector.broadcast %77 : vector<32x1xf32> to vector<32x32xf32>
      %81 = arith.subf %72, %80 : vector<32x32xf32>
      %82 = math.exp %81 : vector<32x32xf32>
      %c1_40 = arith.constant 1 : index
      %c0_41 = arith.constant 0 : index
      %c0_42 = arith.constant 0 : index
      %83 = vector.load %arg9[%c1_40, %c0_41, %c0_42] : memref<4x32x1xf32, #tpu.memory_space<vmem>>, vector<1x32x1xf32>
      %84 = vector.shape_cast %83 : vector<1x32x1xf32> to vector<32x1xf32>
      %85 = arith.mulf %79, %84 : vector<32x1xf32>
      %cst_43 = arith.constant dense<0.000000e+00> : vector<32xf32>
      %86 = vector.multi_reduction <add>, %82, %cst_43 [1] : vector<32x32xf32> to vector<32xf32>
      %87 = vector.shape_cast %86 : vector<32xf32> to vector<32x1xf32>
      %88 = arith.addf %85, %87 : vector<32x1xf32>
      %c1_44 = arith.constant 1 : index
      %c0_45 = arith.constant 0 : index
      %c0_46 = arith.constant 0 : index
      %89 = vector.load %arg9[%c1_44, %c0_45, %c0_46] : memref<4x32x1xf32, #tpu.memory_space<vmem>>, vector<1x32x1xf32>
      %90 = vector.shape_cast %89 : vector<1x32x1xf32> to vector<32x1xf32>
      %91 = vector.shape_cast %88 : vector<32x1xf32> to vector<1x32x1xf32>
      tpu.vector_store %arg9[%c1_44, %c0_45, %c0_46], %91 {strides = array<i32>} : memref<4x32x1xf32, #tpu.memory_space<vmem>>, vector<1x32x1xf32>,
      %c1_47 = arith.constant 1 : index
      %c0_48 = arith.constant 0 : index
      %c0_49 = arith.constant 0 : index
      %92 = vector.load %arg8[%c1_47, %c0_48, %c0_49] : memref<4x32x1xf32, #tpu.memory_space<vmem>>, vector<1x32x1xf32>
      %93 = vector.shape_cast %92 : vector<1x32x1xf32> to vector<32x1xf32>
      %94 = vector.shape_cast %77 : vector<32x1xf32> to vector<1x32x1xf32>
      tpu.vector_store %arg8[%c1_47, %c0_48, %c0_49], %94 {strides = array<i32>} : memref<4x32x1xf32, #tpu.memory_space<vmem>>, vector<1x32x1xf32>,
      %cst_50 = arith.constant dense<0.000000e+00> : vector<32x32xf32>
      %95 = tpu.matmul %82, %69, %cst_50 {dimension_numbers = #tpu.dot_dimension_numbers<[1], [0], [0], [1], [0, 0, 1, 1], [], []>} : vector<32x32xf32>, vector<32x32xf32>, vector<32x32xf32> -> vector<32x32xf32>
      %c0_51 = arith.constant 0 : index
      %c32 = arith.constant 32 : index
      %96 = vector.load %arg10[%c0_51, %c32] : memref<32x128xf32, #tpu.memory_space<vmem>>, vector<32x32xf32>
      %97 = vector.broadcast %79 : vector<32x1xf32> to vector<32x32xf32>
      %98 = arith.mulf %97, %96 : vector<32x32xf32>
      %99 = arith.addf %98, %95 : vector<32x32xf32>
      %c0_52 = arith.constant 0 : index
      %c32_53 = arith.constant 32 : index
      %100 = vector.load %arg10[%c0_52, %c32_53] : memref<32x128xf32, #tpu.memory_space<vmem>>, vector<32x32xf32>
      tpu.vector_store %arg10[%c0_52, %c32_53], %99 {strides = array<i32>} : memref<32x128xf32, #tpu.memory_space<vmem>>, vector<32x32xf32>,
      %101 = vector.extract_strided_slice %21 {offsets = [0, 64], sizes = [32, 32], strides = [1, 1]} : vector<32x128xf32> to vector<32x32xf32>
      %102 = vector.extract_strided_slice %23 {offsets = [0, 64], sizes = [32, 32], strides = [1, 1]} : vector<32x128xf32> to vector<32x32xf32>
      %103 = vector.extract_strided_slice %25 {offsets = [0, 64], sizes = [32, 32], strides = [1, 1]} : vector<32x128xf32> to vector<32x32xf32>
      %cst_54 = arith.constant dense<0.000000e+00> : vector<32x32xf32>
      %104 = tpu.matmul %101, %102, %cst_54 {dimension_numbers = #tpu.dot_dimension_numbers<[1], [1], [0], [0], [0, 0, 1, 0], [], []>} : vector<32x32xf32>, vector<32x32xf32>, vector<32x32xf32> -> vector<32x32xf32>
      %cst_55 = arith.constant -1.000000e+30 : f32
      %105 = vector.broadcast %cst_55 : f32 to vector<32x32xf32>
      %106 = arith.select %32, %105, %104 : vector<32x32xi1>, vector<32x32xf32>
      %c2 = arith.constant 2 : index
      %c0_56 = arith.constant 0 : index
      %c0_57 = arith.constant 0 : index
      %107 = vector.load %arg8[%c2, %c0_56, %c0_57] : memref<4x32x1xf32, #tpu.memory_space<vmem>>, vector<1x32x1xf32>
      %108 = vector.shape_cast %107 : vector<1x32x1xf32> to vector<32x1xf32>
      %cst_58 = arith.constant dense<0xFF800000> : vector<32xf32>
      %109 = vector.multi_reduction <maximumf>, %106, %cst_58 [1] : vector<32x32xf32> to vector<32xf32>
      %110 = vector.shape_cast %109 : vector<32xf32> to vector<32x1xf32>
      %111 = arith.maximumf %108, %110 : vector<32x1xf32>
      %112 = arith.subf %108, %111 : vector<32x1xf32>
      %113 = math.exp %112 : vector<32x1xf32>
      %114 = vector.broadcast %111 : vector<32x1xf32> to vector<32x32xf32>
      %115 = arith.subf %106, %114 : vector<32x32xf32>
      %116 = math.exp %115 : vector<32x32xf32>
      %c2_59 = arith.constant 2 : index
      %c0_60 = arith.constant 0 : index
      %c0_61 = arith.constant 0 : index
      %117 = vector.load %arg9[%c2_59, %c0_60, %c0_61] : memref<4x32x1xf32, #tpu.memory_space<vmem>>, vector<1x32x1xf32>
      %118 = vector.shape_cast %117 : vector<1x32x1xf32> to vector<32x1xf32>
      %119 = arith.mulf %113, %118 : vector<32x1xf32>
      %cst_62 = arith.constant dense<0.000000e+00> : vector<32xf32>
      %120 = vector.multi_reduction <add>, %116, %cst_62 [1] : vector<32x32xf32> to vector<32xf32>
      %121 = vector.shape_cast %120 : vector<32xf32> to vector<32x1xf32>
      %122 = arith.addf %119, %121 : vector<32x1xf32>
      %c2_63 = arith.constant 2 : index
      %c0_64 = arith.constant 0 : index
      %c0_65 = arith.constant 0 : index
      %123 = vector.load %arg9[%c2_63, %c0_64, %c0_65] : memref<4x32x1xf32, #tpu.memory_space<vmem>>, vector<1x32x1xf32>
      %124 = vector.shape_cast %123 : vector<1x32x1xf32> to vector<32x1xf32>
      %125 = vector.shape_cast %122 : vector<32x1xf32> to vector<1x32x1xf32>
      tpu.vector_store %arg9[%c2_63, %c0_64, %c0_65], %125 {strides = array<i32>} : memref<4x32x1xf32, #tpu.memory_space<vmem>>, vector<1x32x1xf32>,
      %c2_66 = arith.constant 2 : index
      %c0_67 = arith.constant 0 : index
      %c0_68 = arith.constant 0 : index
      %126 = vector.load %arg8[%c2_66, %c0_67, %c0_68] : memref<4x32x1xf32, #tpu.memory_space<vmem>>, vector<1x32x1xf32>
      %127 = vector.shape_cast %126 : vector<1x32x1xf32> to vector<32x1xf32>
      %128 = vector.shape_cast %111 : vector<32x1xf32> to vector<1x32x1xf32>
      tpu.vector_store %arg8[%c2_66, %c0_67, %c0_68], %128 {strides = array<i32>} : memref<4x32x1xf32, #tpu.memory_space<vmem>>, vector<1x32x1xf32>,
      %cst_69 = arith.constant dense<0.000000e+00> : vector<32x32xf32>
      %129 = tpu.matmul %116, %103, %cst_69 {dimension_numbers = #tpu.dot_dimension_numbers<[1], [0], [0], [1], [0, 0, 1, 1], [], []>} : vector<32x32xf32>, vector<32x32xf32>, vector<32x32xf32> -> vector<32x32xf32>
      %c0_70 = arith.constant 0 : index
      %c64 = arith.constant 64 : index
      %130 = vector.load %arg10[%c0_70, %c64] : memref<32x128xf32, #tpu.memory_space<vmem>>, vector<32x32xf32>
      %131 = vector.broadcast %113 : vector<32x1xf32> to vector<32x32xf32>
      %132 = arith.mulf %131, %130 : vector<32x32xf32>
      %133 = arith.addf %132, %129 : vector<32x32xf32>
      %c0_71 = arith.constant 0 : index
      %c64_72 = arith.constant 64 : index
      %134 = vector.load %arg10[%c0_71, %c64_72] : memref<32x128xf32, #tpu.memory_space<vmem>>, vector<32x32xf32>
      tpu.vector_store %arg10[%c0_71, %c64_72], %133 {strides = array<i32>} : memref<32x128xf32, #tpu.memory_space<vmem>>, vector<32x32xf32>,
      %135 = vector.extract_strided_slice %21 {offsets = [0, 96], sizes = [32, 32], strides = [1, 1]} : vector<32x128xf32> to vector<32x32xf32>
      %136 = vector.extract_strided_slice %23 {offsets = [0, 96], sizes = [32, 32], strides = [1, 1]} : vector<32x128xf32> to vector<32x32xf32>
      %137 = vector.extract_strided_slice %25 {offsets = [0, 96], sizes = [32, 32], strides = [1, 1]} : vector<32x128xf32> to vector<32x32xf32>
      %cst_73 = arith.constant dense<0.000000e+00> : vector<32x32xf32>
      %138 = tpu.matmul %135, %136, %cst_73 {dimension_numbers = #tpu.dot_dimension_numbers<[1], [1], [0], [0], [0, 0, 1, 0], [], []>} : vector<32x32xf32>, vector<32x32xf32>, vector<32x32xf32> -> vector<32x32xf32>
      %cst_74 = arith.constant -1.000000e+30 : f32
      %139 = vector.broadcast %cst_74 : f32 to vector<32x32xf32>
      %140 = arith.select %32, %139, %138 : vector<32x32xi1>, vector<32x32xf32>
      %c3 = arith.constant 3 : index
      %c0_75 = arith.constant 0 : index
      %c0_76 = arith.constant 0 : index
      %141 = vector.load %arg8[%c3, %c0_75, %c0_76] : memref<4x32x1xf32, #tpu.memory_space<vmem>>, vector<1x32x1xf32>
      %142 = vector.shape_cast %141 : vector<1x32x1xf32> to vector<32x1xf32>
      %cst_77 = arith.constant dense<0xFF800000> : vector<32xf32>
      %143 = vector.multi_reduction <maximumf>, %140, %cst_77 [1] : vector<32x32xf32> to vector<32xf32>
      %144 = vector.shape_cast %143 : vector<32xf32> to vector<32x1xf32>
      %145 = arith.maximumf %142, %144 : vector<32x1xf32>
      %146 = arith.subf %142, %145 : vector<32x1xf32>
      %147 = math.exp %146 : vector<32x1xf32>
      %148 = vector.broadcast %145 : vector<32x1xf32> to vector<32x32xf32>
      %149 = arith.subf %140, %148 : vector<32x32xf32>
      %150 = math.exp %149 : vector<32x32xf32>
      %c3_78 = arith.constant 3 : index
      %c0_79 = arith.constant 0 : index
      %c0_80 = arith.constant 0 : index
      %151 = vector.load %arg9[%c3_78, %c0_79, %c0_80] : memref<4x32x1xf32, #tpu.memory_space<vmem>>, vector<1x32x1xf32>
      %152 = vector.shape_cast %151 : vector<1x32x1xf32> to vector<32x1xf32>
      %153 = arith.mulf %147, %152 : vector<32x1xf32>
      %cst_81 = arith.constant dense<0.000000e+00> : vector<32xf32>
      %154 = vector.multi_reduction <add>, %150, %cst_81 [1] : vector<32x32xf32> to vector<32xf32>
      %155 = vector.shape_cast %154 : vector<32xf32> to vector<32x1xf32>
      %156 = arith.addf %153, %155 : vector<32x1xf32>
      %c3_82 = arith.constant 3 : index
      %c0_83 = arith.constant 0 : index
      %c0_84 = arith.constant 0 : index
      %157 = vector.load %arg9[%c3_82, %c0_83, %c0_84] : memref<4x32x1xf32, #tpu.memory_space<vmem>>, vector<1x32x1xf32>
      %158 = vector.shape_cast %157 : vector<1x32x1xf32> to vector<32x1xf32>
      %159 = vector.shape_cast %156 : vector<32x1xf32> to vector<1x32x1xf32>
      tpu.vector_store %arg9[%c3_82, %c0_83, %c0_84], %159 {strides = array<i32>} : memref<4x32x1xf32, #tpu.memory_space<vmem>>, vector<1x32x1xf32>,
      %c3_85 = arith.constant 3 : index
      %c0_86 = arith.constant 0 : index
      %c0_87 = arith.constant 0 : index
      %160 = vector.load %arg8[%c3_85, %c0_86, %c0_87] : memref<4x32x1xf32, #tpu.memory_space<vmem>>, vector<1x32x1xf32>
      %161 = vector.shape_cast %160 : vector<1x32x1xf32> to vector<32x1xf32>
      %162 = vector.shape_cast %145 : vector<32x1xf32> to vector<1x32x1xf32>
      tpu.vector_store %arg8[%c3_85, %c0_86, %c0_87], %162 {strides = array<i32>} : memref<4x32x1xf32, #tpu.memory_space<vmem>>, vector<1x32x1xf32>,
      %cst_88 = arith.constant dense<0.000000e+00> : vector<32x32xf32>
      %163 = tpu.matmul %150, %137, %cst_88 {dimension_numbers = #tpu.dot_dimension_numbers<[1], [0], [0], [1], [0, 0, 1, 1], [], []>} : vector<32x32xf32>, vector<32x32xf32>, vector<32x32xf32> -> vector<32x32xf32>
      %c0_89 = arith.constant 0 : index
      %c96 = arith.constant 96 : index
      %164 = vector.load %arg10[%c0_89, %c96] : memref<32x128xf32, #tpu.memory_space<vmem>>, vector<32x32xf32>
      %165 = vector.broadcast %147 : vector<32x1xf32> to vector<32x32xf32>
      %166 = arith.mulf %165, %164 : vector<32x32xf32>
      %167 = arith.addf %166, %163 : vector<32x32xf32>
      %c0_90 = arith.constant 0 : index
      %c96_91 = arith.constant 96 : index
      %168 = vector.load %arg10[%c0_90, %c96_91] : memref<32x128xf32, #tpu.memory_space<vmem>>, vector<32x32xf32>
      tpu.vector_store %arg10[%c0_90, %c96_91], %167 {strides = array<i32>} : memref<32x128xf32, #tpu.memory_space<vmem>>, vector<32x32xf32>,
    } else {
    }
    %12 = arith.cmpi sle, %6, %3 : i32
    %13 = arith.extui %12 : i1 to i32
    %c0_i32_4 = arith.constant 0 : i32
    %14 = arith.cmpi ne, %13, %c0_i32_4 : i32
    scf.if %14 {
      %c0 = arith.constant 0 : index
      %c0_6 = arith.constant 0 : index
      %c0_7 = arith.constant 0 : index
      %18 = vector.load %arg4[%c0, %c0_6, %c0_7] : memref<1x32x128xf32, #tpu.memory_space<vmem>>, vector<1x32x128xf32>
      %19 = vector.shape_cast %18 : vector<1x32x128xf32> to vector<32x128xf32>
      %cst = arith.constant 0.176776692 : f32
      %20 = vector.broadcast %cst : f32 to vector<32x128xf32>
      %21 = arith.mulf %19, %20 : vector<32x128xf32>
      %c0_8 = arith.constant 0 : index
      %c0_9 = arith.constant 0 : index
      %c0_10 = arith.constant 0 : index
      %22 = vector.load %arg5[%c0_8, %c0_9, %c0_10] : memref<1x32x128xf32, #tpu.memory_space<vmem>>, vector<1x32x128xf32>
      %23 = vector.shape_cast %22 : vector<1x32x128xf32> to vector<32x128xf32>
      %c0_11 = arith.constant 0 : index
      %c0_12 = arith.constant 0 : index
      %c0_13 = arith.constant 0 : index
      %24 = vector.load %arg6[%c0_11, %c0_12, %c0_13] : memref<1x32x128xf32, #tpu.memory_space<vmem>>, vector<1x32x128xf32>
      %25 = vector.shape_cast %24 : vector<1x32x128xf32> to vector<32x128xf32>
      %26 = vector.extract_strided_slice %21 {offsets = [0, 0], sizes = [32, 32], strides = [1, 1]} : vector<32x128xf32> to vector<32x32xf32>
      %27 = vector.extract_strided_slice %23 {offsets = [0, 0], sizes = [32, 32], strides = [1, 1]} : vector<32x128xf32> to vector<32x32xf32>
      %28 = vector.extract_strided_slice %25 {offsets = [0, 0], sizes = [32, 32], strides = [1, 1]} : vector<32x128xf32> to vector<32x32xf32>
      %cst_14 = arith.constant dense<0.000000e+00> : vector<32x32xf32>
      %29 = tpu.matmul %26, %27, %cst_14 {dimension_numbers = #tpu.dot_dimension_numbers<[1], [1], [0], [0], [0, 0, 1, 0], [], []>} : vector<32x32xf32>, vector<32x32xf32>, vector<32x32xf32> -> vector<32x32xf32>
      %c0_15 = arith.constant 0 : index
      %c0_16 = arith.constant 0 : index
      %c0_17 = arith.constant 0 : index
      %30 = vector.load %arg8[%c0_15, %c0_16, %c0_17] : memref<4x32x1xf32, #tpu.memory_space<vmem>>, vector<1x32x1xf32>
      %31 = vector.shape_cast %30 : vector<1x32x1xf32> to vector<32x1xf32>
      %cst_18 = arith.constant dense<0xFF800000> : vector<32xf32>
      %32 = vector.multi_reduction <maximumf>, %29, %cst_18 [1] : vector<32x32xf32> to vector<32xf32>
      %33 = vector.shape_cast %32 : vector<32xf32> to vector<32x1xf32>
      %34 = arith.maximumf %31, %33 : vector<32x1xf32>
      %35 = arith.subf %31, %34 : vector<32x1xf32>
      %36 = math.exp %35 : vector<32x1xf32>
      %37 = vector.broadcast %34 : vector<32x1xf32> to vector<32x32xf32>
      %38 = arith.subf %29, %37 : vector<32x32xf32>
      %39 = math.exp %38 : vector<32x32xf32>
      %c0_19 = arith.constant 0 : index
      %c0_20 = arith.constant 0 : index
      %c0_21 = arith.constant 0 : index
      %40 = vector.load %arg9[%c0_19, %c0_20, %c0_21] : memref<4x32x1xf32, #tpu.memory_space<vmem>>, vector<1x32x1xf32>
      %41 = vector.shape_cast %40 : vector<1x32x1xf32> to vector<32x1xf32>
      %42 = arith.mulf %36, %41 : vector<32x1xf32>
      %cst_22 = arith.constant dense<0.000000e+00> : vector<32xf32>
      %43 = vector.multi_reduction <add>, %39, %cst_22 [1] : vector<32x32xf32> to vector<32xf32>
      %44 = vector.shape_cast %43 : vector<32xf32> to vector<32x1xf32>
      %45 = arith.addf %42, %44 : vector<32x1xf32>
      %c0_23 = arith.constant 0 : index
      %c0_24 = arith.constant 0 : index
      %c0_25 = arith.constant 0 : index
      %46 = vector.load %arg9[%c0_23, %c0_24, %c0_25] : memref<4x32x1xf32, #tpu.memory_space<vmem>>, vector<1x32x1xf32>
      %47 = vector.shape_cast %46 : vector<1x32x1xf32> to vector<32x1xf32>
      %48 = vector.shape_cast %45 : vector<32x1xf32> to vector<1x32x1xf32>
      tpu.vector_store %arg9[%c0_23, %c0_24, %c0_25], %48 {strides = array<i32>} : memref<4x32x1xf32, #tpu.memory_space<vmem>>, vector<1x32x1xf32>,
      %c0_26 = arith.constant 0 : index
      %c0_27 = arith.constant 0 : index
      %c0_28 = arith.constant 0 : index
      %49 = vector.load %arg8[%c0_26, %c0_27, %c0_28] : memref<4x32x1xf32, #tpu.memory_space<vmem>>, vector<1x32x1xf32>
      %50 = vector.shape_cast %49 : vector<1x32x1xf32> to vector<32x1xf32>
      %51 = vector.shape_cast %34 : vector<32x1xf32> to vector<1x32x1xf32>
      tpu.vector_store %arg8[%c0_26, %c0_27, %c0_28], %51 {strides = array<i32>} : memref<4x32x1xf32, #tpu.memory_space<vmem>>, vector<1x32x1xf32>,
      %cst_29 = arith.constant dense<0.000000e+00> : vector<32x32xf32>
      %52 = tpu.matmul %39, %28, %cst_29 {dimension_numbers = #tpu.dot_dimension_numbers<[1], [0], [0], [1], [0, 0, 1, 1], [], []>} : vector<32x32xf32>, vector<32x32xf32>, vector<32x32xf32> -> vector<32x32xf32>
      %c0_30 = arith.constant 0 : index
      %c0_31 = arith.constant 0 : index
      %53 = vector.load %arg10[%c0_30, %c0_31] : memref<32x128xf32, #tpu.memory_space<vmem>>, vector<32x32xf32>
      %54 = vector.broadcast %36 : vector<32x1xf32> to vector<32x32xf32>
      %55 = arith.mulf %54, %53 : vector<32x32xf32>
      %56 = arith.addf %55, %52 : vector<32x32xf32>
      %c0_32 = arith.constant 0 : index
      %c0_33 = arith.constant 0 : index
      %57 = vector.load %arg10[%c0_32, %c0_33] : memref<32x128xf32, #tpu.memory_space<vmem>>, vector<32x32xf32>
      tpu.vector_store %arg10[%c0_32, %c0_33], %56 {strides = array<i32>} : memref<32x128xf32, #tpu.memory_space<vmem>>, vector<32x32xf32>,
      %58 = vector.extract_strided_slice %21 {offsets = [0, 32], sizes = [32, 32], strides = [1, 1]} : vector<32x128xf32> to vector<32x32xf32>
      %59 = vector.extract_strided_slice %23 {offsets = [0, 32], sizes = [32, 32], strides = [1, 1]} : vector<32x128xf32> to vector<32x32xf32>
      %60 = vector.extract_strided_slice %25 {offsets = [0, 32], sizes = [32, 32], strides = [1, 1]} : vector<32x128xf32> to vector<32x32xf32>
      %cst_34 = arith.constant dense<0.000000e+00> : vector<32x32xf32>
      %61 = tpu.matmul %58, %59, %cst_34 {dimension_numbers = #tpu.dot_dimension_numbers<[1], [1], [0], [0], [0, 0, 1, 0], [], []>} : vector<32x32xf32>, vector<32x32xf32>, vector<32x32xf32> -> vector<32x32xf32>
      %c1 = arith.constant 1 : index
      %c0_35 = arith.constant 0 : index
      %c0_36 = arith.constant 0 : index
      %62 = vector.load %arg8[%c1, %c0_35, %c0_36] : memref<4x32x1xf32, #tpu.memory_space<vmem>>, vector<1x32x1xf32>
      %63 = vector.shape_cast %62 : vector<1x32x1xf32> to vector<32x1xf32>
      %cst_37 = arith.constant dense<0xFF800000> : vector<32xf32>
      %64 = vector.multi_reduction <maximumf>, %61, %cst_37 [1] : vector<32x32xf32> to vector<32xf32>
      %65 = vector.shape_cast %64 : vector<32xf32> to vector<32x1xf32>
      %66 = arith.maximumf %63, %65 : vector<32x1xf32>
      %67 = arith.subf %63, %66 : vector<32x1xf32>
      %68 = math.exp %67 : vector<32x1xf32>
      %69 = vector.broadcast %66 : vector<32x1xf32> to vector<32x32xf32>
      %70 = arith.subf %61, %69 : vector<32x32xf32>
      %71 = math.exp %70 : vector<32x32xf32>
      %c1_38 = arith.constant 1 : index
      %c0_39 = arith.constant 0 : index
      %c0_40 = arith.constant 0 : index
      %72 = vector.load %arg9[%c1_38, %c0_39, %c0_40] : memref<4x32x1xf32, #tpu.memory_space<vmem>>, vector<1x32x1xf32>
      %73 = vector.shape_cast %72 : vector<1x32x1xf32> to vector<32x1xf32>
      %74 = arith.mulf %68, %73 : vector<32x1xf32>
      %cst_41 = arith.constant dense<0.000000e+00> : vector<32xf32>
      %75 = vector.multi_reduction <add>, %71, %cst_41 [1] : vector<32x32xf32> to vector<32xf32>
      %76 = vector.shape_cast %75 : vector<32xf32> to vector<32x1xf32>
      %77 = arith.addf %74, %76 : vector<32x1xf32>
      %c1_42 = arith.constant 1 : index
      %c0_43 = arith.constant 0 : index
      %c0_44 = arith.constant 0 : index
      %78 = vector.load %arg9[%c1_42, %c0_43, %c0_44] : memref<4x32x1xf32, #tpu.memory_space<vmem>>, vector<1x32x1xf32>
      %79 = vector.shape_cast %78 : vector<1x32x1xf32> to vector<32x1xf32>
      %80 = vector.shape_cast %77 : vector<32x1xf32> to vector<1x32x1xf32>
      tpu.vector_store %arg9[%c1_42, %c0_43, %c0_44], %80 {strides = array<i32>} : memref<4x32x1xf32, #tpu.memory_space<vmem>>, vector<1x32x1xf32>,
      %c1_45 = arith.constant 1 : index
      %c0_46 = arith.constant 0 : index
      %c0_47 = arith.constant 0 : index
      %81 = vector.load %arg8[%c1_45, %c0_46, %c0_47] : memref<4x32x1xf32, #tpu.memory_space<vmem>>, vector<1x32x1xf32>
      %82 = vector.shape_cast %81 : vector<1x32x1xf32> to vector<32x1xf32>
      %83 = vector.shape_cast %66 : vector<32x1xf32> to vector<1x32x1xf32>
      tpu.vector_store %arg8[%c1_45, %c0_46, %c0_47], %83 {strides = array<i32>} : memref<4x32x1xf32, #tpu.memory_space<vmem>>, vector<1x32x1xf32>,
      %cst_48 = arith.constant dense<0.000000e+00> : vector<32x32xf32>
      %84 = tpu.matmul %71, %60, %cst_48 {dimension_numbers = #tpu.dot_dimension_numbers<[1], [0], [0], [1], [0, 0, 1, 1], [], []>} : vector<32x32xf32>, vector<32x32xf32>, vector<32x32xf32> -> vector<32x32xf32>
      %c0_49 = arith.constant 0 : index
      %c32 = arith.constant 32 : index
      %85 = vector.load %arg10[%c0_49, %c32] : memref<32x128xf32, #tpu.memory_space<vmem>>, vector<32x32xf32>
      %86 = vector.broadcast %68 : vector<32x1xf32> to vector<32x32xf32>
      %87 = arith.mulf %86, %85 : vector<32x32xf32>
      %88 = arith.addf %87, %84 : vector<32x32xf32>
      %c0_50 = arith.constant 0 : index
      %c32_51 = arith.constant 32 : index
      %89 = vector.load %arg10[%c0_50, %c32_51] : memref<32x128xf32, #tpu.memory_space<vmem>>, vector<32x32xf32>
      tpu.vector_store %arg10[%c0_50, %c32_51], %88 {strides = array<i32>} : memref<32x128xf32, #tpu.memory_space<vmem>>, vector<32x32xf32>,
      %90 = vector.extract_strided_slice %21 {offsets = [0, 64], sizes = [32, 32], strides = [1, 1]} : vector<32x128xf32> to vector<32x32xf32>
      %91 = vector.extract_strided_slice %23 {offsets = [0, 64], sizes = [32, 32], strides = [1, 1]} : vector<32x128xf32> to vector<32x32xf32>
      %92 = vector.extract_strided_slice %25 {offsets = [0, 64], sizes = [32, 32], strides = [1, 1]} : vector<32x128xf32> to vector<32x32xf32>
      %cst_52 = arith.constant dense<0.000000e+00> : vector<32x32xf32>
      %93 = tpu.matmul %90, %91, %cst_52 {dimension_numbers = #tpu.dot_dimension_numbers<[1], [1], [0], [0], [0, 0, 1, 0], [], []>} : vector<32x32xf32>, vector<32x32xf32>, vector<32x32xf32> -> vector<32x32xf32>
      %c2 = arith.constant 2 : index
      %c0_53 = arith.constant 0 : index
      %c0_54 = arith.constant 0 : index
      %94 = vector.load %arg8[%c2, %c0_53, %c0_54] : memref<4x32x1xf32, #tpu.memory_space<vmem>>, vector<1x32x1xf32>
      %95 = vector.shape_cast %94 : vector<1x32x1xf32> to vector<32x1xf32>
      %cst_55 = arith.constant dense<0xFF800000> : vector<32xf32>
      %96 = vector.multi_reduction <maximumf>, %93, %cst_55 [1] : vector<32x32xf32> to vector<32xf32>
      %97 = vector.shape_cast %96 : vector<32xf32> to vector<32x1xf32>
      %98 = arith.maximumf %95, %97 : vector<32x1xf32>
      %99 = arith.subf %95, %98 : vector<32x1xf32>
      %100 = math.exp %99 : vector<32x1xf32>
      %101 = vector.broadcast %98 : vector<32x1xf32> to vector<32x32xf32>
      %102 = arith.subf %93, %101 : vector<32x32xf32>
      %103 = math.exp %102 : vector<32x32xf32>
      %c2_56 = arith.constant 2 : index
      %c0_57 = arith.constant 0 : index
      %c0_58 = arith.constant 0 : index
      %104 = vector.load %arg9[%c2_56, %c0_57, %c0_58] : memref<4x32x1xf32, #tpu.memory_space<vmem>>, vector<1x32x1xf32>
      %105 = vector.shape_cast %104 : vector<1x32x1xf32> to vector<32x1xf32>
      %106 = arith.mulf %100, %105 : vector<32x1xf32>
      %cst_59 = arith.constant dense<0.000000e+00> : vector<32xf32>
      %107 = vector.multi_reduction <add>, %103, %cst_59 [1] : vector<32x32xf32> to vector<32xf32>
      %108 = vector.shape_cast %107 : vector<32xf32> to vector<32x1xf32>
      %109 = arith.addf %106, %108 : vector<32x1xf32>
      %c2_60 = arith.constant 2 : index
      %c0_61 = arith.constant 0 : index
      %c0_62 = arith.constant 0 : index
      %110 = vector.load %arg9[%c2_60, %c0_61, %c0_62] : memref<4x32x1xf32, #tpu.memory_space<vmem>>, vector<1x32x1xf32>
      %111 = vector.shape_cast %110 : vector<1x32x1xf32> to vector<32x1xf32>
      %112 = vector.shape_cast %109 : vector<32x1xf32> to vector<1x32x1xf32>
      tpu.vector_store %arg9[%c2_60, %c0_61, %c0_62], %112 {strides = array<i32>} : memref<4x32x1xf32, #tpu.memory_space<vmem>>, vector<1x32x1xf32>,
      %c2_63 = arith.constant 2 : index
      %c0_64 = arith.constant 0 : index
      %c0_65 = arith.constant 0 : index
      %113 = vector.load %arg8[%c2_63, %c0_64, %c0_65] : memref<4x32x1xf32, #tpu.memory_space<vmem>>, vector<1x32x1xf32>
      %114 = vector.shape_cast %113 : vector<1x32x1xf32> to vector<32x1xf32>
      %115 = vector.shape_cast %98 : vector<32x1xf32> to vector<1x32x1xf32>
      tpu.vector_store %arg8[%c2_63, %c0_64, %c0_65], %115 {strides = array<i32>} : memref<4x32x1xf32, #tpu.memory_space<vmem>>, vector<1x32x1xf32>,
      %cst_66 = arith.constant dense<0.000000e+00> : vector<32x32xf32>
      %116 = tpu.matmul %103, %92, %cst_66 {dimension_numbers = #tpu.dot_dimension_numbers<[1], [0], [0], [1], [0, 0, 1, 1], [], []>} : vector<32x32xf32>, vector<32x32xf32>, vector<32x32xf32> -> vector<32x32xf32>
      %c0_67 = arith.constant 0 : index
      %c64 = arith.constant 64 : index
      %117 = vector.load %arg10[%c0_67, %c64] : memref<32x128xf32, #tpu.memory_space<vmem>>, vector<32x32xf32>
      %118 = vector.broadcast %100 : vector<32x1xf32> to vector<32x32xf32>
      %119 = arith.mulf %118, %117 : vector<32x32xf32>
      %120 = arith.addf %119, %116 : vector<32x32xf32>
      %c0_68 = arith.constant 0 : index
      %c64_69 = arith.constant 64 : index
      %121 = vector.load %arg10[%c0_68, %c64_69] : memref<32x128xf32, #tpu.memory_space<vmem>>, vector<32x32xf32>
      tpu.vector_store %arg10[%c0_68, %c64_69], %120 {strides = array<i32>} : memref<32x128xf32, #tpu.memory_space<vmem>>, vector<32x32xf32>,
      %122 = vector.extract_strided_slice %21 {offsets = [0, 96], sizes = [32, 32], strides = [1, 1]} : vector<32x128xf32> to vector<32x32xf32>
      %123 = vector.extract_strided_slice %23 {offsets = [0, 96], sizes = [32, 32], strides = [1, 1]} : vector<32x128xf32> to vector<32x32xf32>
      %124 = vector.extract_strided_slice %25 {offsets = [0, 96], sizes = [32, 32], strides = [1, 1]} : vector<32x128xf32> to vector<32x32xf32>
      %cst_70 = arith.constant dense<0.000000e+00> : vector<32x32xf32>
      %125 = tpu.matmul %122, %123, %cst_70 {dimension_numbers = #tpu.dot_dimension_numbers<[1], [1], [0], [0], [0, 0, 1, 0], [], []>} : vector<32x32xf32>, vector<32x32xf32>, vector<32x32xf32> -> vector<32x32xf32>
      %c3 = arith.constant 3 : index
      %c0_71 = arith.constant 0 : index
      %c0_72 = arith.constant 0 : index
      %126 = vector.load %arg8[%c3, %c0_71, %c0_72] : memref<4x32x1xf32, #tpu.memory_space<vmem>>, vector<1x32x1xf32>
      %127 = vector.shape_cast %126 : vector<1x32x1xf32> to vector<32x1xf32>
      %cst_73 = arith.constant dense<0xFF800000> : vector<32xf32>
      %128 = vector.multi_reduction <maximumf>, %125, %cst_73 [1] : vector<32x32xf32> to vector<32xf32>
      %129 = vector.shape_cast %128 : vector<32xf32> to vector<32x1xf32>
      %130 = arith.maximumf %127, %129 : vector<32x1xf32>
      %131 = arith.subf %127, %130 : vector<32x1xf32>
      %132 = math.exp %131 : vector<32x1xf32>
      %133 = vector.broadcast %130 : vector<32x1xf32> to vector<32x32xf32>
      %134 = arith.subf %125, %133 : vector<32x32xf32>
      %135 = math.exp %134 : vector<32x32xf32>
      %c3_74 = arith.constant 3 : index
      %c0_75 = arith.constant 0 : index
      %c0_76 = arith.constant 0 : index
      %136 = vector.load %arg9[%c3_74, %c0_75, %c0_76] : memref<4x32x1xf32, #tpu.memory_space<vmem>>, vector<1x32x1xf32>
      %137 = vector.shape_cast %136 : vector<1x32x1xf32> to vector<32x1xf32>
      %138 = arith.mulf %132, %137 : vector<32x1xf32>
      %cst_77 = arith.constant dense<0.000000e+00> : vector<32xf32>
      %139 = vector.multi_reduction <add>, %135, %cst_77 [1] : vector<32x32xf32> to vector<32xf32>
      %140 = vector.shape_cast %139 : vector<32xf32> to vector<32x1xf32>
      %141 = arith.addf %138, %140 : vector<32x1xf32>
      %c3_78 = arith.constant 3 : index
      %c0_79 = arith.constant 0 : index
      %c0_80 = arith.constant 0 : index
      %142 = vector.load %arg9[%c3_78, %c0_79, %c0_80] : memref<4x32x1xf32, #tpu.memory_space<vmem>>, vector<1x32x1xf32>
      %143 = vector.shape_cast %142 : vector<1x32x1xf32> to vector<32x1xf32>
      %144 = vector.shape_cast %141 : vector<32x1xf32> to vector<1x32x1xf32>
      tpu.vector_store %arg9[%c3_78, %c0_79, %c0_80], %144 {strides = array<i32>} : memref<4x32x1xf32, #tpu.memory_space<vmem>>, vector<1x32x1xf32>,
      %c3_81 = arith.constant 3 : index
      %c0_82 = arith.constant 0 : index
      %c0_83 = arith.constant 0 : index
      %145 = vector.load %arg8[%c3_81, %c0_82, %c0_83] : memref<4x32x1xf32, #tpu.memory_space<vmem>>, vector<1x32x1xf32>
      %146 = vector.shape_cast %145 : vector<1x32x1xf32> to vector<32x1xf32>
      %147 = vector.shape_cast %130 : vector<32x1xf32> to vector<1x32x1xf32>
      tpu.vector_store %arg8[%c3_81, %c0_82, %c0_83], %147 {strides = array<i32>} : memref<4x32x1xf32, #tpu.memory_space<vmem>>, vector<1x32x1xf32>,
      %cst_84 = arith.constant dense<0.000000e+00> : vector<32x32xf32>
      %148 = tpu.matmul %135, %124, %cst_84 {dimension_numbers = #tpu.dot_dimension_numbers<[1], [0], [0], [1], [0, 0, 1, 1], [], []>} : vector<32x32xf32>, vector<32x32xf32>, vector<32x32xf32> -> vector<32x32xf32>
      %c0_85 = arith.constant 0 : index
      %c96 = arith.constant 96 : index
      %149 = vector.load %arg10[%c0_85, %c96] : memref<32x128xf32, #tpu.memory_space<vmem>>, vector<32x32xf32>
      %150 = vector.broadcast %132 : vector<32x1xf32> to vector<32x32xf32>
      %151 = arith.mulf %150, %149 : vector<32x32xf32>
      %152 = arith.addf %151, %148 : vector<32x32xf32>
      %c0_86 = arith.constant 0 : index
      %c96_87 = arith.constant 96 : index
      %153 = vector.load %arg10[%c0_86, %c96_87] : memref<32x128xf32, #tpu.memory_space<vmem>>, vector<32x32xf32>
      tpu.vector_store %arg10[%c0_86, %c96_87], %152 {strides = array<i32>} : memref<32x128xf32, #tpu.memory_space<vmem>>, vector<32x32xf32>,
    } else {
    }
    %c3_i32 = arith.constant 3 : i32
    %15 = arith.cmpi eq, %arg3, %c3_i32 : i32
    %16 = arith.extui %15 : i1 to i32
    %c0_i32_5 = arith.constant 0 : i32
    %17 = arith.cmpi ne, %16, %c0_i32_5 : i32
    scf.if %17 {
      %c0 = arith.constant 0 : index
      %c0_6 = arith.constant 0 : index
      %c0_7 = arith.constant 0 : index
      %18 = vector.load %arg9[%c0, %c0_6, %c0_7] : memref<4x32x1xf32, #tpu.memory_space<vmem>>, vector<1x32x1xf32>
      %19 = vector.shape_cast %18 : vector<1x32x1xf32> to vector<32x1xf32>
      %20 = tpu.reciprocal %19 : vector<32x1xf32> -> vector<32x1xf32>
      %c0_8 = arith.constant 0 : index
      %c0_9 = arith.constant 0 : index
      %21 = vector.load %arg10[%c0_8, %c0_9] : memref<32x128xf32, #tpu.memory_space<vmem>>, vector<32x32xf32>
      %22 = vector.broadcast %20 : vector<32x1xf32> to vector<32x32xf32>
      %23 = arith.mulf %21, %22 : vector<32x32xf32>
      %c0_10 = arith.constant 0 : index
      %c0_11 = arith.constant 0 : index
      %c0_12 = arith.constant 0 : index
      %24 = vector.load %arg7[%c0_10, %c0_11, %c0_12] : memref<1x32x128xf32, #tpu.memory_space<vmem>>, vector<1x32x32xf32>
      %25 = vector.shape_cast %24 : vector<1x32x32xf32> to vector<32x32xf32>
      %26 = vector.shape_cast %23 : vector<32x32xf32> to vector<1x32x32xf32>
      tpu.vector_store %arg7[%c0_10, %c0_11, %c0_12], %26 {strides = array<i32>} : memref<1x32x128xf32, #tpu.memory_space<vmem>>, vector<1x32x32xf32>,
      %c1 = arith.constant 1 : index
      %c0_13 = arith.constant 0 : index
      %c0_14 = arith.constant 0 : index
      %27 = vector.load %arg9[%c1, %c0_13, %c0_14] : memref<4x32x1xf32, #tpu.memory_space<vmem>>, vector<1x32x1xf32>
      %28 = vector.shape_cast %27 : vector<1x32x1xf32> to vector<32x1xf32>
      %29 = tpu.reciprocal %28 : vector<32x1xf32> -> vector<32x1xf32>
      %c0_15 = arith.constant 0 : index
      %c32 = arith.constant 32 : index
      %30 = vector.load %arg10[%c0_15, %c32] : memref<32x128xf32, #tpu.memory_space<vmem>>, vector<32x32xf32>
      %31 = vector.broadcast %29 : vector<32x1xf32> to vector<32x32xf32>
      %32 = arith.mulf %30, %31 : vector<32x32xf32>
      %c0_16 = arith.constant 0 : index
      %c0_17 = arith.constant 0 : index
      %c32_18 = arith.constant 32 : index
      %33 = vector.load %arg7[%c0_16, %c0_17, %c32_18] : memref<1x32x128xf32, #tpu.memory_space<vmem>>, vector<1x32x32xf32>
      %34 = vector.shape_cast %33 : vector<1x32x32xf32> to vector<32x32xf32>
      %35 = vector.shape_cast %32 : vector<32x32xf32> to vector<1x32x32xf32>
      tpu.vector_store %arg7[%c0_16, %c0_17, %c32_18], %35 {strides = array<i32>} : memref<1x32x128xf32, #tpu.memory_space<vmem>>, vector<1x32x32xf32>,
      %c2 = arith.constant 2 : index
      %c0_19 = arith.constant 0 : index
      %c0_20 = arith.constant 0 : index
      %36 = vector.load %arg9[%c2, %c0_19, %c0_20] : memref<4x32x1xf32, #tpu.memory_space<vmem>>, vector<1x32x1xf32>
      %37 = vector.shape_cast %36 : vector<1x32x1xf32> to vector<32x1xf32>
      %38 = tpu.reciprocal %37 : vector<32x1xf32> -> vector<32x1xf32>
      %c0_21 = arith.constant 0 : index
      %c64 = arith.constant 64 : index
      %39 = vector.load %arg10[%c0_21, %c64] : memref<32x128xf32, #tpu.memory_space<vmem>>, vector<32x32xf32>
      %40 = vector.broadcast %38 : vector<32x1xf32> to vector<32x32xf32>
      %41 = arith.mulf %39, %40 : vector<32x32xf32>
      %c0_22 = arith.constant 0 : index
      %c0_23 = arith.constant 0 : index
      %c64_24 = arith.constant 64 : index
      %42 = vector.load %arg7[%c0_22, %c0_23, %c64_24] : memref<1x32x128xf32, #tpu.memory_space<vmem>>, vector<1x32x32xf32>
      %43 = vector.shape_cast %42 : vector<1x32x32xf32> to vector<32x32xf32>
      %44 = vector.shape_cast %41 : vector<32x32xf32> to vector<1x32x32xf32>
      tpu.vector_store %arg7[%c0_22, %c0_23, %c64_24], %44 {strides = array<i32>} : memref<1x32x128xf32, #tpu.memory_space<vmem>>, vector<1x32x32xf32>,
      %c3 = arith.constant 3 : index
      %c0_25 = arith.constant 0 : index
      %c0_26 = arith.constant 0 : index
      %45 = vector.load %arg9[%c3, %c0_25, %c0_26] : memref<4x32x1xf32, #tpu.memory_space<vmem>>, vector<1x32x1xf32>
      %46 = vector.shape_cast %45 : vector<1x32x1xf32> to vector<32x1xf32>
      %47 = tpu.reciprocal %46 : vector<32x1xf32> -> vector<32x1xf32>
      %c0_27 = arith.constant 0 : index
      %c96 = arith.constant 96 : index
      %48 = vector.load %arg10[%c0_27, %c96] : memref<32x128xf32, #tpu.memory_space<vmem>>, vector<32x32xf32>
      %49 = vector.broadcast %47 : vector<32x1xf32> to vector<32x32xf32>
      %50 = arith.mulf %48, %49 : vector<32x32xf32>
      %c0_28 = arith.constant 0 : index
      %c0_29 = arith.constant 0 : index
      %c96_30 = arith.constant 96 : index
      %51 = vector.load %arg7[%c0_28, %c0_29, %c96_30] : memref<1x32x128xf32, #tpu.memory_space<vmem>>, vector<1x32x32xf32>
      %52 = vector.shape_cast %51 : vector<1x32x32xf32> to vector<32x32xf32>
      %53 = vector.shape_cast %50 : vector<32x32xf32> to vector<1x32x32xf32>
      tpu.vector_store %arg7[%c0_28, %c0_29, %c96_30], %53 {strides = array<i32>} : memref<1x32x128xf32, #tpu.memory_space<vmem>>, vector<1x32x32xf32>,
    } else {
    }
    return
  }
  func.func @transform_0(%arg0: i32, %arg1: i32, %arg2: i32, %arg3: i32) -> (i32, i32, i32) {
    %c0_i32 = arith.constant 0 : i32
    return %arg0, %arg2, %arg1 : i32, i32, i32
  }
  func.func @transform_1(%arg0: i32, %arg1: i32, %arg2: i32, %arg3: i32) -> (i32, i32, i32) {
    %c0_i32 = arith.constant 0 : i32
    return %arg0, %arg3, %arg1 : i32, i32, i32
  }
  func.func @transform_2(%arg0: i32, %arg1: i32, %arg2: i32, %arg3: i32) -> (i32, i32, i32) {
    %c0_i32 = arith.constant 0 : i32
    return %arg0, %arg3, %arg1 : i32, i32, i32
  }
  func.func @transform_3(%arg0: i32, %arg1: i32, %arg2: i32, %arg3: i32) -> (i32, i32, i32) {
    %c0_i32 = arith.constant 0 : i32
    return %arg0, %arg2, %arg1 : i32, i32, i32
  }
}

</mosaic_0001>

<llo_original>
// kernel: tpu_custom_call.1
$region0: #{tpu_custom_call.1}
  #allocation0 [shape = 'u32[]', space=smem, size = 0x4, offset = 0x4, fixed_abs, tag = 'smem constant byte address 0x4 - core index']
  #allocation1 [shape = 'u32[144,128]{1,0:T(1,128)}', space=vmem, size = 0x12000, scoped, tag = 'internal scratch']
  #allocation2 [shape = 'f32[4,32,1]{2,1,0:T(8,128)}', space=vmem, size = 0x10000, scoped, tag = 'scratch operand']
  #allocation3 [shape = 'f32[4,32,1]{2,1,0:T(8,128)}', space=vmem, size = 0x10000, scoped, tag = 'scratch operand']
  #allocation4 [shape = 'f32[32,128]{1,0:T(8,128)}', space=vmem, size = 0x4000, scoped, tag = 'scratch operand']
  %s0 = inlined_call_operand.hbm [shape: f32[2,128,128], index: 0, kind: input, shape index: {}]
  %s1 = inlined_call_operand.hbm [shape: f32[2,128,128], index: 1, kind: input, shape index: {}]
  %s2 = inlined_call_operand.hbm [shape: f32[2,128,128], index: 2, kind: input, shape index: {}]
  %s3 = inlined_call_operand.hbm [shape: f32[2,128,128], index: 3, kind: output, shape index: {}]
  %s4 = sld [smem:[#allocation0]]
  $region73: #{tpu_custom_call.1} parent=0
    _
  %s6 = ssub.s32 1, %s4
  %s7 = scalar_select 0, %s6, %s4
  $region1: #{tpu_custom_call.1} parent=0
    #allocation5 [shape = 'u8[32768]{0}', space=vmem, size = 0x8000, scoped, tag = 'input window, operand 0']
    #allocation6 [shape = 's32[2]{0}', space=sflag, size = 0x8, scoped, tag = 'scoped memory for tpu_custom_call.1']
    #allocation7 [shape = 's32[2]{0}', space=sflag, size = 0x8, scoped, tag = 'scoped memory for tpu_custom_call.1']
    #allocation8 [shape = 'u8[32768]{0}', space=vmem, size = 0x8000, scoped, tag = 'input window, operand 1']
    #allocation9 [shape = 's32[2]{0}', space=sflag, size = 0x8, scoped, tag = 'scoped memory for tpu_custom_call.1']
    #allocation10 [shape = 'u8[32768]{0}', space=vmem, size = 0x8000, scoped, tag = 'input window, operand 2']
    #allocation11 [shape = 'u8[32768]{0}', space=vmem, size = 0x8000, scoped, tag = 'output window, operand 0']
    %8 = vsyncpa [#allocation6], 0
    %s9 = scalar_lea.sflag [#allocation6], 1
    %10 = vsyncpa %s9, 0
    %11 = vsyncpa [#allocation9], 0
    %s12 = scalar_lea.sflag [#allocation9], 1
    %13 = vsyncpa %s12, 0
    %14 = vsyncpa [#allocation7], 0
    %s15 = scalar_lea.sflag [#allocation7], 1
    %16 = vsyncpa %s15, 0
    loop: start=0, step=1, limit=34
    $region2: #{tpu_custom_call.1} parent=1 // loop_pre_header
      _
    $region3: #{tpu_custom_call.1} parent=1 // loop_header
      %s18 = sphi 0, %s22
      %p19 = scmp.ge.s32.totalorder %s18, 34
      %s25 = sphi 0, %s51
      %s26 = sphi 0, %s47
      %s27 = sphi 0, %s43
      %s28 = sphi 0, %s39
      %s29 = sphi 0, %s25
      %s30 = sphi 0, %s26
      %s31 = sphi 0, %s27
      %s32 = sphi 0, %s28
      %s33 = sphi 0, %s29
      %s34 = sphi 0, %s30
      %s35 = sphi 0, %s31
      %s36 = sphi 0, %s32
      %s58 = sphi 0, %s60
      %s61 = sphi 0, %s58
      %s62 = sphi 0, %s61
      %s78 = sphi 0, %s62
      %s88 = sphi 0, %s90
      %s91 = sphi 0, %s88
      %s92 = sphi 0, %s91
      %s108 = sphi 0, %s92
      %s118 = sphi 0, %s120
      %s121 = sphi 0, %s118
      %s122 = sphi 0, %s121
      %s138 = sphi 0, %s122
      %s148 = sphi 0, %s150
      %s151 = sphi 0, %s148
      %s152 = sphi 0, %s151
      %s168 = sphi 0, %s152
    $region4: #{tpu_custom_call.1} parent=1 // loop_header_branch
      %21 = sbr.rel (%p19) target = $region8
    $region5: #{tpu_custom_call.1} parent=1 // loop_body
      %s23 = ssub.s32 %s18, 1
      %s24 = ssub.s32 %s18, 2
      %s37 = sadd.s32 1, %s28
      %p38 = scmp.ge.s32.totalorder %s37, 4
      %s39 = scalar_select %p38, 0, %s37
      %s40 = sadd.s32 1, %s27
      %s41 = scalar_select %p38, %s40, %s27
      %p42 = scmp.ge.s32.totalorder %s41, 4
      %s43 = scalar_select %p42, 0, %s41
      %s44 = sadd.s32 1, %s26
      %s45 = scalar_select %p42, %s44, %s26
      %p46 = scmp.ge.s32.totalorder %s45, 1
      %s47 = scalar_select %p46, 0, %s45
      %s48 = sadd.s32 1, %s25
      %s49 = scalar_select %p46, %s48, %s25
      %p50 = scmp.ge.s32.totalorder %s49, 2
      %s51 = scalar_select %p50, 0, %s49
      %s52 = ssub.s32 %s25, %s51
      %s53 = ssub.s32 %s27, %s43
      %s54 = sor.u32 %s52, %s53
      %s55 = ssub.s32 %s26, %s47
      %s56 = sor.u32 %s54, %s55
      %p57 = scmp.eq.s32.totalorder %s56, 0
      %s59 = sadd.s32 %s58, 1
      %s60 = scalar_select %p57, %s58, %s59
      %p63 = pneg %p57
      %p64 = scmp.eq.s32.totalorder %s18, 31
      %p65 = por %p63, %p64
      %p66 = scmp.ne.s32.totalorder %s58, %s61
      %p67 = scmp.eq.s32.totalorder %s18, 0
      %p68 = por %p66, %p67
      %p69 = scmp.ne.s32.totalorder %s58, %s61
      %p70 = scmp.eq.s32.totalorder %s23, 31
      %p71 = por %p69, %p70
      %p72 = scmp.ne.s32.totalorder %s61, %s62
      %p73 = scmp.eq.s32.totalorder %s23, 0
      %p74 = por %p72, %p73
      %p75 = scmp.ne.s32.totalorder %s61, %s62
      %p76 = scmp.eq.s32.totalorder %s24, 31
      %p77 = por %p75, %p76
      %p79 = scmp.ne.s32.totalorder %s62, %s78
      %p80 = scmp.eq.s32.totalorder %s24, 0
      %p81 = por %p79, %p80
      %s82 = ssub.s32 %s25, %s51
      %s83 = ssub.s32 %s28, %s39
      %s84 = sor.u32 %s82, %s83
      %s85 = ssub.s32 %s26, %s47
      %s86 = sor.u32 %s84, %s85
      %p87 = scmp.eq.s32.totalorder %s86, 0
      %s89 = sadd.s32 %s88, 1
      %s90 = scalar_select %p87, %s88, %s89
      %p93 = pneg %p87
      %p94 = scmp.eq.s32.totalorder %s18, 31
      %p95 = por %p93, %p94
      %p96 = scmp.ne.s32.totalorder %s88, %s91
      %p97 = scmp.eq.s32.totalorder %s18, 0
      %p98 = por %p96, %p97
      %p99 = scmp.ne.s32.totalorder %s88, %s91
      %p100 = scmp.eq.s32.totalorder %s23, 31
      %p101 = por %p99, %p100
      %p102 = scmp.ne.s32.totalorder %s91, %s92
      %p103 = scmp.eq.s32.totalorder %s23, 0
      %p104 = por %p102, %p103
      %p105 = scmp.ne.s32.totalorder %s91, %s92
      %p106 = scmp.eq.s32.totalorder %s24, 31
      %p107 = por %p105, %p106
      %p109 = scmp.ne.s32.totalorder %s92, %s108
      %p110 = scmp.eq.s32.totalorder %s24, 0
      %p111 = por %p109, %p110
      %s112 = ssub.s32 %s25, %s51
      %s113 = ssub.s32 %s28, %s39
      %s114 = sor.u32 %s112, %s113
      %s115 = ssub.s32 %s26, %s47
      %s116 = sor.u32 %s114, %s115
      %p117 = scmp.eq.s32.totalorder %s116, 0
      %s119 = sadd.s32 %s118, 1
      %s120 = scalar_select %p117, %s118, %s119
      %p123 = pneg %p117
      %p124 = scmp.eq.s32.totalorder %s18, 31
      %p125 = por %p123, %p124
      %p126 = scmp.ne.s32.totalorder %s118, %s121
      %p127 = scmp.eq.s32.totalorder %s18, 0
      %p128 = por %p126, %p127
      %p129 = scmp.ne.s32.totalorder %s118, %s121
      %p130 = scmp.eq.s32.totalorder %s23, 31
      %p131 = por %p129, %p130
      %p132 = scmp.ne.s32.totalorder %s121, %s122
      %p133 = scmp.eq.s32.totalorder %s23, 0
      %p134 = por %p132, %p133
      %p135 = scmp.ne.s32.totalorder %s121, %s122
      %p136 = scmp.eq.s32.totalorder %s24, 31
      %p137 = por %p135, %p136
      %p139 = scmp.ne.s32.totalorder %s122, %s138
      %p140 = scmp.eq.s32.totalorder %s24, 0
      %p141 = por %p139, %p140
      %s142 = ssub.s32 %s25, %s51
      %s143 = ssub.s32 %s27, %s43
      %s144 = sor.u32 %s142, %s143
      %s145 = ssub.s32 %s26, %s47
      %s146 = sor.u32 %s144, %s145
      %p147 = scmp.eq.s32.totalorder %s146, 0
      %s149 = sadd.s32 %s148, 1
      %s150 = scalar_select %p147, %s148, %s149
      %p153 = pneg %p147
      %p154 = scmp.eq.s32.totalorder %s18, 31
      %p155 = por %p153, %p154
      %p156 = scmp.ne.s32.totalorder %s148, %s151
      %p157 = scmp.eq.s32.totalorder %s18, 0
      %p158 = por %p156, %p157
      %p159 = scmp.ne.s32.totalorder %s148, %s151
      %p160 = scmp.eq.s32.totalorder %s23, 31
      %p161 = por %p159, %p160
      %p162 = scmp.ne.s32.totalorder %s151, %s152
      %p163 = scmp.eq.s32.totalorder %s23, 0
      %p164 = por %p162, %p163
      %p165 = scmp.ne.s32.totalorder %s151, %s152
      %p166 = scmp.eq.s32.totalorder %s24, 31
      %p167 = por %p165, %p166
      %p169 = scmp.ne.s32.totalorder %s152, %s168
      %p170 = scmp.eq.s32.totalorder %s24, 0
      %p171 = por %p169, %p170
      %p172 = scmp.le.s32.totalorder 1, %s18
      %p173 = scmp.lt.s32.totalorder %s18, 33
      %p174 = pnand %p172, %p173
      %p175 = pneg %p174
      // Predicated region
      $region9: #{tpu_custom_call.1} parent=5 // pred_check
        _
      $region10: #{tpu_custom_call.1} parent=5 // pred_check_branch
        %177 = sbr.rel (%p174) target = $region12
      $region11: #{tpu_custom_call.1} parent=5 // pred_region
        %s178 = ssub.s32 %s18, 1
      $region12: #{tpu_custom_call.1} parent=5 // pred_fallthru
        _
      %p179 = scmp.lt.s32.totalorder %s18, 32
      // Predicated region
      $region13: #{tpu_custom_call.1} parent=5 // pred_check
        %p180 = pneg %p179
      $region14: #{tpu_custom_call.1} parent=5 // pred_check_branch
        %182 = sbr.rel (%p180) target = $region16
      $region15: #{tpu_custom_call.1} parent=5 // pred_region
        // Predicated region
        $region17: #{tpu_custom_call.1} parent=15 // pred_check
          %p183 = pneg %p68
        $region18: #{tpu_custom_call.1} parent=15 // pred_check_branch
          %185 = sbr.rel (%p183) target = $region20
        $region19: #{tpu_custom_call.1} parent=15 // pred_region
          %s186 = sand.u32 %s58, 1
          %s187 = scalar_lea.sflag [#allocation6], %s186
          %s188 = sand.u32 %s58, 1
          %s189 = smul.addr %s188, 32
          %s190 = scalar_lea.vmem [#allocation5], %s189
          %s191 = smul.u32 4, %s27
          %s193 = ssub.s32 512, 512
          %194 = vsyncadd %s187, %s193
          %s195 = sadd.s32 %s26, %s191
          %s196 = smul.addr %s25, 16
          %s197 = sadd.s32 %s195, %s196
          %s198 = smul.addr %s197, 128
          %s199 = scalar_lea.hbm %s0, %s198
          %s200 = sshll.u32 %s190, 4
          %s201 = int_to_ptr.vmem [resolvable:$true] %s200
          %206 = dma.hbm_to_vmem [thread:$0]  %s199, 512, %s201, %s187, 128, 128, 8
        $region20: #{tpu_custom_call.1} parent=15 // pred_fallthru
          _
        // Predicated region
        $region21: #{tpu_custom_call.1} parent=15 // pred_check
          %p207 = pneg %p98
        $region22: #{tpu_custom_call.1} parent=15 // pred_check_branch
          %209 = sbr.rel (%p207) target = $region24
        $region23: #{tpu_custom_call.1} parent=15 // pred_region
          %s210 = sand.u32 %s18, 1
          %s211 = scalar_lea.sflag [#allocation9], %s210
          %s212 = sand.u32 %s88, 1
          %s213 = smul.addr %s212, 32
          %s214 = scalar_lea.vmem [#allocation8], %s213
          %s215 = smul.u32 4, %s28
          %s217 = ssub.s32 512, 512
          %218 = vsyncadd %s211, %s217
          %s219 = sadd.s32 %s26, %s215
          %s220 = smul.addr %s25, 16
          %s221 = sadd.s32 %s219, %s220
          %s222 = smul.addr %s221, 128
          %s223 = scalar_lea.hbm %s1, %s222
          %s224 = sshll.u32 %s214, 4
          %s225 = int_to_ptr.vmem [resolvable:$true] %s224
          %230 = dma.hbm_to_vmem [thread:$0]  %s223, 512, %s225, %s211, 128, 128, 8
        $region24: #{tpu_custom_call.1} parent=15 // pred_fallthru
          _
        // Predicated region
        $region25: #{tpu_custom_call.1} parent=15 // pred_check
          %p231 = pneg %p128
        $region26: #{tpu_custom_call.1} parent=15 // pred_check_branch
          %233 = sbr.rel (%p231) target = $region28
        $region27: #{tpu_custom_call.1} parent=15 // pred_region
          %s234 = sand.u32 %s18, 1
          %s235 = scalar_lea.sflag [#allocation9], %s234
          %s236 = sand.u32 %s118, 1
          %s237 = smul.addr %s236, 32
          %s238 = scalar_lea.vmem [#allocation10], %s237
          %s239 = smul.u32 4, %s28
          %s241 = ssub.s32 512, 512
          %242 = vsyncadd %s235, %s241
          %s243 = sadd.s32 %s26, %s239
          %s244 = smul.addr %s25, 16
          %s245 = sadd.s32 %s243, %s244
          %s246 = smul.addr %s245, 128
          %s247 = scalar_lea.hbm %s2, %s246
          %s248 = sshll.u32 %s238, 4
          %s249 = int_to_ptr.vmem [resolvable:$true] %s248
          %254 = dma.hbm_to_vmem [thread:$0]  %s247, 512, %s249, %s235, 128, 128, 8
        $region28: #{tpu_custom_call.1} parent=15 // pred_fallthru
          _
      $region16: #{tpu_custom_call.1} parent=5 // pred_fallthru
        _
      %p255 = scmp.le.s32.totalorder 1, %s18
      %p256 = scmp.lt.s32.totalorder %s18, 33
      %p257 = pnand %p255, %p256
      %p258 = pneg %p257
      // Predicated region
      $region29: #{tpu_custom_call.1} parent=5 // pred_check
        _
      $region30: #{tpu_custom_call.1} parent=5 // pred_check_branch
        %260 = sbr.rel (%p257) target = $region32
      $region31: #{tpu_custom_call.1} parent=5 // pred_region
        %s261 = ssub.s32 %s18, 1
        %s262 = sand.u32 %s61, 1
        %s263 = scalar_lea.sflag [#allocation6], %s262
        %s264 = sand.u32 %s61, 1
        %s265 = smul.addr %s264, 32
        %s266 = scalar_lea.vmem [#allocation5], %s265
        // Predicated region
        $region33: #{tpu_custom_call.1} parent=31 // pred_check
          %p267 = pneg %p74
        $region34: #{tpu_custom_call.1} parent=31 // pred_check_branch
          %269 = sbr.rel (%p267) target = $region36
        $region35: #{tpu_custom_call.1} parent=31 // pred_region
          %270 = dma.done %s263, 512
        $region36: #{tpu_custom_call.1} parent=31 // pred_fallthru
          _
        %s271 = sand.u32 %s23, 1
        %s272 = scalar_lea.sflag [#allocation9], %s271
        %s273 = sand.u32 %s91, 1
        %s274 = smul.addr %s273, 32
        %s275 = scalar_lea.vmem [#allocation8], %s274
        // Predicated region
        $region37: #{tpu_custom_call.1} parent=31 // pred_check
          %p276 = pneg %p104
        $region38: #{tpu_custom_call.1} parent=31 // pred_check_branch
          %278 = sbr.rel (%p276) target = $region40
        $region39: #{tpu_custom_call.1} parent=31 // pred_region
          %279 = dma.done %s272, 512
        $region40: #{tpu_custom_call.1} parent=31 // pred_fallthru
          _
        %s280 = sand.u32 %s23, 1
        %s281 = scalar_lea.sflag [#allocation9], %s280
        %s282 = sand.u32 %s121, 1
        %s283 = smul.addr %s282, 32
        %s284 = scalar_lea.vmem [#allocation10], %s283
        // Predicated region
        $region41: #{tpu_custom_call.1} parent=31 // pred_check
          %p285 = pneg %p134
        $region42: #{tpu_custom_call.1} parent=31 // pred_check_branch
          %287 = sbr.rel (%p285) target = $region44
        $region43: #{tpu_custom_call.1} parent=31 // pred_region
          %288 = dma.done %s281, 512
        $region44: #{tpu_custom_call.1} parent=31 // pred_fallthru
          _
        %s289 = sand.u32 %s61, 1
        %s290 = scalar_lea.sflag [#allocation6], %s289
        %s291 = sand.u32 %s61, 1
        %s292 = smul.addr %s291, 32
        %s293 = scalar_lea.vmem [#allocation5], %s292
        %p294 = pneg %p74
        %p295 = pneg %p71
        %s296 = sand.u32 %s23, 1
        %s297 = scalar_lea.sflag [#allocation9], %s296
        %s298 = sand.u32 %s91, 1
        %s299 = smul.addr %s298, 32
        %s300 = scalar_lea.vmem [#allocation8], %s299
        %p301 = pneg %p104
        %p302 = pneg %p101
        %s303 = sand.u32 %s23, 1
        %s304 = scalar_lea.sflag [#allocation9], %s303
        %s305 = sand.u32 %s121, 1
        %s306 = smul.addr %s305, 32
        %s307 = scalar_lea.vmem [#allocation10], %s306
        %p308 = pneg %p134
        %p309 = pneg %p131
        %p310 = pneg %p164
        %p311 = pneg %p161
        %s312 = sand.u32 %s151, 1
        %s313 = scalar_lea.sflag [#allocation7], %s312
        %s314 = sand.u32 %s151, 1
        %s315 = smul.addr %s314, 32
        %s316 = scalar_lea.vmem [#allocation11], %s315
        %s317 = smul.u32 4, %s31
        %s318 = smul.u32 4, %s32
        %s319 = smul.u32 4, %s32
        %s320 = smul.u32 4, %s31
        %p321 = scmp.eq.s32.totalorder %s32, 0
        // Predicated region
        $region45: #{tpu_custom_call.1} parent=31 // pred_check
          %p322 = pneg %p321
        $region46: #{tpu_custom_call.1} parent=31 // pred_check_branch
          %324 = sbr.rel (%p322) target = $region48
        $region47: #{tpu_custom_call.1} parent=31 // pred_region
          %vm325 = vcmask 7168
          %326 = vst.msk [vmem:[#allocation2] sm:$0xff] %vm325, -1e+30
          %327 = vst.msk [vmem:[#allocation2 + $0x8] sm:$0xff] %vm325, -1e+30
          %328 = vst.msk [vmem:[#allocation2 + $0x10] sm:$0xff] %vm325, -1e+30
          %329 = vst.msk [vmem:[#allocation2 + $0x18] sm:$0xff] %vm325, -1e+30
          %330 = vst.msk [vmem:[#allocation2 + $0x20] sm:$0xff] %vm325, -1e+30
          %331 = vst.msk [vmem:[#allocation2 + $0x28] sm:$0xff] %vm325, -1e+30
          %332 = vst.msk [vmem:[#allocation2 + $0x30] sm:$0xff] %vm325, -1e+30
          %333 = vst.msk [vmem:[#allocation2 + $0x38] sm:$0xff] %vm325, -1e+30
          %334 = vst.msk [vmem:[#allocation2 + $0x40] sm:$0xff] %vm325, -1e+30
          %335 = vst.msk [vmem:[#allocation2 + $0x48] sm:$0xff] %vm325, -1e+30
          %336 = vst.msk [vmem:[#allocation2 + $0x50] sm:$0xff] %vm325, -1e+30
          %337 = vst.msk [vmem:[#allocation2 + $0x58] sm:$0xff] %vm325, -1e+30
          %338 = vst.msk [vmem:[#allocation2 + $0x60] sm:$0xff] %vm325, -1e+30
          %339 = vst.msk [vmem:[#allocation2 + $0x68] sm:$0xff] %vm325, -1e+30
          %340 = vst.msk [vmem:[#allocation2 + $0x70] sm:$0xff] %vm325, -1e+30
          %341 = vst.msk [vmem:[#allocation2 + $0x78] sm:$0xff] %vm325, -1e+30
          %342 = vst.msk [vmem:[#allocation3] sm:$0xff] %vm325, 0.0
          %343 = vst.msk [vmem:[#allocation3 + $0x8] sm:$0xff] %vm325, 0.0
          %344 = vst.msk [vmem:[#allocation3 + $0x10] sm:$0xff] %vm325, 0.0
          %345 = vst.msk [vmem:[#allocation3 + $0x18] sm:$0xff] %vm325, 0.0
          %346 = vst.msk [vmem:[#allocation3 + $0x20] sm:$0xff] %vm325, 0.0
          %347 = vst.msk [vmem:[#allocation3 + $0x28] sm:$0xff] %vm325, 0.0
          %348 = vst.msk [vmem:[#allocation3 + $0x30] sm:$0xff] %vm325, 0.0
          %349 = vst.msk [vmem:[#allocation3 + $0x38] sm:$0xff] %vm325, 0.0
          %350 = vst.msk [vmem:[#allocation3 + $0x40] sm:$0xff] %vm325, 0.0
          %351 = vst.msk [vmem:[#allocation3 + $0x48] sm:$0xff] %vm325, 0.0
          %352 = vst.msk [vmem:[#allocation3 + $0x50] sm:$0xff] %vm325, 0.0
          %353 = vst.msk [vmem:[#allocation3 + $0x58] sm:$0xff] %vm325, 0.0
          %354 = vst.msk [vmem:[#allocation3 + $0x60] sm:$0xff] %vm325, 0.0
          %355 = vst.msk [vmem:[#allocation3 + $0x68] sm:$0xff] %vm325, 0.0
          %356 = vst.msk [vmem:[#allocation3 + $0x70] sm:$0xff] %vm325, 0.0
          %357 = vst.msk [vmem:[#allocation3 + $0x78] sm:$0xff] %vm325, 0.0
          %358 = vst [vmem:[#allocation4] sm:$0xff] 0.0
          %359 = vst [vmem:[#allocation4 + $0x8] sm:$0xff] 0.0
          %360 = vst [vmem:[#allocation4 + $0x10] sm:$0xff] 0.0
          %361 = vst [vmem:[#allocation4 + $0x18] sm:$0xff] 0.0
        $region48: #{tpu_custom_call.1} parent=31 // pred_fallthru
          _
        %s362 = smul.u32 %s31, 32
        %s363 = smul.u32 %s32, 32
        %s364 = sadd.s32 %s362, 31
        %s365 = sadd.s32 %s363, 31
        %p366 = scmp.le.s32.totalorder %s363, %s364
        %p367 = scmp.gt.s32.totalorder %s365, %s362
        %p368 = pnand %p366, %p367
        %p369 = pneg %p368
        // Predicated region
        $region49: #{tpu_custom_call.1} parent=31 // pred_check
          _
        $region50: #{tpu_custom_call.1} parent=31 // pred_check_branch
          %371 = sbr.rel (%p368) target = $region52
        $region51: #{tpu_custom_call.1} parent=31 // pred_region
          %v372 = vld [vmem:[%s266] sm:$0xff]
          %v373 = vld [vmem:[%s266 + $0x8] sm:$0xff]
          %v374 = vld [vmem:[%s266 + $0x10] sm:$0xff]
          %v375 = vld [vmem:[%s266 + $0x18] sm:$0xff]
          %v376 = vmul.f32 %v372, 0.17677669
          %v377 = vmul.f32 %v373, 0.17677669
          %v378 = vmul.f32 %v374, 0.17677669
          %v379 = vmul.f32 %v375, 0.17677669
          %v380 = vld [vmem:[%s275] sm:$0xff]
          %v381 = vld [vmem:[%s275 + $0x8] sm:$0xff]
          %v382 = vld [vmem:[%s275 + $0x10] sm:$0xff]
          %v383 = vld [vmem:[%s275 + $0x18] sm:$0xff]
          %v384 = vld [vmem:[%s284] sm:$0xff]
          %v385 = vld [vmem:[%s284 + $0x8] sm:$0xff]
          %v386 = vld [vmem:[%s284 + $0x10] sm:$0xff]
          %v387 = vld [vmem:[%s284 + $0x18] sm:$0xff]
          %v388 = vlaneseq
          %v389 = vshrl.u32 %v388, 7
          %v390 = vadd.s32 %v389, 8
          %v391 = vadd.s32 %v389, 16
          %v392 = vadd.s32 %v389, 24
          %v393 = vstv %s362
          %v394 = vadd.s32 %v393, %v389
          %v395 = vadd.s32 %v393, %v390
          %v396 = vadd.s32 %v393, %v391
          %v397 = vadd.s32 %v393, %v392
          %v398 = vlaneseq
          %v399 = vand.u32 %v398, 127
          %v400 = vstv %s363
          %v401 = vadd.s32 %v400, %v399
          %vm402 = vcmp.gt.s32.totalorder %v401, %v394
          %vm403 = vcmp.gt.s32.totalorder %v401, %v395
          %vm404 = vcmp.gt.s32.totalorder %v401, %v396
          %vm405 = vcmp.gt.s32.totalorder %v401, %v397
          %vm406 = vcmask 261120
          %v408 = vsel %vm406, %v376, 0
          %v411 = vsel %vm406, %v377, 0
          %v414 = vsel %vm406, %v378, 0
          %v417 = vsel %vm406, %v379, 0
          %v420 = vsel %vm406, %v380, 0
          %v423 = vsel %vm406, %v381, 0
          %v426 = vsel %vm406, %v382, 0
          %v429 = vsel %vm406, %v383, 0
          %431 = vmatprep.subr.mxu0 0.0
          %432 = vmatpush1.xpose.msra.mxu0 %v420
          %433 = vmatprep.subr.mxu0 0.0
          %434 = vmatpush1.xpose.msra.mxu0 %v423
          %435 = vmatprep.subr.mxu0 0.0
          %436 = vmatpush1.xpose.msra.mxu0 %v426
          %437 = vmatprep.subr.mxu0 0.0
          %438 = vmatpush1.xpose.msra.mxu0 %v429
          %439 = vmatprep.subr.mxu0 0.0
          %440 = vmatpush1.xpose.msra.mxu0 0.0
          %441 = vmatprep.subr.mxu0 0.0
          %442 = vmatpush1.xpose.msra.mxu0 0.0
          %443 = vmatprep.subr.mxu0 0.0
          %444 = vmatpush1.xpose.msra.mxu0 0.0
          %445 = vmatprep.subr.mxu0 0.0
          %446 = vmatpush1.xpose.msra.mxu0 0.0
          %447 = vmatprep.subr.mxu0 0.0
          %448 = vmatpush1.xpose.msra.mxu0 0.0
          %449 = vmatprep.subr.mxu0 0.0
          %450 = vmatpush1.xpose.msra.mxu0 0.0
          %451 = vmatprep.subr.mxu0 0.0
          %452 = vmatpush1.xpose.msra.mxu0 0.0
          %453 = vmatprep.subr.mxu0 0.0
          %454 = vmatpush1.xpose.msra.mxu0 0.0
          %455 = vmatprep.subr.mxu0 0.0
          %456 = vmatpush1.xpose.msra.mxu0 0.0
          %457 = vmatprep.subr.mxu0 0.0
          %458 = vmatpush1.xpose.msra.mxu0 0.0
          %459 = vmatprep.subr.mxu0 0.0
          %460 = vmatpush1.xpose.msra.mxu0 0.0
          %461 = vmatprep.subr.mxu0 0.0
          %462 = vmatpush1.xpose.msra.mxu0 0.0
          %463 = vmatprep.subr.mxu0 0.0
          %464 = vmatpush1.xpose.msra.mxu0 0.0
          %465 = vmatprep.subr.mxu0 0.0
          %466 = vmatpush1.xpose.msra.mxu0 0.0
          %467 = vmatprep.subr.mxu0 0.0
          %468 = vmatpush1.xpose.msra.mxu0 0.0
          %469 = vmatprep.subr.mxu0 0.0
          %470 = vmatpush1.xpose.msra.mxu0 0.0
          %471 = vmatprep.subr.mxu0 0.0
          %472 = vmatpush1.xpose.msra.mxu0 0.0
          %473 = vmatprep.subr.mxu0 0.0
          %474 = vmatpush1.xpose.msra.mxu0 0.0
          %475 = vmatprep.subr.mxu0 0.0
          %476 = vmatpush1.xpose.msra.mxu0 0.0
          %477 = vmatprep.subr.mxu0 0.0
          %478 = vmatpush1.xpose.msra.mxu0 0.0
          %479 = vmatprep.subr.mxu0 0.0
          %480 = vmatpush1.xpose.msra.mxu0 0.0
          %481 = vmatprep.subr.mxu0 0.0
          %482 = vmatpush1.xpose.msra.mxu0 0.0
          %483 = vmatprep.subr.mxu0 0.0
          %484 = vmatpush1.xpose.msra.mxu0 0.0
          %485 = vmatprep.subr.mxu0 0.0
          %486 = vmatpush1.xpose.msra.mxu0 0.0
          %487 = vmatprep.subr.mxu0 0.0
          %488 = vmatpush1.xpose.msra.mxu0 0.0
          %489 = vmatprep.subr.mxu0 0.0
          %490 = vmatpush1.xpose.msra.mxu0 0.0
          %491 = vmatprep.subr.mxu0 0.0
          %492 = vmatpush1.xpose.msra.mxu0 0.0
          %493 = vmatprep.subr.mxu0 0.0
          %494 = vmatpush1.xpose.msra.mxu0 0.0
          %495 = vmatprep.mubr.f32.mxu0 0.0
          %496 = vmatmul.mubr.f32.gmra.mrb[0].mxu0 %v408
          %v497 = vpop.f32.mrb[0].mxu0
          %v498 = vadd.f32 0.0, %v497
          %v499 = vpop.f32.mrb[0].mxu0
          %500 = vmatprep.mubr.f32.mxu0 0.0
          %501 = vmatmul.mubr.f32.gmra.mrb[0].mxu0 %v411
          %v502 = vpop.f32.mrb[0].mxu0
          %v503 = vadd.f32 0.0, %v502
          %v504 = vpop.f32.mrb[0].mxu0
          %505 = vmatprep.mubr.f32.mxu0 0.0
          %506 = vmatmul.mubr.f32.gmra.mrb[0].mxu0 %v414
          %v507 = vpop.f32.mrb[0].mxu0
          %v508 = vadd.f32 0.0, %v507
          %v509 = vpop.f32.mrb[0].mxu0
          %510 = vmatprep.mubr.f32.mxu0 0.0
          %511 = vmatmul.mubr.f32.gmra.mrb[0].mxu0 %v417
          %v512 = vpop.f32.mrb[0].mxu0
          %v513 = vadd.f32 0.0, %v512
          %v514 = vpop.f32.mrb[0].mxu0
          %515 = vdwg.mxu0
          %v516 = vsel %vm402, -1e+30, %v498
          %v517 = vsel %vm403, -1e+30, %v503
          %v518 = vsel %vm404, -1e+30, %v508
          %v519 = vsel %vm405, -1e+30, %v513
          %v520 = vld [vmem:[#allocation2] sm:$0xff]
          %v521 = vld [vmem:[#allocation2 + $0x8] sm:$0xff]
          %v522 = vld [vmem:[#allocation2 + $0x10] sm:$0xff]
          %v523 = vld [vmem:[#allocation2 + $0x18] sm:$0xff]
          %v524 = vsel %vm406, %v516, -inf
          %525 = vmax.xlane.f32.xlu0 %v524
          %v526 = vpop.xlane.xlu0 %525
          %v527 = vsel %vm406, %v517, -inf
          %528 = vmax.xlane.f32.xlu0 %v527
          %v529 = vpop.xlane.xlu0 %528
          %v530 = vsel %vm406, %v518, -inf
          %531 = vmax.xlane.f32.xlu0 %v530
          %v532 = vpop.xlane.xlu0 %531
          %v533 = vsel %vm406, %v519, -inf
          %534 = vmax.xlane.f32.xlu0 %v533
          %v535 = vpop.xlane.xlu0 %534
          %v536 = vmax.f32 %v520, %v526
          %v537 = vmax.f32 %v521, %v529
          %v538 = vmax.f32 %v522, %v532
          %v539 = vmax.f32 %v523, %v535
          %v540 = vsub.f32 %v520, %v536
          %v541 = vsub.f32 %v521, %v537
          %v542 = vsub.f32 %v522, %v538
          %v543 = vsub.f32 %v523, %v539
          %v544 = vmul.f32 %v540, 1.442695
          %v545 = vpow.pop %v544
          %v546 = vmul.f32 %v541, 1.442695
          %v547 = vpow.pop %v546
          %v548 = vmul.f32 %v542, 1.442695
          %v549 = vpow.pop %v548
          %v550 = vmul.f32 %v543, 1.442695
          %v551 = vpow.pop %v550
          %553 = vset.pattern.permute.xlu0 0
          %554 = vperm.xlu0 %553, %v536
          %v555 = vpop.permute.xlu0 %554
          %558 = vset.pattern.permute.xlu0 0
          %559 = vperm.xlu0 %558, %v537
          %v560 = vpop.permute.xlu0 %559
          %563 = vset.pattern.permute.xlu0 0
          %564 = vperm.xlu0 %563, %v538
          %v565 = vpop.permute.xlu0 %564
          %568 = vset.pattern.permute.xlu0 0
          %569 = vperm.xlu0 %568, %v539
          %v570 = vpop.permute.xlu0 %569
          %v572 = vsub.f32 %v516, %v555
          %v573 = vsub.f32 %v517, %v560
          %v574 = vsub.f32 %v518, %v565
          %v575 = vsub.f32 %v519, %v570
          %v576 = vmul.f32 %v572, 1.442695
          %v577 = vpow.pop %v576
          %v578 = vmul.f32 %v573, 1.442695
          %v579 = vpow.pop %v578
          %v580 = vmul.f32 %v574, 1.442695
          %v581 = vpow.pop %v580
          %v582 = vmul.f32 %v575, 1.442695
          %v583 = vpow.pop %v582
          %v584 = vld [vmem:[#allocation3] sm:$0xff]
          %v585 = vld [vmem:[#allocation3 + $0x8] sm:$0xff]
          %v586 = vld [vmem:[#allocation3 + $0x10] sm:$0xff]
          %v587 = vld [vmem:[#allocation3 + $0x18] sm:$0xff]
          %v588 = vmul.f32 %v545, %v584
          %v589 = vmul.f32 %v547, %v585
          %v590 = vmul.f32 %v549, %v586
          %v591 = vmul.f32 %v551, %v587
          %v592 = vsel %vm406, %v577, 0.0
          %593 = vadd.xlane.f32.xlu0 %v592
          %v594 = vpop.xlane.xlu0 %593
          %v595 = vsel %vm406, %v579, 0.0
          %596 = vadd.xlane.f32.xlu0 %v595
          %v597 = vpop.xlane.xlu0 %596
          %v598 = vsel %vm406, %v581, 0.0
          %599 = vadd.xlane.f32.xlu0 %v598
          %v600 = vpop.xlane.xlu0 %599
          %v601 = vsel %vm406, %v583, 0.0
          %602 = vadd.xlane.f32.xlu0 %v601
          %v603 = vpop.xlane.xlu0 %602
          %v604 = vadd.f32 %v588, %v594
          %v605 = vadd.f32 %v589, %v597
          %v606 = vadd.f32 %v590, %v600
          %v607 = vadd.f32 %v591, %v603
          %vm608 = vcmask 7168
          %609 = vst.msk [vmem:[#allocation3] sm:$0xff] %vm608, %v604
          %610 = vst.msk [vmem:[#allocation3 + $0x8] sm:$0xff] %vm608, %v605
          %611 = vst.msk [vmem:[#allocation3 + $0x10] sm:$0xff] %vm608, %v606
          %612 = vst.msk [vmem:[#allocation3 + $0x18] sm:$0xff] %vm608, %v607
          %613 = vst.msk [vmem:[#allocation2] sm:$0xff] %vm608, %v536
          %614 = vst.msk [vmem:[#allocation2 + $0x8] sm:$0xff] %vm608, %v537
          %615 = vst.msk [vmem:[#allocation2 + $0x10] sm:$0xff] %vm608, %v538
          %616 = vst.msk [vmem:[#allocation2 + $0x18] sm:$0xff] %vm608, %v539
          %v618 = vsel %vm406, %v577, 0
          %v621 = vsel %vm406, %v579, 0
          %v624 = vsel %vm406, %v581, 0
          %v627 = vsel %vm406, %v583, 0
          %629 = vmatprep.subr.mxu0 0.0
          %630 = vmatpush1.msra.mxu0 %v384
          %631 = vmatprep.subr.mxu0 0.0
          %632 = vmatpush1.msra.mxu0 %v385
          %633 = vmatprep.subr.mxu0 0.0
          %634 = vmatpush1.msra.mxu0 %v386
          %635 = vmatprep.subr.mxu0 0.0
          %636 = vmatpush1.msra.mxu0 %v387
          %637 = vmatprep.subr.mxu0 0.0
          %638 = vmatpush1.msra.mxu0 0.0
          %639 = vmatprep.subr.mxu0 0.0
          %640 = vmatpush1.msra.mxu0 0.0
          %641 = vmatprep.subr.mxu0 0.0
          %642 = vmatpush1.msra.mxu0 0.0
          %643 = vmatprep.subr.mxu0 0.0
          %644 = vmatpush1.msra.mxu0 0.0
          %645 = vmatprep.subr.mxu0 0.0
          %646 = vmatpush1.msra.mxu0 0.0
          %647 = vmatprep.subr.mxu0 0.0
          %648 = vmatpush1.msra.mxu0 0.0
          %649 = vmatprep.subr.mxu0 0.0
          %650 = vmatpush1.msra.mxu0 0.0
          %651 = vmatprep.subr.mxu0 0.0
          %652 = vmatpush1.msra.mxu0 0.0
          %653 = vmatprep.subr.mxu0 0.0
          %654 = vmatpush1.msra.mxu0 0.0
          %655 = vmatprep.subr.mxu0 0.0
          %656 = vmatpush1.msra.mxu0 0.0
          %657 = vmatprep.subr.mxu0 0.0
          %658 = vmatpush1.msra.mxu0 0.0
          %659 = vmatprep.subr.mxu0 0.0
          %660 = vmatpush1.msra.mxu0 0.0
          %661 = vmatprep.subr.mxu0 0.0
          %662 = vmatpush1.msra.mxu0 0.0
          %663 = vmatprep.subr.mxu0 0.0
          %664 = vmatpush1.msra.mxu0 0.0
          %665 = vmatprep.subr.mxu0 0.0
          %666 = vmatpush1.msra.mxu0 0.0
          %667 = vmatprep.subr.mxu0 0.0
          %668 = vmatpush1.msra.mxu0 0.0
          %669 = vmatprep.subr.mxu0 0.0
          %670 = vmatpush1.msra.mxu0 0.0
          %671 = vmatprep.subr.mxu0 0.0
          %672 = vmatpush1.msra.mxu0 0.0
          %673 = vmatprep.subr.mxu0 0.0
          %674 = vmatpush1.msra.mxu0 0.0
          %675 = vmatprep.subr.mxu0 0.0
          %676 = vmatpush1.msra.mxu0 0.0
          %677 = vmatprep.subr.mxu0 0.0
          %678 = vmatpush1.msra.mxu0 0.0
          %679 = vmatprep.subr.mxu0 0.0
          %680 = vmatpush1.msra.mxu0 0.0
          %681 = vmatprep.subr.mxu0 0.0
          %682 = vmatpush1.msra.mxu0 0.0
          %683 = vmatprep.subr.mxu0 0.0
          %684 = vmatpush1.msra.mxu0 0.0
          %685 = vmatprep.subr.mxu0 0.0
          %686 = vmatpush1.msra.mxu0 0.0
          %687 = vmatprep.subr.mxu0 0.0
          %688 = vmatpush1.msra.mxu0 0.0
          %689 = vmatprep.subr.mxu0 0.0
          %690 = vmatpush1.msra.mxu0 0.0
          %691 = vmatprep.subr.mxu0 0.0
          %692 = vmatpush1.msra.mxu0 0.0
          %693 = vmatprep.mubr.f32.mxu0 0.0
          %694 = vmatmul.mubr.f32.gmra.mrb[0].mxu0 %v618
          %v695 = vpop.f32.mrb[0].mxu0
          %v696 = vadd.f32 0.0, %v695
          %v697 = vpop.f32.mrb[0].mxu0
          %698 = vmatprep.mubr.f32.mxu0 0.0
          %699 = vmatmul.mubr.f32.gmra.mrb[0].mxu0 %v621
          %v700 = vpop.f32.mrb[0].mxu0
          %v701 = vadd.f32 0.0, %v700
          %v702 = vpop.f32.mrb[0].mxu0
          %703 = vmatprep.mubr.f32.mxu0 0.0
          %704 = vmatmul.mubr.f32.gmra.mrb[0].mxu0 %v624
          %v705 = vpop.f32.mrb[0].mxu0
          %v706 = vadd.f32 0.0, %v705
          %v707 = vpop.f32.mrb[0].mxu0
          %708 = vmatprep.mubr.f32.mxu0 0.0
          %709 = vmatmul.mubr.f32.gmra.mrb[0].mxu0 %v627
          %v710 = vpop.f32.mrb[0].mxu0
          %v711 = vadd.f32 0.0, %v710
          %v712 = vpop.f32.mrb[0].mxu0
          %713 = vdwg.mxu0
          %v714 = vld [vmem:[#allocation4] sm:$0xff]
          %v715 = vld [vmem:[#allocation4 + $0x8] sm:$0xff]
          %v716 = vld [vmem:[#allocation4 + $0x10] sm:$0xff]
          %v717 = vld [vmem:[#allocation4 + $0x18] sm:$0xff]
          %719 = vset.pattern.permute.xlu0 0
          %720 = vperm.xlu0 %719, %v545
          %v721 = vpop.permute.xlu0 %720
          %724 = vset.pattern.permute.xlu0 0
          %725 = vperm.xlu0 %724, %v547
          %v726 = vpop.permute.xlu0 %725
          %729 = vset.pattern.permute.xlu0 0
          %730 = vperm.xlu0 %729, %v549
          %v731 = vpop.permute.xlu0 %730
          %734 = vset.pattern.permute.xlu0 0
          %735 = vperm.xlu0 %734, %v551
          %v736 = vpop.permute.xlu0 %735
          %v738 = vmul.f32 %v721, %v714
          %v739 = vmul.f32 %v726, %v715
          %v740 = vmul.f32 %v731, %v716
          %v741 = vmul.f32 %v736, %v717
          %v742 = vadd.f32 %v738, %v696
          %v743 = vadd.f32 %v739, %v701
          %v744 = vadd.f32 %v740, %v706
          %v745 = vadd.f32 %v741, %v711
          %746 = vst.msk [vmem:[#allocation4] sm:$0xff] %vm406, %v742
          %747 = vst.msk [vmem:[#allocation4 + $0x8] sm:$0xff] %vm406, %v743
          %748 = vst.msk [vmem:[#allocation4 + $0x10] sm:$0xff] %vm406, %v744
          %749 = vst.msk [vmem:[#allocation4 + $0x18] sm:$0xff] %vm406, %v745
          %750 = vrot.lane.b32.xlu0 %v376, 96
          %v751 = vpop.permute.xlu0 %750
          %752 = vrot.lane.b32.xlu0 %v377, 96
          %v753 = vpop.permute.xlu0 %752
          %754 = vrot.lane.b32.xlu0 %v378, 96
          %v755 = vpop.permute.xlu0 %754
          %756 = vrot.lane.b32.xlu0 %v379, 96
          %v757 = vpop.permute.xlu0 %756
          %758 = vrot.lane.b32.xlu0 %v380, 96
          %v759 = vpop.permute.xlu0 %758
          %760 = vrot.lane.b32.xlu0 %v381, 96
          %v761 = vpop.permute.xlu0 %760
          %762 = vrot.lane.b32.xlu0 %v382, 96
          %v763 = vpop.permute.xlu0 %762
          %764 = vrot.lane.b32.xlu0 %v383, 96
          %v765 = vpop.permute.xlu0 %764
          %v766 = vsel %vm406, %v751, 0
          %v768 = vsel %vm406, %v753, 0
          %v770 = vsel %vm406, %v755, 0
          %v772 = vsel %vm406, %v757, 0
          %v774 = vsel %vm406, %v759, 0
          %v776 = vsel %vm406, %v761, 0
          %v778 = vsel %vm406, %v763, 0
          %v780 = vsel %vm406, %v765, 0
          %782 = vmatprep.subr.mxu0 0.0
          %783 = vmatpush1.xpose.msra.mxu0 %v774
          %784 = vmatprep.subr.mxu0 0.0
          %785 = vmatpush1.xpose.msra.mxu0 %v776
          %786 = vmatprep.subr.mxu0 0.0
          %787 = vmatpush1.xpose.msra.mxu0 %v778
          %788 = vmatprep.subr.mxu0 0.0
          %789 = vmatpush1.xpose.msra.mxu0 %v780
          %790 = vmatprep.subr.mxu0 0.0
          %791 = vmatpush1.xpose.msra.mxu0 0.0
          %792 = vmatprep.subr.mxu0 0.0
          %793 = vmatpush1.xpose.msra.mxu0 0.0
          %794 = vmatprep.subr.mxu0 0.0
          %795 = vmatpush1.xpose.msra.mxu0 0.0
          %796 = vmatprep.subr.mxu0 0.0
          %797 = vmatpush1.xpose.msra.mxu0 0.0
          %798 = vmatprep.subr.mxu0 0.0
          %799 = vmatpush1.xpose.msra.mxu0 0.0
          %800 = vmatprep.subr.mxu0 0.0
          %801 = vmatpush1.xpose.msra.mxu0 0.0
          %802 = vmatprep.subr.mxu0 0.0
          %803 = vmatpush1.xpose.msra.mxu0 0.0
          %804 = vmatprep.subr.mxu0 0.0
          %805 = vmatpush1.xpose.msra.mxu0 0.0
          %806 = vmatprep.subr.mxu0 0.0
          %807 = vmatpush1.xpose.msra.mxu0 0.0
          %808 = vmatprep.subr.mxu0 0.0
          %809 = vmatpush1.xpose.msra.mxu0 0.0
          %810 = vmatprep.subr.mxu0 0.0
          %811 = vmatpush1.xpose.msra.mxu0 0.0
          %812 = vmatprep.subr.mxu0 0.0
          %813 = vmatpush1.xpose.msra.mxu0 0.0
          %814 = vmatprep.subr.mxu0 0.0
          %815 = vmatpush1.xpose.msra.mxu0 0.0
          %816 = vmatprep.subr.mxu0 0.0
          %817 = vmatpush1.xpose.msra.mxu0 0.0
          %818 = vmatprep.subr.mxu0 0.0
          %819 = vmatpush1.xpose.msra.mxu0 0.0
          %820 = vmatprep.subr.mxu0 0.0
          %821 = vmatpush1.xpose.msra.mxu0 0.0
          %822 = vmatprep.subr.mxu0 0.0
          %823 = vmatpush1.xpose.msra.mxu0 0.0
          %824 = vmatprep.subr.mxu0 0.0
          %825 = vmatpush1.xpose.msra.mxu0 0.0
          %826 = vmatprep.subr.mxu0 0.0
          %827 = vmatpush1.xpose.msra.mxu0 0.0
          %828 = vmatprep.subr.mxu0 0.0
          %829 = vmatpush1.xpose.msra.mxu0 0.0
          %830 = vmatprep.subr.mxu0 0.0
          %831 = vmatpush1.xpose.msra.mxu0 0.0
          %832 = vmatprep.subr.mxu0 0.0
          %833 = vmatpush1.xpose.msra.mxu0 0.0
          %834 = vmatprep.subr.mxu0 0.0
          %835 = vmatpush1.xpose.msra.mxu0 0.0
          %836 = vmatprep.subr.mxu0 0.0
          %837 = vmatpush1.xpose.msra.mxu0 0.0
          %838 = vmatprep.subr.mxu0 0.0
          %839 = vmatpush1.xpose.msra.mxu0 0.0
          %840 = vmatprep.subr.mxu0 0.0
          %841 = vmatpush1.xpose.msra.mxu0 0.0
          %842 = vmatprep.subr.mxu0 0.0
          %843 = vmatpush1.xpose.msra.mxu0 0.0
          %844 = vmatprep.subr.mxu0 0.0
          %845 = vmatpush1.xpose.msra.mxu0 0.0
          %846 = vmatprep.mubr.f32.mxu0 0.0
          %847 = vmatmul.mubr.f32.gmra.mrb[0].mxu0 %v766
          %v848 = vpop.f32.mrb[0].mxu0
          %v849 = vadd.f32 0.0, %v848
          %v850 = vpop.f32.mrb[0].mxu0
          %851 = vmatprep.mubr.f32.mxu0 0.0
          %852 = vmatmul.mubr.f32.gmra.mrb[0].mxu0 %v768
          %v853 = vpop.f32.mrb[0].mxu0
          %v854 = vadd.f32 0.0, %v853
          %v855 = vpop.f32.mrb[0].mxu0
          %856 = vmatprep.mubr.f32.mxu0 0.0
          %857 = vmatmul.mubr.f32.gmra.mrb[0].mxu0 %v770
          %v858 = vpop.f32.mrb[0].mxu0
          %v859 = vadd.f32 0.0, %v858
          %v860 = vpop.f32.mrb[0].mxu0
          %861 = vmatprep.mubr.f32.mxu0 0.0
          %862 = vmatmul.mubr.f32.gmra.mrb[0].mxu0 %v772
          %v863 = vpop.f32.mrb[0].mxu0
          %v864 = vadd.f32 0.0, %v863
          %v865 = vpop.f32.mrb[0].mxu0
          %866 = vdwg.mxu0
          %v867 = vsel %vm402, -1e+30, %v849
          %v868 = vsel %vm403, -1e+30, %v854
          %v869 = vsel %vm404, -1e+30, %v859
          %v870 = vsel %vm405, -1e+30, %v864
          %s871 = scalar_lea.vmem [#allocation2], 32
          %v872 = vld [vmem:[%s871] sm:$0xff]
          %v873 = vld [vmem:[%s871 + $0x8] sm:$0xff]
          %v874 = vld [vmem:[%s871 + $0x10] sm:$0xff]
          %v875 = vld [vmem:[%s871 + $0x18] sm:$0xff]
          %v876 = vsel %vm406, %v867, -inf
          %877 = vmax.xlane.f32.xlu0 %v876
          %v878 = vpop.xlane.xlu0 %877
          %v879 = vsel %vm406, %v868, -inf
          %880 = vmax.xlane.f32.xlu0 %v879
          %v881 = vpop.xlane.xlu0 %880
          %v882 = vsel %vm406, %v869, -inf
          %883 = vmax.xlane.f32.xlu0 %v882
          %v884 = vpop.xlane.xlu0 %883
          %v885 = vsel %vm406, %v870, -inf
          %886 = vmax.xlane.f32.xlu0 %v885
          %v887 = vpop.xlane.xlu0 %886
          %v888 = vmax.f32 %v872, %v878
          %v889 = vmax.f32 %v873, %v881
          %v890 = vmax.f32 %v874, %v884
          %v891 = vmax.f32 %v875, %v887
          %v892 = vsub.f32 %v872, %v888
          %v893 = vsub.f32 %v873, %v889
          %v894 = vsub.f32 %v874, %v890
          %v895 = vsub.f32 %v875, %v891
          %v896 = vmul.f32 %v892, 1.442695
          %v897 = vpow.pop %v896
          %v898 = vmul.f32 %v893, 1.442695
          %v899 = vpow.pop %v898
          %v900 = vmul.f32 %v894, 1.442695
          %v901 = vpow.pop %v900
          %v902 = vmul.f32 %v895, 1.442695
          %v903 = vpow.pop %v902
          %905 = vset.pattern.permute.xlu0 0
          %906 = vperm.xlu0 %905, %v888
          %v907 = vpop.permute.xlu0 %906
          %910 = vset.pattern.permute.xlu0 0
          %911 = vperm.xlu0 %910, %v889
          %v912 = vpop.permute.xlu0 %911
          %915 = vset.pattern.permute.xlu0 0
          %916 = vperm.xlu0 %915, %v890
          %v917 = vpop.permute.xlu0 %916
          %920 = vset.pattern.permute.xlu0 0
          %921 = vperm.xlu0 %920, %v891
          %v922 = vpop.permute.xlu0 %921
          %v924 = vsub.f32 %v867, %v907
          %v925 = vsub.f32 %v868, %v912
          %v926 = vsub.f32 %v869, %v917
          %v927 = vsub.f32 %v870, %v922
          %v928 = vmul.f32 %v924, 1.442695
          %v929 = vpow.pop %v928
          %v930 = vmul.f32 %v925, 1.442695
          %v931 = vpow.pop %v930
          %v932 = vmul.f32 %v926, 1.442695
          %v933 = vpow.pop %v932
          %v934 = vmul.f32 %v927, 1.442695
          %v935 = vpow.pop %v934
          %s936 = scalar_lea.vmem [#allocation3], 32
          %v937 = vld [vmem:[%s936] sm:$0xff]
          %v938 = vld [vmem:[%s936 + $0x8] sm:$0xff]
          %v939 = vld [vmem:[%s936 + $0x10] sm:$0xff]
          %v940 = vld [vmem:[%s936 + $0x18] sm:$0xff]
          %v941 = vmul.f32 %v897, %v937
          %v942 = vmul.f32 %v899, %v938
          %v943 = vmul.f32 %v901, %v939
          %v944 = vmul.f32 %v903, %v940
          %v945 = vsel %vm406, %v929, 0.0
          %946 = vadd.xlane.f32.xlu0 %v945
          %v947 = vpop.xlane.xlu0 %946
          %v948 = vsel %vm406, %v931, 0.0
          %949 = vadd.xlane.f32.xlu0 %v948
          %v950 = vpop.xlane.xlu0 %949
          %v951 = vsel %vm406, %v933, 0.0
          %952 = vadd.xlane.f32.xlu0 %v951
          %v953 = vpop.xlane.xlu0 %952
          %v954 = vsel %vm406, %v935, 0.0
          %955 = vadd.xlane.f32.xlu0 %v954
          %v956 = vpop.xlane.xlu0 %955
          %v957 = vadd.f32 %v941, %v947
          %v958 = vadd.f32 %v942, %v950
          %v959 = vadd.f32 %v943, %v953
          %v960 = vadd.f32 %v944, %v956
          %961 = vst.msk [vmem:[%s936] sm:$0xff] %vm608, %v957
          %962 = vst.msk [vmem:[%s936 + $0x8] sm:$0xff] %vm608, %v958
          %963 = vst.msk [vmem:[%s936 + $0x10] sm:$0xff] %vm608, %v959
          %964 = vst.msk [vmem:[%s936 + $0x18] sm:$0xff] %vm608, %v960
          %965 = vst.msk [vmem:[%s871] sm:$0xff] %vm608, %v888
          %966 = vst.msk [vmem:[%s871 + $0x8] sm:$0xff] %vm608, %v889
          %967 = vst.msk [vmem:[%s871 + $0x10] sm:$0xff] %vm608, %v890
          %968 = vst.msk [vmem:[%s871 + $0x18] sm:$0xff] %vm608, %v891
          %973 = vrot.lane.b32.xlu0 %v384, 96
          %v974 = vpop.permute.xlu0 %973
          %975 = vrot.lane.b32.xlu0 %v385, 96
          %v976 = vpop.permute.xlu0 %975
          %977 = vrot.lane.b32.xlu0 %v386, 96
          %v978 = vpop.permute.xlu0 %977
          %979 = vrot.lane.b32.xlu0 %v387, 96
          %v980 = vpop.permute.xlu0 %979
          %v986 = vsel %vm406, %v929, 0
          %v989 = vsel %vm406, %v931, 0
          %v992 = vsel %vm406, %v933, 0
          %v995 = vsel %vm406, %v935, 0
          %997 = vmatprep.subr.mxu0 0.0
          %998 = vmatpush1.msra.mxu0 %v974
          %999 = vmatprep.subr.mxu0 0.0
          %1000 = vmatpush1.msra.mxu0 %v976
          %1001 = vmatprep.subr.mxu0 0.0
          %1002 = vmatpush1.msra.mxu0 %v978
          %1003 = vmatprep.subr.mxu0 0.0
          %1004 = vmatpush1.msra.mxu0 %v980
          %1005 = vmatprep.subr.mxu0 0.0
          %1006 = vmatpush1.msra.mxu0 0.0
          %1007 = vmatprep.subr.mxu0 0.0
          %1008 = vmatpush1.msra.mxu0 0.0
          %1009 = vmatprep.subr.mxu0 0.0
          %1010 = vmatpush1.msra.mxu0 0.0
          %1011 = vmatprep.subr.mxu0 0.0
          %1012 = vmatpush1.msra.mxu0 0.0
          %1013 = vmatprep.subr.mxu0 0.0
          %1014 = vmatpush1.msra.mxu0 0.0
          %1015 = vmatprep.subr.mxu0 0.0
          %1016 = vmatpush1.msra.mxu0 0.0
          %1017 = vmatprep.subr.mxu0 0.0
          %1018 = vmatpush1.msra.mxu0 0.0
          %1019 = vmatprep.subr.mxu0 0.0
          %1020 = vmatpush1.msra.mxu0 0.0
          %1021 = vmatprep.subr.mxu0 0.0
          %1022 = vmatpush1.msra.mxu0 0.0
          %1023 = vmatprep.subr.mxu0 0.0
          %1024 = vmatpush1.msra.mxu0 0.0
          %1025 = vmatprep.subr.mxu0 0.0
          %1026 = vmatpush1.msra.mxu0 0.0
          %1027 = vmatprep.subr.mxu0 0.0
          %1028 = vmatpush1.msra.mxu0 0.0
          %1029 = vmatprep.subr.mxu0 0.0
          %1030 = vmatpush1.msra.mxu0 0.0
          %1031 = vmatprep.subr.mxu0 0.0
          %1032 = vmatpush1.msra.mxu0 0.0
          %1033 = vmatprep.subr.mxu0 0.0
          %1034 = vmatpush1.msra.mxu0 0.0
          %1035 = vmatprep.subr.mxu0 0.0
          %1036 = vmatpush1.msra.mxu0 0.0
          %1037 = vmatprep.subr.mxu0 0.0
          %1038 = vmatpush1.msra.mxu0 0.0
          %1039 = vmatprep.subr.mxu0 0.0
          %1040 = vmatpush1.msra.mxu0 0.0
          %1041 = vmatprep.subr.mxu0 0.0
          %1042 = vmatpush1.msra.mxu0 0.0
          %1043 = vmatprep.subr.mxu0 0.0
          %1044 = vmatpush1.msra.mxu0 0.0
          %1045 = vmatprep.subr.mxu0 0.0
          %1046 = vmatpush1.msra.mxu0 0.0
          %1047 = vmatprep.subr.mxu0 0.0
          %1048 = vmatpush1.msra.mxu0 0.0
          %1049 = vmatprep.subr.mxu0 0.0
          %1050 = vmatpush1.msra.mxu0 0.0
          %1051 = vmatprep.subr.mxu0 0.0
          %1052 = vmatpush1.msra.mxu0 0.0
          %1053 = vmatprep.subr.mxu0 0.0
          %1054 = vmatpush1.msra.mxu0 0.0
          %1055 = vmatprep.subr.mxu0 0.0
          %1056 = vmatpush1.msra.mxu0 0.0
          %1057 = vmatprep.subr.mxu0 0.0
          %1058 = vmatpush1.msra.mxu0 0.0
          %1059 = vmatprep.subr.mxu0 0.0
          %1060 = vmatpush1.msra.mxu0 0.0
          %1061 = vmatprep.mubr.f32.mxu0 0.0
          %1062 = vmatmul.mubr.f32.gmra.mrb[0].mxu0 %v986
          %v1063 = vpop.f32.mrb[0].mxu0
          %v1064 = vadd.f32 0.0, %v1063
          %v1065 = vpop.f32.mrb[0].mxu0
          %1066 = vmatprep.mubr.f32.mxu0 0.0
          %1067 = vmatmul.mubr.f32.gmra.mrb[0].mxu0 %v989
          %v1068 = vpop.f32.mrb[0].mxu0
          %v1069 = vadd.f32 0.0, %v1068
          %v1070 = vpop.f32.mrb[0].mxu0
          %1071 = vmatprep.mubr.f32.mxu0 0.0
          %1072 = vmatmul.mubr.f32.gmra.mrb[0].mxu0 %v992
          %v1073 = vpop.f32.mrb[0].mxu0
          %v1074 = vadd.f32 0.0, %v1073
          %v1075 = vpop.f32.mrb[0].mxu0
          %1076 = vmatprep.mubr.f32.mxu0 0.0
          %1077 = vmatmul.mubr.f32.gmra.mrb[0].mxu0 %v995
          %v1078 = vpop.f32.mrb[0].mxu0
          %v1079 = vadd.f32 0.0, %v1078
          %v1080 = vpop.f32.mrb[0].mxu0
          %1081 = vdwg.mxu0
          %v1082 = vld [vmem:[#allocation4] sm:$0xff]
          %v1083 = vld [vmem:[#allocation4 + $0x8] sm:$0xff]
          %v1084 = vld [vmem:[#allocation4 + $0x10] sm:$0xff]
          %v1085 = vld [vmem:[#allocation4 + $0x18] sm:$0xff]
          %1087 = vset.pattern.permute.xlu0 0
          %1088 = vperm.xlu0 %1087, %v897
          %v1089 = vpop.permute.xlu0 %1088
          %1092 = vset.pattern.permute.xlu0 0
          %1093 = vperm.xlu0 %1092, %v899
          %v1094 = vpop.permute.xlu0 %1093
          %1097 = vset.pattern.permute.xlu0 0
          %1098 = vperm.xlu0 %1097, %v901
          %v1099 = vpop.permute.xlu0 %1098
          %1102 = vset.pattern.permute.xlu0 0
          %1103 = vperm.xlu0 %1102, %v903
          %v1104 = vpop.permute.xlu0 %1103
          %v1106 = vmul.f32 %v1089, %v1082
          %v1107 = vmul.f32 %v1094, %v1083
          %v1108 = vmul.f32 %v1099, %v1084
          %v1109 = vmul.f32 %v1104, %v1085
          %1114 = vrot.lane.b32.xlu0 %v1064, 32
          %v1115 = vpop.permute.xlu0 %1114
          %1116 = vrot.lane.b32.xlu0 %v1069, 32
          %v1117 = vpop.permute.xlu0 %1116
          %1118 = vrot.lane.b32.xlu0 %v1074, 32
          %v1119 = vpop.permute.xlu0 %1118
          %1120 = vrot.lane.b32.xlu0 %v1079, 32
          %v1121 = vpop.permute.xlu0 %1120
          %v1126 = vadd.f32 %v1106, %v1115
          %v1127 = vadd.f32 %v1107, %v1117
          %v1128 = vadd.f32 %v1108, %v1119
          %v1129 = vadd.f32 %v1109, %v1121
          %vm1130 = vcmask 523520
          %1131 = vst.msk [vmem:[#allocation4] sm:$0xff] %vm1130, %v1126
          %1132 = vst.msk [vmem:[#allocation4 + $0x8] sm:$0xff] %vm1130, %v1127
          %1133 = vst.msk [vmem:[#allocation4 + $0x10] sm:$0xff] %vm1130, %v1128
          %1134 = vst.msk [vmem:[#allocation4 + $0x18] sm:$0xff] %vm1130, %v1129
          %1135 = vrot.lane.b32.xlu0 %v376, 64
          %v1136 = vpop.permute.xlu0 %1135
          %1137 = vrot.lane.b32.xlu0 %v377, 64
          %v1138 = vpop.permute.xlu0 %1137
          %1139 = vrot.lane.b32.xlu0 %v378, 64
          %v1140 = vpop.permute.xlu0 %1139
          %1141 = vrot.lane.b32.xlu0 %v379, 64
          %v1142 = vpop.permute.xlu0 %1141
          %1143 = vrot.lane.b32.xlu0 %v380, 64
          %v1144 = vpop.permute.xlu0 %1143
          %1145 = vrot.lane.b32.xlu0 %v381, 64
          %v1146 = vpop.permute.xlu0 %1145
          %1147 = vrot.lane.b32.xlu0 %v382, 64
          %v1148 = vpop.permute.xlu0 %1147
          %1149 = vrot.lane.b32.xlu0 %v383, 64
          %v1150 = vpop.permute.xlu0 %1149
          %v1151 = vsel %vm406, %v1136, 0
          %v1153 = vsel %vm406, %v1138, 0
          %v1155 = vsel %vm406, %v1140, 0
          %v1157 = vsel %vm406, %v1142, 0
          %v1159 = vsel %vm406, %v1144, 0
          %v1161 = vsel %vm406, %v1146, 0
          %v1163 = vsel %vm406, %v1148, 0
          %v1165 = vsel %vm406, %v1150, 0
          %1167 = vmatprep.subr.mxu0 0.0
          %1168 = vmatpush1.xpose.msra.mxu0 %v1159
          %1169 = vmatprep.subr.mxu0 0.0
          %1170 = vmatpush1.xpose.msra.mxu0 %v1161
          %1171 = vmatprep.subr.mxu0 0.0
          %1172 = vmatpush1.xpose.msra.mxu0 %v1163
          %1173 = vmatprep.subr.mxu0 0.0
          %1174 = vmatpush1.xpose.msra.mxu0 %v1165
          %1175 = vmatprep.subr.mxu0 0.0
          %1176 = vmatpush1.xpose.msra.mxu0 0.0
          %1177 = vmatprep.subr.mxu0 0.0
          %1178 = vmatpush1.xpose.msra.mxu0 0.0
          %1179 = vmatprep.subr.mxu0 0.0
          %1180 = vmatpush1.xpose.msra.mxu0 0.0
          %1181 = vmatprep.subr.mxu0 0.0
          %1182 = vmatpush1.xpose.msra.mxu0 0.0
          %1183 = vmatprep.subr.mxu0 0.0
          %1184 = vmatpush1.xpose.msra.mxu0 0.0
          %1185 = vmatprep.subr.mxu0 0.0
          %1186 = vmatpush1.xpose.msra.mxu0 0.0
          %1187 = vmatprep.subr.mxu0 0.0
          %1188 = vmatpush1.xpose.msra.mxu0 0.0
          %1189 = vmatprep.subr.mxu0 0.0
          %1190 = vmatpush1.xpose.msra.mxu0 0.0
          %1191 = vmatprep.subr.mxu0 0.0
          %1192 = vmatpush1.xpose.msra.mxu0 0.0
          %1193 = vmatprep.subr.mxu0 0.0
          %1194 = vmatpush1.xpose.msra.mxu0 0.0
          %1195 = vmatprep.subr.mxu0 0.0
          %1196 = vmatpush1.xpose.msra.mxu0 0.0
          %1197 = vmatprep.subr.mxu0 0.0
          %1198 = vmatpush1.xpose.msra.mxu0 0.0
          %1199 = vmatprep.subr.mxu0 0.0
          %1200 = vmatpush1.xpose.msra.mxu0 0.0
          %1201 = vmatprep.subr.mxu0 0.0
          %1202 = vmatpush1.xpose.msra.mxu0 0.0
          %1203 = vmatprep.subr.mxu0 0.0
          %1204 = vmatpush1.xpose.msra.mxu0 0.0
          %1205 = vmatprep.subr.mxu0 0.0
          %1206 = vmatpush1.xpose.msra.mxu0 0.0
          %1207 = vmatprep.subr.mxu0 0.0
          %1208 = vmatpush1.xpose.msra.mxu0 0.0
          %1209 = vmatprep.subr.mxu0 0.0
          %1210 = vmatpush1.xpose.msra.mxu0 0.0
          %1211 = vmatprep.subr.mxu0 0.0
          %1212 = vmatpush1.xpose.msra.mxu0 0.0
          %1213 = vmatprep.subr.mxu0 0.0
          %1214 = vmatpush1.xpose.msra.mxu0 0.0
          %1215 = vmatprep.subr.mxu0 0.0
          %1216 = vmatpush1.xpose.msra.mxu0 0.0
          %1217 = vmatprep.subr.mxu0 0.0
          %1218 = vmatpush1.xpose.msra.mxu0 0.0
          %1219 = vmatprep.subr.mxu0 0.0
          %1220 = vmatpush1.xpose.msra.mxu0 0.0
          %1221 = vmatprep.subr.mxu0 0.0
          %1222 = vmatpush1.xpose.msra.mxu0 0.0
          %1223 = vmatprep.subr.mxu0 0.0
          %1224 = vmatpush1.xpose.msra.mxu0 0.0
          %1225 = vmatprep.subr.mxu0 0.0
          %1226 = vmatpush1.xpose.msra.mxu0 0.0
          %1227 = vmatprep.subr.mxu0 0.0
          %1228 = vmatpush1.xpose.msra.mxu0 0.0
          %1229 = vmatprep.subr.mxu0 0.0
          %1230 = vmatpush1.xpose.msra.mxu0 0.0
          %1231 = vmatprep.mubr.f32.mxu0 0.0
          %1232 = vmatmul.mubr.f32.gmra.mrb[0].mxu0 %v1151
          %v1233 = vpop.f32.mrb[0].mxu0
          %v1234 = vadd.f32 0.0, %v1233
          %v1235 = vpop.f32.mrb[0].mxu0
          %1236 = vmatprep.mubr.f32.mxu0 0.0
          %1237 = vmatmul.mubr.f32.gmra.mrb[0].mxu0 %v1153
          %v1238 = vpop.f32.mrb[0].mxu0
          %v1239 = vadd.f32 0.0, %v1238
          %v1240 = vpop.f32.mrb[0].mxu0
          %1241 = vmatprep.mubr.f32.mxu0 0.0
          %1242 = vmatmul.mubr.f32.gmra.mrb[0].mxu0 %v1155
          %v1243 = vpop.f32.mrb[0].mxu0
          %v1244 = vadd.f32 0.0, %v1243
          %v1245 = vpop.f32.mrb[0].mxu0
          %1246 = vmatprep.mubr.f32.mxu0 0.0
          %1247 = vmatmul.mubr.f32.gmra.mrb[0].mxu0 %v1157
          %v1248 = vpop.f32.mrb[0].mxu0
          %v1249 = vadd.f32 0.0, %v1248
          %v1250 = vpop.f32.mrb[0].mxu0
          %1251 = vdwg.mxu0
          %v1252 = vsel %vm402, -1e+30, %v1234
          %v1253 = vsel %vm403, -1e+30, %v1239
          %v1254 = vsel %vm404, -1e+30, %v1244
          %v1255 = vsel %vm405, -1e+30, %v1249
          %s1256 = scalar_lea.vmem [#allocation2], 64
          %v1257 = vld [vmem:[%s1256] sm:$0xff]
          %v1258 = vld [vmem:[%s1256 + $0x8] sm:$0xff]
          %v1259 = vld [vmem:[%s1256 + $0x10] sm:$0xff]
          %v1260 = vld [vmem:[%s1256 + $0x18] sm:$0xff]
          %v1261 = vsel %vm406, %v1252, -inf
          %1262 = vmax.xlane.f32.xlu0 %v1261
          %v1263 = vpop.xlane.xlu0 %1262
          %v1264 = vsel %vm406, %v1253, -inf
          %1265 = vmax.xlane.f32.xlu0 %v1264
          %v1266 = vpop.xlane.xlu0 %1265
          %v1267 = vsel %vm406, %v1254, -inf
          %1268 = vmax.xlane.f32.xlu0 %v1267
          %v1269 = vpop.xlane.xlu0 %1268
          %v1270 = vsel %vm406, %v1255, -inf
          %1271 = vmax.xlane.f32.xlu0 %v1270
          %v1272 = vpop.xlane.xlu0 %1271
          %v1273 = vmax.f32 %v1257, %v1263
          %v1274 = vmax.f32 %v1258, %v1266
          %v1275 = vmax.f32 %v1259, %v1269
          %v1276 = vmax.f32 %v1260, %v1272
          %v1277 = vsub.f32 %v1257, %v1273
          %v1278 = vsub.f32 %v1258, %v1274
          %v1279 = vsub.f32 %v1259, %v1275
          %v1280 = vsub.f32 %v1260, %v1276
          %v1281 = vmul.f32 %v1277, 1.442695
          %v1282 = vpow.pop %v1281
          %v1283 = vmul.f32 %v1278, 1.442695
          %v1284 = vpow.pop %v1283
          %v1285 = vmul.f32 %v1279, 1.442695
          %v1286 = vpow.pop %v1285
          %v1287 = vmul.f32 %v1280, 1.442695
          %v1288 = vpow.pop %v1287
          %1290 = vset.pattern.permute.xlu0 0
          %1291 = vperm.xlu0 %1290, %v1273
          %v1292 = vpop.permute.xlu0 %1291
          %1295 = vset.pattern.permute.xlu0 0
          %1296 = vperm.xlu0 %1295, %v1274
          %v1297 = vpop.permute.xlu0 %1296
          %1300 = vset.pattern.permute.xlu0 0
          %1301 = vperm.xlu0 %1300, %v1275
          %v1302 = vpop.permute.xlu0 %1301
          %1305 = vset.pattern.permute.xlu0 0
          %1306 = vperm.xlu0 %1305, %v1276
          %v1307 = vpop.permute.xlu0 %1306
          %v1309 = vsub.f32 %v1252, %v1292
          %v1310 = vsub.f32 %v1253, %v1297
          %v1311 = vsub.f32 %v1254, %v1302
          %v1312 = vsub.f32 %v1255, %v1307
          %v1313 = vmul.f32 %v1309, 1.442695
          %v1314 = vpow.pop %v1313
          %v1315 = vmul.f32 %v1310, 1.442695
          %v1316 = vpow.pop %v1315
          %v1317 = vmul.f32 %v1311, 1.442695
          %v1318 = vpow.pop %v1317
          %v1319 = vmul.f32 %v1312, 1.442695
          %v1320 = vpow.pop %v1319
          %s1321 = scalar_lea.vmem [#allocation3], 64
          %v1322 = vld [vmem:[%s1321] sm:$0xff]
          %v1323 = vld [vmem:[%s1321 + $0x8] sm:$0xff]
          %v1324 = vld [vmem:[%s1321 + $0x10] sm:$0xff]
          %v1325 = vld [vmem:[%s1321 + $0x18] sm:$0xff]
          %v1326 = vmul.f32 %v1282, %v1322
          %v1327 = vmul.f32 %v1284, %v1323
          %v1328 = vmul.f32 %v1286, %v1324
          %v1329 = vmul.f32 %v1288, %v1325
          %v1330 = vsel %vm406, %v1314, 0.0
          %1331 = vadd.xlane.f32.xlu0 %v1330
          %v1332 = vpop.xlane.xlu0 %1331
          %v1333 = vsel %vm406, %v1316, 0.0
          %1334 = vadd.xlane.f32.xlu0 %v1333
          %v1335 = vpop.xlane.xlu0 %1334
          %v1336 = vsel %vm406, %v1318, 0.0
          %1337 = vadd.xlane.f32.xlu0 %v1336
          %v1338 = vpop.xlane.xlu0 %1337
          %v1339 = vsel %vm406, %v1320, 0.0
          %1340 = vadd.xlane.f32.xlu0 %v1339
          %v1341 = vpop.xlane.xlu0 %1340
          %v1342 = vadd.f32 %v1326, %v1332
          %v1343 = vadd.f32 %v1327, %v1335
          %v1344 = vadd.f32 %v1328, %v1338
          %v1345 = vadd.f32 %v1329, %v1341
          %1346 = vst.msk [vmem:[%s1321] sm:$0xff] %vm608, %v1342
          %1347 = vst.msk [vmem:[%s1321 + $0x8] sm:$0xff] %vm608, %v1343
          %1348 = vst.msk [vmem:[%s1321 + $0x10] sm:$0xff] %vm608, %v1344
          %1349 = vst.msk [vmem:[%s1321 + $0x18] sm:$0xff] %vm608, %v1345
          %1350 = vst.msk [vmem:[%s1256] sm:$0xff] %vm608, %v1273
          %1351 = vst.msk [vmem:[%s1256 + $0x8] sm:$0xff] %vm608, %v1274
          %1352 = vst.msk [vmem:[%s1256 + $0x10] sm:$0xff] %vm608, %v1275
          %1353 = vst.msk [vmem:[%s1256 + $0x18] sm:$0xff] %vm608, %v1276
          %1354 = vrot.lane.b32.xlu0 %v384, 64
          %v1355 = vpop.permute.xlu0 %1354
          %1356 = vrot.lane.b32.xlu0 %v385, 64
          %v1357 = vpop.permute.xlu0 %1356
          %1358 = vrot.lane.b32.xlu0 %v386, 64
          %v1359 = vpop.permute.xlu0 %1358
          %1360 = vrot.lane.b32.xlu0 %v387, 64
          %v1361 = vpop.permute.xlu0 %1360
          %v1367 = vsel %vm406, %v1314, 0
          %v1370 = vsel %vm406, %v1316, 0
          %v1373 = vsel %vm406, %v1318, 0
          %v1376 = vsel %vm406, %v1320, 0
          %1378 = vmatprep.subr.mxu0 0.0
          %1379 = vmatpush1.msra.mxu0 %v1355
          %1380 = vmatprep.subr.mxu0 0.0
          %1381 = vmatpush1.msra.mxu0 %v1357
          %1382 = vmatprep.subr.mxu0 0.0
          %1383 = vmatpush1.msra.mxu0 %v1359
          %1384 = vmatprep.subr.mxu0 0.0
          %1385 = vmatpush1.msra.mxu0 %v1361
          %1386 = vmatprep.subr.mxu0 0.0
          %1387 = vmatpush1.msra.mxu0 0.0
          %1388 = vmatprep.subr.mxu0 0.0
          %1389 = vmatpush1.msra.mxu0 0.0
          %1390 = vmatprep.subr.mxu0 0.0
          %1391 = vmatpush1.msra.mxu0 0.0
          %1392 = vmatprep.subr.mxu0 0.0
          %1393 = vmatpush1.msra.mxu0 0.0
          %1394 = vmatprep.subr.mxu0 0.0
          %1395 = vmatpush1.msra.mxu0 0.0
          %1396 = vmatprep.subr.mxu0 0.0
          %1397 = vmatpush1.msra.mxu0 0.0
          %1398 = vmatprep.subr.mxu0 0.0
          %1399 = vmatpush1.msra.mxu0 0.0
          %1400 = vmatprep.subr.mxu0 0.0
          %1401 = vmatpush1.msra.mxu0 0.0
          %1402 = vmatprep.subr.mxu0 0.0
          %1403 = vmatpush1.msra.mxu0 0.0
          %1404 = vmatprep.subr.mxu0 0.0
          %1405 = vmatpush1.msra.mxu0 0.0
          %1406 = vmatprep.subr.mxu0 0.0
          %1407 = vmatpush1.msra.mxu0 0.0
          %1408 = vmatprep.subr.mxu0 0.0
          %1409 = vmatpush1.msra.mxu0 0.0
          %1410 = vmatprep.subr.mxu0 0.0
          %1411 = vmatpush1.msra.mxu0 0.0
          %1412 = vmatprep.subr.mxu0 0.0
          %1413 = vmatpush1.msra.mxu0 0.0
          %1414 = vmatprep.subr.mxu0 0.0
          %1415 = vmatpush1.msra.mxu0 0.0
          %1416 = vmatprep.subr.mxu0 0.0
          %1417 = vmatpush1.msra.mxu0 0.0
          %1418 = vmatprep.subr.mxu0 0.0
          %1419 = vmatpush1.msra.mxu0 0.0
          %1420 = vmatprep.subr.mxu0 0.0
          %1421 = vmatpush1.msra.mxu0 0.0
          %1422 = vmatprep.subr.mxu0 0.0
          %1423 = vmatpush1.msra.mxu0 0.0
          %1424 = vmatprep.subr.mxu0 0.0
          %1425 = vmatpush1.msra.mxu0 0.0
          %1426 = vmatprep.subr.mxu0 0.0
          %1427 = vmatpush1.msra.mxu0 0.0
          %1428 = vmatprep.subr.mxu0 0.0
          %1429 = vmatpush1.msra.mxu0 0.0
          %1430 = vmatprep.subr.mxu0 0.0
          %1431 = vmatpush1.msra.mxu0 0.0
          %1432 = vmatprep.subr.mxu0 0.0
          %1433 = vmatpush1.msra.mxu0 0.0
          %1434 = vmatprep.subr.mxu0 0.0
          %1435 = vmatpush1.msra.mxu0 0.0
          %1436 = vmatprep.subr.mxu0 0.0
          %1437 = vmatpush1.msra.mxu0 0.0
          %1438 = vmatprep.subr.mxu0 0.0
          %1439 = vmatpush1.msra.mxu0 0.0
          %1440 = vmatprep.subr.mxu0 0.0
          %1441 = vmatpush1.msra.mxu0 0.0
          %1442 = vmatprep.mubr.f32.mxu0 0.0
          %1443 = vmatmul.mubr.f32.gmra.mrb[0].mxu0 %v1367
          %v1444 = vpop.f32.mrb[0].mxu0
          %v1445 = vadd.f32 0.0, %v1444
          %v1446 = vpop.f32.mrb[0].mxu0
          %1447 = vmatprep.mubr.f32.mxu0 0.0
          %1448 = vmatmul.mubr.f32.gmra.mrb[0].mxu0 %v1370
          %v1449 = vpop.f32.mrb[0].mxu0
          %v1450 = vadd.f32 0.0, %v1449
          %v1451 = vpop.f32.mrb[0].mxu0
          %1452 = vmatprep.mubr.f32.mxu0 0.0
          %1453 = vmatmul.mubr.f32.gmra.mrb[0].mxu0 %v1373
          %v1454 = vpop.f32.mrb[0].mxu0
          %v1455 = vadd.f32 0.0, %v1454
          %v1456 = vpop.f32.mrb[0].mxu0
          %1457 = vmatprep.mubr.f32.mxu0 0.0
          %1458 = vmatmul.mubr.f32.gmra.mrb[0].mxu0 %v1376
          %v1459 = vpop.f32.mrb[0].mxu0
          %v1460 = vadd.f32 0.0, %v1459
          %v1461 = vpop.f32.mrb[0].mxu0
          %1462 = vdwg.mxu0
          %v1463 = vld [vmem:[#allocation4] sm:$0xff]
          %v1464 = vld [vmem:[#allocation4 + $0x8] sm:$0xff]
          %v1465 = vld [vmem:[#allocation4 + $0x10] sm:$0xff]
          %v1466 = vld [vmem:[#allocation4 + $0x18] sm:$0xff]
          %1468 = vset.pattern.permute.xlu0 0
          %1469 = vperm.xlu0 %1468, %v1282
          %v1470 = vpop.permute.xlu0 %1469
          %1473 = vset.pattern.permute.xlu0 0
          %1474 = vperm.xlu0 %1473, %v1284
          %v1475 = vpop.permute.xlu0 %1474
          %1478 = vset.pattern.permute.xlu0 0
          %1479 = vperm.xlu0 %1478, %v1286
          %v1480 = vpop.permute.xlu0 %1479
          %1483 = vset.pattern.permute.xlu0 0
          %1484 = vperm.xlu0 %1483, %v1288
          %v1485 = vpop.permute.xlu0 %1484
          %v1487 = vmul.f32 %v1470, %v1463
          %v1488 = vmul.f32 %v1475, %v1464
          %v1489 = vmul.f32 %v1480, %v1465
          %v1490 = vmul.f32 %v1485, %v1466
          %1495 = vrot.lane.b32.xlu0 %v1445, 64
          %v1496 = vpop.permute.xlu0 %1495
          %1497 = vrot.lane.b32.xlu0 %v1450, 64
          %v1498 = vpop.permute.xlu0 %1497
          %1499 = vrot.lane.b32.xlu0 %v1455, 64
          %v1500 = vpop.permute.xlu0 %1499
          %1501 = vrot.lane.b32.xlu0 %v1460, 64
          %v1502 = vpop.permute.xlu0 %1501
          %v1507 = vadd.f32 %v1487, %v1496
          %v1508 = vadd.f32 %v1488, %v1498
          %v1509 = vadd.f32 %v1489, %v1500
          %v1510 = vadd.f32 %v1490, %v1502
          %vm1511 = vcmask 785920
          %1512 = vst.msk [vmem:[#allocation4] sm:$0xff] %vm1511, %v1507
          %1513 = vst.msk [vmem:[#allocation4 + $0x8] sm:$0xff] %vm1511, %v1508
          %1514 = vst.msk [vmem:[#allocation4 + $0x10] sm:$0xff] %vm1511, %v1509
          %1515 = vst.msk [vmem:[#allocation4 + $0x18] sm:$0xff] %vm1511, %v1510
          %1516 = vrot.lane.b32.xlu0 %v376, 32
          %v1517 = vpop.permute.xlu0 %1516
          %1518 = vrot.lane.b32.xlu0 %v377, 32
          %v1519 = vpop.permute.xlu0 %1518
          %1520 = vrot.lane.b32.xlu0 %v378, 32
          %v1521 = vpop.permute.xlu0 %1520
          %1522 = vrot.lane.b32.xlu0 %v379, 32
          %v1523 = vpop.permute.xlu0 %1522
          %1524 = vrot.lane.b32.xlu0 %v380, 32
          %v1525 = vpop.permute.xlu0 %1524
          %1526 = vrot.lane.b32.xlu0 %v381, 32
          %v1527 = vpop.permute.xlu0 %1526
          %1528 = vrot.lane.b32.xlu0 %v382, 32
          %v1529 = vpop.permute.xlu0 %1528
          %1530 = vrot.lane.b32.xlu0 %v383, 32
          %v1531 = vpop.permute.xlu0 %1530
          %v1532 = vsel %vm406, %v1517, 0
          %v1534 = vsel %vm406, %v1519, 0
          %v1536 = vsel %vm406, %v1521, 0
          %v1538 = vsel %vm406, %v1523, 0
          %v1540 = vsel %vm406, %v1525, 0
          %v1542 = vsel %vm406, %v1527, 0
          %v1544 = vsel %vm406, %v1529, 0
          %v1546 = vsel %vm406, %v1531, 0
          %1548 = vmatprep.subr.mxu0 0.0
          %1549 = vmatpush1.xpose.msra.mxu0 %v1540
          %1550 = vmatprep.subr.mxu0 0.0
          %1551 = vmatpush1.xpose.msra.mxu0 %v1542
          %1552 = vmatprep.subr.mxu0 0.0
          %1553 = vmatpush1.xpose.msra.mxu0 %v1544
          %1554 = vmatprep.subr.mxu0 0.0
          %1555 = vmatpush1.xpose.msra.mxu0 %v1546
          %1556 = vmatprep.subr.mxu0 0.0
          %1557 = vmatpush1.xpose.msra.mxu0 0.0
          %1558 = vmatprep.subr.mxu0 0.0
          %1559 = vmatpush1.xpose.msra.mxu0 0.0
          %1560 = vmatprep.subr.mxu0 0.0
          %1561 = vmatpush1.xpose.msra.mxu0 0.0
          %1562 = vmatprep.subr.mxu0 0.0
          %1563 = vmatpush1.xpose.msra.mxu0 0.0
          %1564 = vmatprep.subr.mxu0 0.0
          %1565 = vmatpush1.xpose.msra.mxu0 0.0
          %1566 = vmatprep.subr.mxu0 0.0
          %1567 = vmatpush1.xpose.msra.mxu0 0.0
          %1568 = vmatprep.subr.mxu0 0.0
          %1569 = vmatpush1.xpose.msra.mxu0 0.0
          %1570 = vmatprep.subr.mxu0 0.0
          %1571 = vmatpush1.xpose.msra.mxu0 0.0
          %1572 = vmatprep.subr.mxu0 0.0
          %1573 = vmatpush1.xpose.msra.mxu0 0.0
          %1574 = vmatprep.subr.mxu0 0.0
          %1575 = vmatpush1.xpose.msra.mxu0 0.0
          %1576 = vmatprep.subr.mxu0 0.0
          %1577 = vmatpush1.xpose.msra.mxu0 0.0
          %1578 = vmatprep.subr.mxu0 0.0
          %1579 = vmatpush1.xpose.msra.mxu0 0.0
          %1580 = vmatprep.subr.mxu0 0.0
          %1581 = vmatpush1.xpose.msra.mxu0 0.0
          %1582 = vmatprep.subr.mxu0 0.0
          %1583 = vmatpush1.xpose.msra.mxu0 0.0
          %1584 = vmatprep.subr.mxu0 0.0
          %1585 = vmatpush1.xpose.msra.mxu0 0.0
          %1586 = vmatprep.subr.mxu0 0.0
          %1587 = vmatpush1.xpose.msra.mxu0 0.0
          %1588 = vmatprep.subr.mxu0 0.0
          %1589 = vmatpush1.xpose.msra.mxu0 0.0
          %1590 = vmatprep.subr.mxu0 0.0
          %1591 = vmatpush1.xpose.msra.mxu0 0.0
          %1592 = vmatprep.subr.mxu0 0.0
          %1593 = vmatpush1.xpose.msra.mxu0 0.0
          %1594 = vmatprep.subr.mxu0 0.0
          %1595 = vmatpush1.xpose.msra.mxu0 0.0
          %1596 = vmatprep.subr.mxu0 0.0
          %1597 = vmatpush1.xpose.msra.mxu0 0.0
          %1598 = vmatprep.subr.mxu0 0.0
          %1599 = vmatpush1.xpose.msra.mxu0 0.0
          %1600 = vmatprep.subr.mxu0 0.0
          %1601 = vmatpush1.xpose.msra.mxu0 0.0
          %1602 = vmatprep.subr.mxu0 0.0
          %1603 = vmatpush1.xpose.msra.mxu0 0.0
          %1604 = vmatprep.subr.mxu0 0.0
          %1605 = vmatpush1.xpose.msra.mxu0 0.0
          %1606 = vmatprep.subr.mxu0 0.0
          %1607 = vmatpush1.xpose.msra.mxu0 0.0
          %1608 = vmatprep.subr.mxu0 0.0
          %1609 = vmatpush1.xpose.msra.mxu0 0.0
          %1610 = vmatprep.subr.mxu0 0.0
          %1611 = vmatpush1.xpose.msra.mxu0 0.0
          %1612 = vmatprep.mubr.f32.mxu0 0.0
          %1613 = vmatmul.mubr.f32.gmra.mrb[0].mxu0 %v1532
          %v1614 = vpop.f32.mrb[0].mxu0
          %v1615 = vadd.f32 0.0, %v1614
          %v1616 = vpop.f32.mrb[0].mxu0
          %1617 = vmatprep.mubr.f32.mxu0 0.0
          %1618 = vmatmul.mubr.f32.gmra.mrb[0].mxu0 %v1534
          %v1619 = vpop.f32.mrb[0].mxu0
          %v1620 = vadd.f32 0.0, %v1619
          %v1621 = vpop.f32.mrb[0].mxu0
          %1622 = vmatprep.mubr.f32.mxu0 0.0
          %1623 = vmatmul.mubr.f32.gmra.mrb[0].mxu0 %v1536
          %v1624 = vpop.f32.mrb[0].mxu0
          %v1625 = vadd.f32 0.0, %v1624
          %v1626 = vpop.f32.mrb[0].mxu0
          %1627 = vmatprep.mubr.f32.mxu0 0.0
          %1628 = vmatmul.mubr.f32.gmra.mrb[0].mxu0 %v1538
          %v1629 = vpop.f32.mrb[0].mxu0
          %v1630 = vadd.f32 0.0, %v1629
          %v1631 = vpop.f32.mrb[0].mxu0
          %1632 = vdwg.mxu0
          %v1633 = vsel %vm402, -1e+30, %v1615
          %v1634 = vsel %vm403, -1e+30, %v1620
          %v1635 = vsel %vm404, -1e+30, %v1625
          %v1636 = vsel %vm405, -1e+30, %v1630
          %s1637 = scalar_lea.vmem [#allocation2], 96
          %v1638 = vld [vmem:[%s1637] sm:$0xff]
          %v1639 = vld [vmem:[%s1637 + $0x8] sm:$0xff]
          %v1640 = vld [vmem:[%s1637 + $0x10] sm:$0xff]
          %v1641 = vld [vmem:[%s1637 + $0x18] sm:$0xff]
          %v1642 = vsel %vm406, %v1633, -inf
          %1643 = vmax.xlane.f32.xlu0 %v1642
          %v1644 = vpop.xlane.xlu0 %1643
          %v1645 = vsel %vm406, %v1634, -inf
          %1646 = vmax.xlane.f32.xlu0 %v1645
          %v1647 = vpop.xlane.xlu0 %1646
          %v1648 = vsel %vm406, %v1635, -inf
          %1649 = vmax.xlane.f32.xlu0 %v1648
          %v1650 = vpop.xlane.xlu0 %1649
          %v1651 = vsel %vm406, %v1636, -inf
          %1652 = vmax.xlane.f32.xlu0 %v1651
          %v1653 = vpop.xlane.xlu0 %1652
          %v1654 = vmax.f32 %v1638, %v1644
          %v1655 = vmax.f32 %v1639, %v1647
          %v1656 = vmax.f32 %v1640, %v1650
          %v1657 = vmax.f32 %v1641, %v1653
          %v1658 = vsub.f32 %v1638, %v1654
          %v1659 = vsub.f32 %v1639, %v1655
          %v1660 = vsub.f32 %v1640, %v1656
          %v1661 = vsub.f32 %v1641, %v1657
          %v1662 = vmul.f32 %v1658, 1.442695
          %v1663 = vpow.pop %v1662
          %v1664 = vmul.f32 %v1659, 1.442695
          %v1665 = vpow.pop %v1664
          %v1666 = vmul.f32 %v1660, 1.442695
          %v1667 = vpow.pop %v1666
          %v1668 = vmul.f32 %v1661, 1.442695
          %v1669 = vpow.pop %v1668
          %1671 = vset.pattern.permute.xlu0 0
          %1672 = vperm.xlu0 %1671, %v1654
          %v1673 = vpop.permute.xlu0 %1672
          %1676 = vset.pattern.permute.xlu0 0
          %1677 = vperm.xlu0 %1676, %v1655
          %v1678 = vpop.permute.xlu0 %1677
          %1681 = vset.pattern.permute.xlu0 0
          %1682 = vperm.xlu0 %1681, %v1656
          %v1683 = vpop.permute.xlu0 %1682
          %1686 = vset.pattern.permute.xlu0 0
          %1687 = vperm.xlu0 %1686, %v1657
          %v1688 = vpop.permute.xlu0 %1687
          %v1690 = vsub.f32 %v1633, %v1673
          %v1691 = vsub.f32 %v1634, %v1678
          %v1692 = vsub.f32 %v1635, %v1683
          %v1693 = vsub.f32 %v1636, %v1688
          %v1694 = vmul.f32 %v1690, 1.442695
          %v1695 = vpow.pop %v1694
          %v1696 = vmul.f32 %v1691, 1.442695
          %v1697 = vpow.pop %v1696
          %v1698 = vmul.f32 %v1692, 1.442695
          %v1699 = vpow.pop %v1698
          %v1700 = vmul.f32 %v1693, 1.442695
          %v1701 = vpow.pop %v1700
          %s1702 = scalar_lea.vmem [#allocation3], 96
          %v1703 = vld [vmem:[%s1702] sm:$0xff]
          %v1704 = vld [vmem:[%s1702 + $0x8] sm:$0xff]
          %v1705 = vld [vmem:[%s1702 + $0x10] sm:$0xff]
          %v1706 = vld [vmem:[%s1702 + $0x18] sm:$0xff]
          %v1707 = vmul.f32 %v1663, %v1703
          %v1708 = vmul.f32 %v1665, %v1704
          %v1709 = vmul.f32 %v1667, %v1705
          %v1710 = vmul.f32 %v1669, %v1706
          %v1711 = vsel %vm406, %v1695, 0.0
          %1712 = vadd.xlane.f32.xlu0 %v1711
          %v1713 = vpop.xlane.xlu0 %1712
          %v1714 = vsel %vm406, %v1697, 0.0
          %1715 = vadd.xlane.f32.xlu0 %v1714
          %v1716 = vpop.xlane.xlu0 %1715
          %v1717 = vsel %vm406, %v1699, 0.0
          %1718 = vadd.xlane.f32.xlu0 %v1717
          %v1719 = vpop.xlane.xlu0 %1718
          %v1720 = vsel %vm406, %v1701, 0.0
          %1721 = vadd.xlane.f32.xlu0 %v1720
          %v1722 = vpop.xlane.xlu0 %1721
          %v1723 = vadd.f32 %v1707, %v1713
          %v1724 = vadd.f32 %v1708, %v1716
          %v1725 = vadd.f32 %v1709, %v1719
          %v1726 = vadd.f32 %v1710, %v1722
          %1727 = vst.msk [vmem:[%s1702] sm:$0xff] %vm608, %v1723
          %1728 = vst.msk [vmem:[%s1702 + $0x8] sm:$0xff] %vm608, %v1724
          %1729 = vst.msk [vmem:[%s1702 + $0x10] sm:$0xff] %vm608, %v1725
          %1730 = vst.msk [vmem:[%s1702 + $0x18] sm:$0xff] %vm608, %v1726
          %1731 = vst.msk [vmem:[%s1637] sm:$0xff] %vm608, %v1654
          %1732 = vst.msk [vmem:[%s1637 + $0x8] sm:$0xff] %vm608, %v1655
          %1733 = vst.msk [vmem:[%s1637 + $0x10] sm:$0xff] %vm608, %v1656
          %1734 = vst.msk [vmem:[%s1637 + $0x18] sm:$0xff] %vm608, %v1657
          %1735 = vrot.lane.b32.xlu0 %v384, 32
          %v1736 = vpop.permute.xlu0 %1735
          %1737 = vrot.lane.b32.xlu0 %v385, 32
          %v1738 = vpop.permute.xlu0 %1737
          %1739 = vrot.lane.b32.xlu0 %v386, 32
          %v1740 = vpop.permute.xlu0 %1739
          %1741 = vrot.lane.b32.xlu0 %v387, 32
          %v1742 = vpop.permute.xlu0 %1741
          %v1748 = vsel %vm406, %v1695, 0
          %v1751 = vsel %vm406, %v1697, 0
          %v1754 = vsel %vm406, %v1699, 0
          %v1757 = vsel %vm406, %v1701, 0
          %1759 = vmatprep.subr.mxu0 0.0
          %1760 = vmatpush1.msra.mxu0 %v1736
          %1761 = vmatprep.subr.mxu0 0.0
          %1762 = vmatpush1.msra.mxu0 %v1738
          %1763 = vmatprep.subr.mxu0 0.0
          %1764 = vmatpush1.msra.mxu0 %v1740
          %1765 = vmatprep.subr.mxu0 0.0
          %1766 = vmatpush1.msra.mxu0 %v1742
          %1767 = vmatprep.subr.mxu0 0.0
          %1768 = vmatpush1.msra.mxu0 0.0
          %1769 = vmatprep.subr.mxu0 0.0
          %1770 = vmatpush1.msra.mxu0 0.0
          %1771 = vmatprep.subr.mxu0 0.0
          %1772 = vmatpush1.msra.mxu0 0.0
          %1773 = vmatprep.subr.mxu0 0.0
          %1774 = vmatpush1.msra.mxu0 0.0
          %1775 = vmatprep.subr.mxu0 0.0
          %1776 = vmatpush1.msra.mxu0 0.0
          %1777 = vmatprep.subr.mxu0 0.0
          %1778 = vmatpush1.msra.mxu0 0.0
          %1779 = vmatprep.subr.mxu0 0.0
          %1780 = vmatpush1.msra.mxu0 0.0
          %1781 = vmatprep.subr.mxu0 0.0
          %1782 = vmatpush1.msra.mxu0 0.0
          %1783 = vmatprep.subr.mxu0 0.0
          %1784 = vmatpush1.msra.mxu0 0.0
          %1785 = vmatprep.subr.mxu0 0.0
          %1786 = vmatpush1.msra.mxu0 0.0
          %1787 = vmatprep.subr.mxu0 0.0
          %1788 = vmatpush1.msra.mxu0 0.0
          %1789 = vmatprep.subr.mxu0 0.0
          %1790 = vmatpush1.msra.mxu0 0.0
          %1791 = vmatprep.subr.mxu0 0.0
          %1792 = vmatpush1.msra.mxu0 0.0
          %1793 = vmatprep.subr.mxu0 0.0
          %1794 = vmatpush1.msra.mxu0 0.0
          %1795 = vmatprep.subr.mxu0 0.0
          %1796 = vmatpush1.msra.mxu0 0.0
          %1797 = vmatprep.subr.mxu0 0.0
          %1798 = vmatpush1.msra.mxu0 0.0
          %1799 = vmatprep.subr.mxu0 0.0
          %1800 = vmatpush1.msra.mxu0 0.0
          %1801 = vmatprep.subr.mxu0 0.0
          %1802 = vmatpush1.msra.mxu0 0.0
          %1803 = vmatprep.subr.mxu0 0.0
          %1804 = vmatpush1.msra.mxu0 0.0
          %1805 = vmatprep.subr.mxu0 0.0
          %1806 = vmatpush1.msra.mxu0 0.0
          %1807 = vmatprep.subr.mxu0 0.0
          %1808 = vmatpush1.msra.mxu0 0.0
          %1809 = vmatprep.subr.mxu0 0.0
          %1810 = vmatpush1.msra.mxu0 0.0
          %1811 = vmatprep.subr.mxu0 0.0
          %1812 = vmatpush1.msra.mxu0 0.0
          %1813 = vmatprep.subr.mxu0 0.0
          %1814 = vmatpush1.msra.mxu0 0.0
          %1815 = vmatprep.subr.mxu0 0.0
          %1816 = vmatpush1.msra.mxu0 0.0
          %1817 = vmatprep.subr.mxu0 0.0
          %1818 = vmatpush1.msra.mxu0 0.0
          %1819 = vmatprep.subr.mxu0 0.0
          %1820 = vmatpush1.msra.mxu0 0.0
          %1821 = vmatprep.subr.mxu0 0.0
          %1822 = vmatpush1.msra.mxu0 0.0
          %1823 = vmatprep.mubr.f32.mxu0 0.0
          %1824 = vmatmul.mubr.f32.gmra.mrb[0].mxu0 %v1748
          %v1825 = vpop.f32.mrb[0].mxu0
          %v1826 = vadd.f32 0.0, %v1825
          %v1827 = vpop.f32.mrb[0].mxu0
          %1828 = vmatprep.mubr.f32.mxu0 0.0
          %1829 = vmatmul.mubr.f32.gmra.mrb[0].mxu0 %v1751
          %v1830 = vpop.f32.mrb[0].mxu0
          %v1831 = vadd.f32 0.0, %v1830
          %v1832 = vpop.f32.mrb[0].mxu0
          %1833 = vmatprep.mubr.f32.mxu0 0.0
          %1834 = vmatmul.mubr.f32.gmra.mrb[0].mxu0 %v1754
          %v1835 = vpop.f32.mrb[0].mxu0
          %v1836 = vadd.f32 0.0, %v1835
          %v1837 = vpop.f32.mrb[0].mxu0
          %1838 = vmatprep.mubr.f32.mxu0 0.0
          %1839 = vmatmul.mubr.f32.gmra.mrb[0].mxu0 %v1757
          %v1840 = vpop.f32.mrb[0].mxu0
          %v1841 = vadd.f32 0.0, %v1840
          %v1842 = vpop.f32.mrb[0].mxu0
          %1843 = vdwg.mxu0
          %v1844 = vld [vmem:[#allocation4] sm:$0xff]
          %v1845 = vld [vmem:[#allocation4 + $0x8] sm:$0xff]
          %v1846 = vld [vmem:[#allocation4 + $0x10] sm:$0xff]
          %v1847 = vld [vmem:[#allocation4 + $0x18] sm:$0xff]
          %1849 = vset.pattern.permute.xlu0 0
          %1850 = vperm.xlu0 %1849, %v1663
          %v1851 = vpop.permute.xlu0 %1850
          %1854 = vset.pattern.permute.xlu0 0
          %1855 = vperm.xlu0 %1854, %v1665
          %v1856 = vpop.permute.xlu0 %1855
          %1859 = vset.pattern.permute.xlu0 0
          %1860 = vperm.xlu0 %1859, %v1667
          %v1861 = vpop.permute.xlu0 %1860
          %1864 = vset.pattern.permute.xlu0 0
          %1865 = vperm.xlu0 %1864, %v1669
          %v1866 = vpop.permute.xlu0 %1865
          %v1868 = vmul.f32 %v1851, %v1844
          %v1869 = vmul.f32 %v1856, %v1845
          %v1870 = vmul.f32 %v1861, %v1846
          %v1871 = vmul.f32 %v1866, %v1847
          %1876 = vrot.lane.b32.xlu0 %v1826, 96
          %v1877 = vpop.permute.xlu0 %1876
          %1878 = vrot.lane.b32.xlu0 %v1831, 96
          %v1879 = vpop.permute.xlu0 %1878
          %1880 = vrot.lane.b32.xlu0 %v1836, 96
          %v1881 = vpop.permute.xlu0 %1880
          %1882 = vrot.lane.b32.xlu0 %v1841, 96
          %v1883 = vpop.permute.xlu0 %1882
          %v1888 = vadd.f32 %v1868, %v1877
          %v1889 = vadd.f32 %v1869, %v1879
          %v1890 = vadd.f32 %v1870, %v1881
          %v1891 = vadd.f32 %v1871, %v1883
          %vm1892 = vcmask 1048320
          %1893 = vst.msk [vmem:[#allocation4] sm:$0xff] %vm1892, %v1888
          %1894 = vst.msk [vmem:[#allocation4 + $0x8] sm:$0xff] %vm1892, %v1889
          %1895 = vst.msk [vmem:[#allocation4 + $0x10] sm:$0xff] %vm1892, %v1890
          %1896 = vst.msk [vmem:[#allocation4 + $0x18] sm:$0xff] %vm1892, %v1891
        $region52: #{tpu_custom_call.1} parent=31 // pred_fallthru
          _
        %p1897 = scmp.le.s32.totalorder %s365, %s362
        // Predicated region
        $region53: #{tpu_custom_call.1} parent=31 // pred_check
          %p1898 = pneg %p1897
        $region54: #{tpu_custom_call.1} parent=31 // pred_check_branch
          %1900 = sbr.rel (%p1898) target = $region56
        $region55: #{tpu_custom_call.1} parent=31 // pred_region
          %v1901 = vld [vmem:[%s266] sm:$0xff]
          %v1902 = vld [vmem:[%s266 + $0x8] sm:$0xff]
          %v1903 = vld [vmem:[%s266 + $0x10] sm:$0xff]
          %v1904 = vld [vmem:[%s266 + $0x18] sm:$0xff]
          %v1905 = vmul.f32 %v1901, 0.17677669
          %v1906 = vmul.f32 %v1902, 0.17677669
          %v1907 = vmul.f32 %v1903, 0.17677669
          %v1908 = vmul.f32 %v1904, 0.17677669
          %v1909 = vld [vmem:[%s275] sm:$0xff]
          %v1910 = vld [vmem:[%s275 + $0x8] sm:$0xff]
          %v1911 = vld [vmem:[%s275 + $0x10] sm:$0xff]
          %v1912 = vld [vmem:[%s275 + $0x18] sm:$0xff]
          %v1913 = vld [vmem:[%s284] sm:$0xff]
          %v1914 = vld [vmem:[%s284 + $0x8] sm:$0xff]
          %v1915 = vld [vmem:[%s284 + $0x10] sm:$0xff]
          %v1916 = vld [vmem:[%s284 + $0x18] sm:$0xff]
          %vm1917 = vcmask 261120
          %v1919 = vsel %vm1917, %v1905, 0
          %v1922 = vsel %vm1917, %v1906, 0
          %v1925 = vsel %vm1917, %v1907, 0
          %v1928 = vsel %vm1917, %v1908, 0
          %v1931 = vsel %vm1917, %v1909, 0
          %v1934 = vsel %vm1917, %v1910, 0
          %v1937 = vsel %vm1917, %v1911, 0
          %v1940 = vsel %vm1917, %v1912, 0
          %1942 = vmatprep.subr.mxu0 0.0
          %1943 = vmatpush1.xpose.msra.mxu0 %v1931
          %1944 = vmatprep.subr.mxu0 0.0
          %1945 = vmatpush1.xpose.msra.mxu0 %v1934
          %1946 = vmatprep.subr.mxu0 0.0
          %1947 = vmatpush1.xpose.msra.mxu0 %v1937
          %1948 = vmatprep.subr.mxu0 0.0
          %1949 = vmatpush1.xpose.msra.mxu0 %v1940
          %1950 = vmatprep.subr.mxu0 0.0
          %1951 = vmatpush1.xpose.msra.mxu0 0.0
          %1952 = vmatprep.subr.mxu0 0.0
          %1953 = vmatpush1.xpose.msra.mxu0 0.0
          %1954 = vmatprep.subr.mxu0 0.0
          %1955 = vmatpush1.xpose.msra.mxu0 0.0
          %1956 = vmatprep.subr.mxu0 0.0
          %1957 = vmatpush1.xpose.msra.mxu0 0.0
          %1958 = vmatprep.subr.mxu0 0.0
          %1959 = vmatpush1.xpose.msra.mxu0 0.0
          %1960 = vmatprep.subr.mxu0 0.0
          %1961 = vmatpush1.xpose.msra.mxu0 0.0
          %1962 = vmatprep.subr.mxu0 0.0
          %1963 = vmatpush1.xpose.msra.mxu0 0.0
          %1964 = vmatprep.subr.mxu0 0.0
          %1965 = vmatpush1.xpose.msra.mxu0 0.0
          %1966 = vmatprep.subr.mxu0 0.0
          %1967 = vmatpush1.xpose.msra.mxu0 0.0
          %1968 = vmatprep.subr.mxu0 0.0
          %1969 = vmatpush1.xpose.msra.mxu0 0.0
          %1970 = vmatprep.subr.mxu0 0.0
          %1971 = vmatpush1.xpose.msra.mxu0 0.0
          %1972 = vmatprep.subr.mxu0 0.0
          %1973 = vmatpush1.xpose.msra.mxu0 0.0
          %1974 = vmatprep.subr.mxu0 0.0
          %1975 = vmatpush1.xpose.msra.mxu0 0.0
          %1976 = vmatprep.subr.mxu0 0.0
          %1977 = vmatpush1.xpose.msra.mxu0 0.0
          %1978 = vmatprep.subr.mxu0 0.0
          %1979 = vmatpush1.xpose.msra.mxu0 0.0
          %1980 = vmatprep.subr.mxu0 0.0
          %1981 = vmatpush1.xpose.msra.mxu0 0.0
          %1982 = vmatprep.subr.mxu0 0.0
          %1983 = vmatpush1.xpose.msra.mxu0 0.0
          %1984 = vmatprep.subr.mxu0 0.0
          %1985 = vmatpush1.xpose.msra.mxu0 0.0
          %1986 = vmatprep.subr.mxu0 0.0
          %1987 = vmatpush1.xpose.msra.mxu0 0.0
          %1988 = vmatprep.subr.mxu0 0.0
          %1989 = vmatpush1.xpose.msra.mxu0 0.0
          %1990 = vmatprep.subr.mxu0 0.0
          %1991 = vmatpush1.xpose.msra.mxu0 0.0
          %1992 = vmatprep.subr.mxu0 0.0
          %1993 = vmatpush1.xpose.msra.mxu0 0.0
          %1994 = vmatprep.subr.mxu0 0.0
          %1995 = vmatpush1.xpose.msra.mxu0 0.0
          %1996 = vmatprep.subr.mxu0 0.0
          %1997 = vmatpush1.xpose.msra.mxu0 0.0
          %1998 = vmatprep.subr.mxu0 0.0
          %1999 = vmatpush1.xpose.msra.mxu0 0.0
          %2000 = vmatprep.subr.mxu0 0.0
          %2001 = vmatpush1.xpose.msra.mxu0 0.0
          %2002 = vmatprep.subr.mxu0 0.0
          %2003 = vmatpush1.xpose.msra.mxu0 0.0
          %2004 = vmatprep.subr.mxu0 0.0
          %2005 = vmatpush1.xpose.msra.mxu0 0.0
          %2006 = vmatprep.mubr.f32.mxu0 0.0
          %2007 = vmatmul.mubr.f32.gmra.mrb[0].mxu0 %v1919
          %v2008 = vpop.f32.mrb[0].mxu0
          %v2009 = vadd.f32 0.0, %v2008
          %v2010 = vpop.f32.mrb[0].mxu0
          %2011 = vmatprep.mubr.f32.mxu0 0.0
          %2012 = vmatmul.mubr.f32.gmra.mrb[0].mxu0 %v1922
          %v2013 = vpop.f32.mrb[0].mxu0
          %v2014 = vadd.f32 0.0, %v2013
          %v2015 = vpop.f32.mrb[0].mxu0
          %2016 = vmatprep.mubr.f32.mxu0 0.0
          %2017 = vmatmul.mubr.f32.gmra.mrb[0].mxu0 %v1925
          %v2018 = vpop.f32.mrb[0].mxu0
          %v2019 = vadd.f32 0.0, %v2018
          %v2020 = vpop.f32.mrb[0].mxu0
          %2021 = vmatprep.mubr.f32.mxu0 0.0
          %2022 = vmatmul.mubr.f32.gmra.mrb[0].mxu0 %v1928
          %v2023 = vpop.f32.mrb[0].mxu0
          %v2024 = vadd.f32 0.0, %v2023
          %v2025 = vpop.f32.mrb[0].mxu0
          %2026 = vdwg.mxu0
          %v2027 = vld [vmem:[#allocation2] sm:$0xff]
          %v2028 = vld [vmem:[#allocation2 + $0x8] sm:$0xff]
          %v2029 = vld [vmem:[#allocation2 + $0x10] sm:$0xff]
          %v2030 = vld [vmem:[#allocation2 + $0x18] sm:$0xff]
          %v2031 = vsel %vm1917, %v2009, -inf
          %2032 = vmax.xlane.f32.xlu0 %v2031
          %v2033 = vpop.xlane.xlu0 %2032
          %v2034 = vsel %vm1917, %v2014, -inf
          %2035 = vmax.xlane.f32.xlu0 %v2034
          %v2036 = vpop.xlane.xlu0 %2035
          %v2037 = vsel %vm1917, %v2019, -inf
          %2038 = vmax.xlane.f32.xlu0 %v2037
          %v2039 = vpop.xlane.xlu0 %2038
          %v2040 = vsel %vm1917, %v2024, -inf
          %2041 = vmax.xlane.f32.xlu0 %v2040
          %v2042 = vpop.xlane.xlu0 %2041
          %v2043 = vmax.f32 %v2027, %v2033
          %v2044 = vmax.f32 %v2028, %v2036
          %v2045 = vmax.f32 %v2029, %v2039
          %v2046 = vmax.f32 %v2030, %v2042
          %v2047 = vsub.f32 %v2027, %v2043
          %v2048 = vsub.f32 %v2028, %v2044
          %v2049 = vsub.f32 %v2029, %v2045
          %v2050 = vsub.f32 %v2030, %v2046
          %v2051 = vmul.f32 %v2047, 1.442695
          %v2052 = vpow.pop %v2051
          %v2053 = vmul.f32 %v2048, 1.442695
          %v2054 = vpow.pop %v2053
          %v2055 = vmul.f32 %v2049, 1.442695
          %v2056 = vpow.pop %v2055
          %v2057 = vmul.f32 %v2050, 1.442695
          %v2058 = vpow.pop %v2057
          %2060 = vset.pattern.permute.xlu0 0
          %2061 = vperm.xlu0 %2060, %v2043
          %v2062 = vpop.permute.xlu0 %2061
          %2065 = vset.pattern.permute.xlu0 0
          %2066 = vperm.xlu0 %2065, %v2044
          %v2067 = vpop.permute.xlu0 %2066
          %2070 = vset.pattern.permute.xlu0 0
          %2071 = vperm.xlu0 %2070, %v2045
          %v2072 = vpop.permute.xlu0 %2071
          %2075 = vset.pattern.permute.xlu0 0
          %2076 = vperm.xlu0 %2075, %v2046
          %v2077 = vpop.permute.xlu0 %2076
          %v2079 = vsub.f32 %v2009, %v2062
          %v2080 = vsub.f32 %v2014, %v2067
          %v2081 = vsub.f32 %v2019, %v2072
          %v2082 = vsub.f32 %v2024, %v2077
          %v2083 = vmul.f32 %v2079, 1.442695
          %v2084 = vpow.pop %v2083
          %v2085 = vmul.f32 %v2080, 1.442695
          %v2086 = vpow.pop %v2085
          %v2087 = vmul.f32 %v2081, 1.442695
          %v2088 = vpow.pop %v2087
          %v2089 = vmul.f32 %v2082, 1.442695
          %v2090 = vpow.pop %v2089
          %v2091 = vld [vmem:[#allocation3] sm:$0xff]
          %v2092 = vld [vmem:[#allocation3 + $0x8] sm:$0xff]
          %v2093 = vld [vmem:[#allocation3 + $0x10] sm:$0xff]
          %v2094 = vld [vmem:[#allocation3 + $0x18] sm:$0xff]
          %v2095 = vmul.f32 %v2052, %v2091
          %v2096 = vmul.f32 %v2054, %v2092
          %v2097 = vmul.f32 %v2056, %v2093
          %v2098 = vmul.f32 %v2058, %v2094
          %v2099 = vsel %vm1917, %v2084, 0.0
          %2100 = vadd.xlane.f32.xlu0 %v2099
          %v2101 = vpop.xlane.xlu0 %2100
          %v2102 = vsel %vm1917, %v2086, 0.0
          %2103 = vadd.xlane.f32.xlu0 %v2102
          %v2104 = vpop.xlane.xlu0 %2103
          %v2105 = vsel %vm1917, %v2088, 0.0
          %2106 = vadd.xlane.f32.xlu0 %v2105
          %v2107 = vpop.xlane.xlu0 %2106
          %v2108 = vsel %vm1917, %v2090, 0.0
          %2109 = vadd.xlane.f32.xlu0 %v2108
          %v2110 = vpop.xlane.xlu0 %2109
          %v2111 = vadd.f32 %v2095, %v2101
          %v2112 = vadd.f32 %v2096, %v2104
          %v2113 = vadd.f32 %v2097, %v2107
          %v2114 = vadd.f32 %v2098, %v2110
          %vm2115 = vcmask 7168
          %2116 = vst.msk [vmem:[#allocation3] sm:$0xff] %vm2115, %v2111
          %2117 = vst.msk [vmem:[#allocation3 + $0x8] sm:$0xff] %vm2115, %v2112
          %2118 = vst.msk [vmem:[#allocation3 + $0x10] sm:$0xff] %vm2115, %v2113
          %2119 = vst.msk [vmem:[#allocation3 + $0x18] sm:$0xff] %vm2115, %v2114
          %2120 = vst.msk [vmem:[#allocation2] sm:$0xff] %vm2115, %v2043
          %2121 = vst.msk [vmem:[#allocation2 + $0x8] sm:$0xff] %vm2115, %v2044
          %2122 = vst.msk [vmem:[#allocation2 + $0x10] sm:$0xff] %vm2115, %v2045
          %2123 = vst.msk [vmem:[#allocation2 + $0x18] sm:$0xff] %vm2115, %v2046
          %v2125 = vsel %vm1917, %v2084, 0
          %v2128 = vsel %vm1917, %v2086, 0
          %v2131 = vsel %vm1917, %v2088, 0
          %v2134 = vsel %vm1917, %v2090, 0
          %2136 = vmatprep.subr.mxu0 0.0
          %2137 = vmatpush1.msra.mxu0 %v1913
          %2138 = vmatprep.subr.mxu0 0.0
          %2139 = vmatpush1.msra.mxu0 %v1914
          %2140 = vmatprep.subr.mxu0 0.0
          %2141 = vmatpush1.msra.mxu0 %v1915
          %2142 = vmatprep.subr.mxu0 0.0
          %2143 = vmatpush1.msra.mxu0 %v1916
          %2144 = vmatprep.subr.mxu0 0.0
          %2145 = vmatpush1.msra.mxu0 0.0
          %2146 = vmatprep.subr.mxu0 0.0
          %2147 = vmatpush1.msra.mxu0 0.0
          %2148 = vmatprep.subr.mxu0 0.0
          %2149 = vmatpush1.msra.mxu0 0.0
          %2150 = vmatprep.subr.mxu0 0.0
          %2151 = vmatpush1.msra.mxu0 0.0
          %2152 = vmatprep.subr.mxu0 0.0
          %2153 = vmatpush1.msra.mxu0 0.0
          %2154 = vmatprep.subr.mxu0 0.0
          %2155 = vmatpush1.msra.mxu0 0.0
          %2156 = vmatprep.subr.mxu0 0.0
          %2157 = vmatpush1.msra.mxu0 0.0
          %2158 = vmatprep.subr.mxu0 0.0
          %2159 = vmatpush1.msra.mxu0 0.0
          %2160 = vmatprep.subr.mxu0 0.0
          %2161 = vmatpush1.msra.mxu0 0.0
          %2162 = vmatprep.subr.mxu0 0.0
          %2163 = vmatpush1.msra.mxu0 0.0
          %2164 = vmatprep.subr.mxu0 0.0
          %2165 = vmatpush1.msra.mxu0 0.0
          %2166 = vmatprep.subr.mxu0 0.0
          %2167 = vmatpush1.msra.mxu0 0.0
          %2168 = vmatprep.subr.mxu0 0.0
          %2169 = vmatpush1.msra.mxu0 0.0
          %2170 = vmatprep.subr.mxu0 0.0
          %2171 = vmatpush1.msra.mxu0 0.0
          %2172 = vmatprep.subr.mxu0 0.0
          %2173 = vmatpush1.msra.mxu0 0.0
          %2174 = vmatprep.subr.mxu0 0.0
          %2175 = vmatpush1.msra.mxu0 0.0
          %2176 = vmatprep.subr.mxu0 0.0
          %2177 = vmatpush1.msra.mxu0 0.0
          %2178 = vmatprep.subr.mxu0 0.0
          %2179 = vmatpush1.msra.mxu0 0.0
          %2180 = vmatprep.subr.mxu0 0.0
          %2181 = vmatpush1.msra.mxu0 0.0
          %2182 = vmatprep.subr.mxu0 0.0
          %2183 = vmatpush1.msra.mxu0 0.0
          %2184 = vmatprep.subr.mxu0 0.0
          %2185 = vmatpush1.msra.mxu0 0.0
          %2186 = vmatprep.subr.mxu0 0.0
          %2187 = vmatpush1.msra.mxu0 0.0
          %2188 = vmatprep.subr.mxu0 0.0
          %2189 = vmatpush1.msra.mxu0 0.0
          %2190 = vmatprep.subr.mxu0 0.0
          %2191 = vmatpush1.msra.mxu0 0.0
          %2192 = vmatprep.subr.mxu0 0.0
          %2193 = vmatpush1.msra.mxu0 0.0
          %2194 = vmatprep.subr.mxu0 0.0
          %2195 = vmatpush1.msra.mxu0 0.0
          %2196 = vmatprep.subr.mxu0 0.0
          %2197 = vmatpush1.msra.mxu0 0.0
          %2198 = vmatprep.subr.mxu0 0.0
          %2199 = vmatpush1.msra.mxu0 0.0
          %2200 = vmatprep.mubr.f32.mxu0 0.0
          %2201 = vmatmul.mubr.f32.gmra.mrb[0].mxu0 %v2125
          %v2202 = vpop.f32.mrb[0].mxu0
          %v2203 = vadd.f32 0.0, %v2202
          %v2204 = vpop.f32.mrb[0].mxu0
          %2205 = vmatprep.mubr.f32.mxu0 0.0
          %2206 = vmatmul.mubr.f32.gmra.mrb[0].mxu0 %v2128
          %v2207 = vpop.f32.mrb[0].mxu0
          %v2208 = vadd.f32 0.0, %v2207
          %v2209 = vpop.f32.mrb[0].mxu0
          %2210 = vmatprep.mubr.f32.mxu0 0.0
          %2211 = vmatmul.mubr.f32.gmra.mrb[0].mxu0 %v2131
          %v2212 = vpop.f32.mrb[0].mxu0
          %v2213 = vadd.f32 0.0, %v2212
          %v2214 = vpop.f32.mrb[0].mxu0
          %2215 = vmatprep.mubr.f32.mxu0 0.0
          %2216 = vmatmul.mubr.f32.gmra.mrb[0].mxu0 %v2134
          %v2217 = vpop.f32.mrb[0].mxu0
          %v2218 = vadd.f32 0.0, %v2217
          %v2219 = vpop.f32.mrb[0].mxu0
          %2220 = vdwg.mxu0
          %v2221 = vld [vmem:[#allocation4] sm:$0xff]
          %v2222 = vld [vmem:[#allocation4 + $0x8] sm:$0xff]
          %v2223 = vld [vmem:[#allocation4 + $0x10] sm:$0xff]
          %v2224 = vld [vmem:[#allocation4 + $0x18] sm:$0xff]
          %2226 = vset.pattern.permute.xlu0 0
          %2227 = vperm.xlu0 %2226, %v2052
          %v2228 = vpop.permute.xlu0 %2227
          %2231 = vset.pattern.permute.xlu0 0
          %2232 = vperm.xlu0 %2231, %v2054
          %v2233 = vpop.permute.xlu0 %2232
          %2236 = vset.pattern.permute.xlu0 0
          %2237 = vperm.xlu0 %2236, %v2056
          %v2238 = vpop.permute.xlu0 %2237
          %2241 = vset.pattern.permute.xlu0 0
          %2242 = vperm.xlu0 %2241, %v2058
          %v2243 = vpop.permute.xlu0 %2242
          %v2245 = vmul.f32 %v2228, %v2221
          %v2246 = vmul.f32 %v2233, %v2222
          %v2247 = vmul.f32 %v2238, %v2223
          %v2248 = vmul.f32 %v2243, %v2224
          %v2249 = vadd.f32 %v2245, %v2203
          %v2250 = vadd.f32 %v2246, %v2208
          %v2251 = vadd.f32 %v2247, %v2213
          %v2252 = vadd.f32 %v2248, %v2218
          %2253 = vst.msk [vmem:[#allocation4] sm:$0xff] %vm1917, %v2249
          %2254 = vst.msk [vmem:[#allocation4 + $0x8] sm:$0xff] %vm1917, %v2250
          %2255 = vst.msk [vmem:[#allocation4 + $0x10] sm:$0xff] %vm1917, %v2251
          %2256 = vst.msk [vmem:[#allocation4 + $0x18] sm:$0xff] %vm1917, %v2252
          %2257 = vrot.lane.b32.xlu0 %v1905, 96
          %v2258 = vpop.permute.xlu0 %2257
          %2259 = vrot.lane.b32.xlu0 %v1906, 96
          %v2260 = vpop.permute.xlu0 %2259
          %2261 = vrot.lane.b32.xlu0 %v1907, 96
          %v2262 = vpop.permute.xlu0 %2261
          %2263 = vrot.lane.b32.xlu0 %v1908, 96
          %v2264 = vpop.permute.xlu0 %2263
          %2265 = vrot.lane.b32.xlu0 %v1909, 96
          %v2266 = vpop.permute.xlu0 %2265
          %2267 = vrot.lane.b32.xlu0 %v1910, 96
          %v2268 = vpop.permute.xlu0 %2267
          %2269 = vrot.lane.b32.xlu0 %v1911, 96
          %v2270 = vpop.permute.xlu0 %2269
          %2271 = vrot.lane.b32.xlu0 %v1912, 96
          %v2272 = vpop.permute.xlu0 %2271
          %v2273 = vsel %vm1917, %v2258, 0
          %v2275 = vsel %vm1917, %v2260, 0
          %v2277 = vsel %vm1917, %v2262, 0
          %v2279 = vsel %vm1917, %v2264, 0
          %v2281 = vsel %vm1917, %v2266, 0
          %v2283 = vsel %vm1917, %v2268, 0
          %v2285 = vsel %vm1917, %v2270, 0
          %v2287 = vsel %vm1917, %v2272, 0
          %2289 = vmatprep.subr.mxu0 0.0
          %2290 = vmatpush1.xpose.msra.mxu0 %v2281
          %2291 = vmatprep.subr.mxu0 0.0
          %2292 = vmatpush1.xpose.msra.mxu0 %v2283
          %2293 = vmatprep.subr.mxu0 0.0
          %2294 = vmatpush1.xpose.msra.mxu0 %v2285
          %2295 = vmatprep.subr.mxu0 0.0
          %2296 = vmatpush1.xpose.msra.mxu0 %v2287
          %2297 = vmatprep.subr.mxu0 0.0
          %2298 = vmatpush1.xpose.msra.mxu0 0.0
          %2299 = vmatprep.subr.mxu0 0.0
          %2300 = vmatpush1.xpose.msra.mxu0 0.0
          %2301 = vmatprep.subr.mxu0 0.0
          %2302 = vmatpush1.xpose.msra.mxu0 0.0
          %2303 = vmatprep.subr.mxu0 0.0
          %2304 = vmatpush1.xpose.msra.mxu0 0.0
          %2305 = vmatprep.subr.mxu0 0.0
          %2306 = vmatpush1.xpose.msra.mxu0 0.0
          %2307 = vmatprep.subr.mxu0 0.0
          %2308 = vmatpush1.xpose.msra.mxu0 0.0
          %2309 = vmatprep.subr.mxu0 0.0
          %2310 = vmatpush1.xpose.msra.mxu0 0.0
          %2311 = vmatprep.subr.mxu0 0.0
          %2312 = vmatpush1.xpose.msra.mxu0 0.0
          %2313 = vmatprep.subr.mxu0 0.0
          %2314 = vmatpush1.xpose.msra.mxu0 0.0
          %2315 = vmatprep.subr.mxu0 0.0
          %2316 = vmatpush1.xpose.msra.mxu0 0.0
          %2317 = vmatprep.subr.mxu0 0.0
          %2318 = vmatpush1.xpose.msra.mxu0 0.0
          %2319 = vmatprep.subr.mxu0 0.0
          %2320 = vmatpush1.xpose.msra.mxu0 0.0
          %2321 = vmatprep.subr.mxu0 0.0
          %2322 = vmatpush1.xpose.msra.mxu0 0.0
          %2323 = vmatprep.subr.mxu0 0.0
          %2324 = vmatpush1.xpose.msra.mxu0 0.0
          %2325 = vmatprep.subr.mxu0 0.0
          %2326 = vmatpush1.xpose.msra.mxu0 0.0
          %2327 = vmatprep.subr.mxu0 0.0
          %2328 = vmatpush1.xpose.msra.mxu0 0.0
          %2329 = vmatprep.subr.mxu0 0.0
          %2330 = vmatpush1.xpose.msra.mxu0 0.0
          %2331 = vmatprep.subr.mxu0 0.0
          %2332 = vmatpush1.xpose.msra.mxu0 0.0
          %2333 = vmatprep.subr.mxu0 0.0
          %2334 = vmatpush1.xpose.msra.mxu0 0.0
          %2335 = vmatprep.subr.mxu0 0.0
          %2336 = vmatpush1.xpose.msra.mxu0 0.0
          %2337 = vmatprep.subr.mxu0 0.0
          %2338 = vmatpush1.xpose.msra.mxu0 0.0
          %2339 = vmatprep.subr.mxu0 0.0
          %2340 = vmatpush1.xpose.msra.mxu0 0.0
          %2341 = vmatprep.subr.mxu0 0.0
          %2342 = vmatpush1.xpose.msra.mxu0 0.0
          %2343 = vmatprep.subr.mxu0 0.0
          %2344 = vmatpush1.xpose.msra.mxu0 0.0
          %2345 = vmatprep.subr.mxu0 0.0
          %2346 = vmatpush1.xpose.msra.mxu0 0.0
          %2347 = vmatprep.subr.mxu0 0.0
          %2348 = vmatpush1.xpose.msra.mxu0 0.0
          %2349 = vmatprep.subr.mxu0 0.0
          %2350 = vmatpush1.xpose.msra.mxu0 0.0
          %2351 = vmatprep.subr.mxu0 0.0
          %2352 = vmatpush1.xpose.msra.mxu0 0.0
          %2353 = vmatprep.mubr.f32.mxu0 0.0
          %2354 = vmatmul.mubr.f32.gmra.mrb[0].mxu0 %v2273
          %v2355 = vpop.f32.mrb[0].mxu0
          %v2356 = vadd.f32 0.0, %v2355
          %v2357 = vpop.f32.mrb[0].mxu0
          %2358 = vmatprep.mubr.f32.mxu0 0.0
          %2359 = vmatmul.mubr.f32.gmra.mrb[0].mxu0 %v2275
          %v2360 = vpop.f32.mrb[0].mxu0
          %v2361 = vadd.f32 0.0, %v2360
          %v2362 = vpop.f32.mrb[0].mxu0
          %2363 = vmatprep.mubr.f32.mxu0 0.0
          %2364 = vmatmul.mubr.f32.gmra.mrb[0].mxu0 %v2277
          %v2365 = vpop.f32.mrb[0].mxu0
          %v2366 = vadd.f32 0.0, %v2365
          %v2367 = vpop.f32.mrb[0].mxu0
          %2368 = vmatprep.mubr.f32.mxu0 0.0
          %2369 = vmatmul.mubr.f32.gmra.mrb[0].mxu0 %v2279
          %v2370 = vpop.f32.mrb[0].mxu0
          %v2371 = vadd.f32 0.0, %v2370
          %v2372 = vpop.f32.mrb[0].mxu0
          %2373 = vdwg.mxu0
          %s2374 = scalar_lea.vmem [#allocation2], 32
          %v2375 = vld [vmem:[%s2374] sm:$0xff]
          %v2376 = vld [vmem:[%s2374 + $0x8] sm:$0xff]
          %v2377 = vld [vmem:[%s2374 + $0x10] sm:$0xff]
          %v2378 = vld [vmem:[%s2374 + $0x18] sm:$0xff]
          %v2379 = vsel %vm1917, %v2356, -inf
          %2380 = vmax.xlane.f32.xlu0 %v2379
          %v2381 = vpop.xlane.xlu0 %2380
          %v2382 = vsel %vm1917, %v2361, -inf
          %2383 = vmax.xlane.f32.xlu0 %v2382
          %v2384 = vpop.xlane.xlu0 %2383
          %v2385 = vsel %vm1917, %v2366, -inf
          %2386 = vmax.xlane.f32.xlu0 %v2385
          %v2387 = vpop.xlane.xlu0 %2386
          %v2388 = vsel %vm1917, %v2371, -inf
          %2389 = vmax.xlane.f32.xlu0 %v2388
          %v2390 = vpop.xlane.xlu0 %2389
          %v2391 = vmax.f32 %v2375, %v2381
          %v2392 = vmax.f32 %v2376, %v2384
          %v2393 = vmax.f32 %v2377, %v2387
          %v2394 = vmax.f32 %v2378, %v2390
          %v2395 = vsub.f32 %v2375, %v2391
          %v2396 = vsub.f32 %v2376, %v2392
          %v2397 = vsub.f32 %v2377, %v2393
          %v2398 = vsub.f32 %v2378, %v2394
          %v2399 = vmul.f32 %v2395, 1.442695
          %v2400 = vpow.pop %v2399
          %v2401 = vmul.f32 %v2396, 1.442695
          %v2402 = vpow.pop %v2401
          %v2403 = vmul.f32 %v2397, 1.442695
          %v2404 = vpow.pop %v2403
          %v2405 = vmul.f32 %v2398, 1.442695
          %v2406 = vpow.pop %v2405
          %2408 = vset.pattern.permute.xlu0 0
          %2409 = vperm.xlu0 %2408, %v2391
          %v2410 = vpop.permute.xlu0 %2409
          %2413 = vset.pattern.permute.xlu0 0
          %2414 = vperm.xlu0 %2413, %v2392
          %v2415 = vpop.permute.xlu0 %2414
          %2418 = vset.pattern.permute.xlu0 0
          %2419 = vperm.xlu0 %2418, %v2393
          %v2420 = vpop.permute.xlu0 %2419
          %2423 = vset.pattern.permute.xlu0 0
          %2424 = vperm.xlu0 %2423, %v2394
          %v2425 = vpop.permute.xlu0 %2424
          %v2427 = vsub.f32 %v2356, %v2410
          %v2428 = vsub.f32 %v2361, %v2415
          %v2429 = vsub.f32 %v2366, %v2420
          %v2430 = vsub.f32 %v2371, %v2425
          %v2431 = vmul.f32 %v2427, 1.442695
          %v2432 = vpow.pop %v2431
          %v2433 = vmul.f32 %v2428, 1.442695
          %v2434 = vpow.pop %v2433
          %v2435 = vmul.f32 %v2429, 1.442695
          %v2436 = vpow.pop %v2435
          %v2437 = vmul.f32 %v2430, 1.442695
          %v2438 = vpow.pop %v2437
          %s2439 = scalar_lea.vmem [#allocation3], 32
          %v2440 = vld [vmem:[%s2439] sm:$0xff]
          %v2441 = vld [vmem:[%s2439 + $0x8] sm:$0xff]
          %v2442 = vld [vmem:[%s2439 + $0x10] sm:$0xff]
          %v2443 = vld [vmem:[%s2439 + $0x18] sm:$0xff]
          %v2444 = vmul.f32 %v2400, %v2440
          %v2445 = vmul.f32 %v2402, %v2441
          %v2446 = vmul.f32 %v2404, %v2442
          %v2447 = vmul.f32 %v2406, %v2443
          %v2448 = vsel %vm1917, %v2432, 0.0
          %2449 = vadd.xlane.f32.xlu0 %v2448
          %v2450 = vpop.xlane.xlu0 %2449
          %v2451 = vsel %vm1917, %v2434, 0.0
          %2452 = vadd.xlane.f32.xlu0 %v2451
          %v2453 = vpop.xlane.xlu0 %2452
          %v2454 = vsel %vm1917, %v2436, 0.0
          %2455 = vadd.xlane.f32.xlu0 %v2454
          %v2456 = vpop.xlane.xlu0 %2455
          %v2457 = vsel %vm1917, %v2438, 0.0
          %2458 = vadd.xlane.f32.xlu0 %v2457
          %v2459 = vpop.xlane.xlu0 %2458
          %v2460 = vadd.f32 %v2444, %v2450
          %v2461 = vadd.f32 %v2445, %v2453
          %v2462 = vadd.f32 %v2446, %v2456
          %v2463 = vadd.f32 %v2447, %v2459
          %2464 = vst.msk [vmem:[%s2439] sm:$0xff] %vm2115, %v2460
          %2465 = vst.msk [vmem:[%s2439 + $0x8] sm:$0xff] %vm2115, %v2461
          %2466 = vst.msk [vmem:[%s2439 + $0x10] sm:$0xff] %vm2115, %v2462
          %2467 = vst.msk [vmem:[%s2439 + $0x18] sm:$0xff] %vm2115, %v2463
          %2468 = vst.msk [vmem:[%s2374] sm:$0xff] %vm2115, %v2391
          %2469 = vst.msk [vmem:[%s2374 + $0x8] sm:$0xff] %vm2115, %v2392
          %2470 = vst.msk [vmem:[%s2374 + $0x10] sm:$0xff] %vm2115, %v2393
          %2471 = vst.msk [vmem:[%s2374 + $0x18] sm:$0xff] %vm2115, %v2394
          %2476 = vrot.lane.b32.xlu0 %v1913, 96
          %v2477 = vpop.permute.xlu0 %2476
          %2478 = vrot.lane.b32.xlu0 %v1914, 96
          %v2479 = vpop.permute.xlu0 %2478
          %2480 = vrot.lane.b32.xlu0 %v1915, 96
          %v2481 = vpop.permute.xlu0 %2480
          %2482 = vrot.lane.b32.xlu0 %v1916, 96
          %v2483 = vpop.permute.xlu0 %2482
          %v2489 = vsel %vm1917, %v2432, 0
          %v2492 = vsel %vm1917, %v2434, 0
          %v2495 = vsel %vm1917, %v2436, 0
          %v2498 = vsel %vm1917, %v2438, 0
          %2500 = vmatprep.subr.mxu0 0.0
          %2501 = vmatpush1.msra.mxu0 %v2477
          %2502 = vmatprep.subr.mxu0 0.0
          %2503 = vmatpush1.msra.mxu0 %v2479
          %2504 = vmatprep.subr.mxu0 0.0
          %2505 = vmatpush1.msra.mxu0 %v2481
          %2506 = vmatprep.subr.mxu0 0.0
          %2507 = vmatpush1.msra.mxu0 %v2483
          %2508 = vmatprep.subr.mxu0 0.0
          %2509 = vmatpush1.msra.mxu0 0.0
          %2510 = vmatprep.subr.mxu0 0.0
          %2511 = vmatpush1.msra.mxu0 0.0
          %2512 = vmatprep.subr.mxu0 0.0
          %2513 = vmatpush1.msra.mxu0 0.0
          %2514 = vmatprep.subr.mxu0 0.0
          %2515 = vmatpush1.msra.mxu0 0.0
          %2516 = vmatprep.subr.mxu0 0.0
          %2517 = vmatpush1.msra.mxu0 0.0
          %2518 = vmatprep.subr.mxu0 0.0
          %2519 = vmatpush1.msra.mxu0 0.0
          %2520 = vmatprep.subr.mxu0 0.0
          %2521 = vmatpush1.msra.mxu0 0.0
          %2522 = vmatprep.subr.mxu0 0.0
          %2523 = vmatpush1.msra.mxu0 0.0
          %2524 = vmatprep.subr.mxu0 0.0
          %2525 = vmatpush1.msra.mxu0 0.0
          %2526 = vmatprep.subr.mxu0 0.0
          %2527 = vmatpush1.msra.mxu0 0.0
          %2528 = vmatprep.subr.mxu0 0.0
          %2529 = vmatpush1.msra.mxu0 0.0
          %2530 = vmatprep.subr.mxu0 0.0
          %2531 = vmatpush1.msra.mxu0 0.0
          %2532 = vmatprep.subr.mxu0 0.0
          %2533 = vmatpush1.msra.mxu0 0.0
          %2534 = vmatprep.subr.mxu0 0.0
          %2535 = vmatpush1.msra.mxu0 0.0
          %2536 = vmatprep.subr.mxu0 0.0
          %2537 = vmatpush1.msra.mxu0 0.0
          %2538 = vmatprep.subr.mxu0 0.0
          %2539 = vmatpush1.msra.mxu0 0.0
          %2540 = vmatprep.subr.mxu0 0.0
          %2541 = vmatpush1.msra.mxu0 0.0
          %2542 = vmatprep.subr.mxu0 0.0
          %2543 = vmatpush1.msra.mxu0 0.0
          %2544 = vmatprep.subr.mxu0 0.0
          %2545 = vmatpush1.msra.mxu0 0.0
          %2546 = vmatprep.subr.mxu0 0.0
          %2547 = vmatpush1.msra.mxu0 0.0
          %2548 = vmatprep.subr.mxu0 0.0
          %2549 = vmatpush1.msra.mxu0 0.0
          %2550 = vmatprep.subr.mxu0 0.0
          %2551 = vmatpush1.msra.mxu0 0.0
          %2552 = vmatprep.subr.mxu0 0.0
          %2553 = vmatpush1.msra.mxu0 0.0
          %2554 = vmatprep.subr.mxu0 0.0
          %2555 = vmatpush1.msra.mxu0 0.0
          %2556 = vmatprep.subr.mxu0 0.0
          %2557 = vmatpush1.msra.mxu0 0.0
          %2558 = vmatprep.subr.mxu0 0.0
          %2559 = vmatpush1.msra.mxu0 0.0
          %2560 = vmatprep.subr.mxu0 0.0
          %2561 = vmatpush1.msra.mxu0 0.0
          %2562 = vmatprep.subr.mxu0 0.0
          %2563 = vmatpush1.msra.mxu0 0.0
          %2564 = vmatprep.mubr.f32.mxu0 0.0
          %2565 = vmatmul.mubr.f32.gmra.mrb[0].mxu0 %v2489
          %v2566 = vpop.f32.mrb[0].mxu0
          %v2567 = vadd.f32 0.0, %v2566
          %v2568 = vpop.f32.mrb[0].mxu0
          %2569 = vmatprep.mubr.f32.mxu0 0.0
          %2570 = vmatmul.mubr.f32.gmra.mrb[0].mxu0 %v2492
          %v2571 = vpop.f32.mrb[0].mxu0
          %v2572 = vadd.f32 0.0, %v2571
          %v2573 = vpop.f32.mrb[0].mxu0
          %2574 = vmatprep.mubr.f32.mxu0 0.0
          %2575 = vmatmul.mubr.f32.gmra.mrb[0].mxu0 %v2495
          %v2576 = vpop.f32.mrb[0].mxu0
          %v2577 = vadd.f32 0.0, %v2576
          %v2578 = vpop.f32.mrb[0].mxu0
          %2579 = vmatprep.mubr.f32.mxu0 0.0
          %2580 = vmatmul.mubr.f32.gmra.mrb[0].mxu0 %v2498
          %v2581 = vpop.f32.mrb[0].mxu0
          %v2582 = vadd.f32 0.0, %v2581
          %v2583 = vpop.f32.mrb[0].mxu0
          %2584 = vdwg.mxu0
          %v2585 = vld [vmem:[#allocation4] sm:$0xff]
          %v2586 = vld [vmem:[#allocation4 + $0x8] sm:$0xff]
          %v2587 = vld [vmem:[#allocation4 + $0x10] sm:$0xff]
          %v2588 = vld [vmem:[#allocation4 + $0x18] sm:$0xff]
          %2590 = vset.pattern.permute.xlu0 0
          %2591 = vperm.xlu0 %2590, %v2400
          %v2592 = vpop.permute.xlu0 %2591
          %2595 = vset.pattern.permute.xlu0 0
          %2596 = vperm.xlu0 %2595, %v2402
          %v2597 = vpop.permute.xlu0 %2596
          %2600 = vset.pattern.permute.xlu0 0
          %2601 = vperm.xlu0 %2600, %v2404
          %v2602 = vpop.permute.xlu0 %2601
          %2605 = vset.pattern.permute.xlu0 0
          %2606 = vperm.xlu0 %2605, %v2406
          %v2607 = vpop.permute.xlu0 %2606
          %v2609 = vmul.f32 %v2592, %v2585
          %v2610 = vmul.f32 %v2597, %v2586
          %v2611 = vmul.f32 %v2602, %v2587
          %v2612 = vmul.f32 %v2607, %v2588
          %2617 = vrot.lane.b32.xlu0 %v2567, 32
          %v2618 = vpop.permute.xlu0 %2617
          %2619 = vrot.lane.b32.xlu0 %v2572, 32
          %v2620 = vpop.permute.xlu0 %2619
          %2621 = vrot.lane.b32.xlu0 %v2577, 32
          %v2622 = vpop.permute.xlu0 %2621
          %2623 = vrot.lane.b32.xlu0 %v2582, 32
          %v2624 = vpop.permute.xlu0 %2623
          %v2629 = vadd.f32 %v2609, %v2618
          %v2630 = vadd.f32 %v2610, %v2620
          %v2631 = vadd.f32 %v2611, %v2622
          %v2632 = vadd.f32 %v2612, %v2624
          %vm2633 = vcmask 523520
          %2634 = vst.msk [vmem:[#allocation4] sm:$0xff] %vm2633, %v2629
          %2635 = vst.msk [vmem:[#allocation4 + $0x8] sm:$0xff] %vm2633, %v2630
          %2636 = vst.msk [vmem:[#allocation4 + $0x10] sm:$0xff] %vm2633, %v2631
          %2637 = vst.msk [vmem:[#allocation4 + $0x18] sm:$0xff] %vm2633, %v2632
          %2638 = vrot.lane.b32.xlu0 %v1905, 64
          %v2639 = vpop.permute.xlu0 %2638
          %2640 = vrot.lane.b32.xlu0 %v1906, 64
          %v2641 = vpop.permute.xlu0 %2640
          %2642 = vrot.lane.b32.xlu0 %v1907, 64
          %v2643 = vpop.permute.xlu0 %2642
          %2644 = vrot.lane.b32.xlu0 %v1908, 64
          %v2645 = vpop.permute.xlu0 %2644
          %2646 = vrot.lane.b32.xlu0 %v1909, 64
          %v2647 = vpop.permute.xlu0 %2646
          %2648 = vrot.lane.b32.xlu0 %v1910, 64
          %v2649 = vpop.permute.xlu0 %2648
          %2650 = vrot.lane.b32.xlu0 %v1911, 64
          %v2651 = vpop.permute.xlu0 %2650
          %2652 = vrot.lane.b32.xlu0 %v1912, 64
          %v2653 = vpop.permute.xlu0 %2652
          %v2654 = vsel %vm1917, %v2639, 0
          %v2656 = vsel %vm1917, %v2641, 0
          %v2658 = vsel %vm1917, %v2643, 0
          %v2660 = vsel %vm1917, %v2645, 0
          %v2662 = vsel %vm1917, %v2647, 0
          %v2664 = vsel %vm1917, %v2649, 0
          %v2666 = vsel %vm1917, %v2651, 0
          %v2668 = vsel %vm1917, %v2653, 0
          %2670 = vmatprep.subr.mxu0 0.0
          %2671 = vmatpush1.xpose.msra.mxu0 %v2662
          %2672 = vmatprep.subr.mxu0 0.0
          %2673 = vmatpush1.xpose.msra.mxu0 %v2664
          %2674 = vmatprep.subr.mxu0 0.0
          %2675 = vmatpush1.xpose.msra.mxu0 %v2666
          %2676 = vmatprep.subr.mxu0 0.0
          %2677 = vmatpush1.xpose.msra.mxu0 %v2668
          %2678 = vmatprep.subr.mxu0 0.0
          %2679 = vmatpush1.xpose.msra.mxu0 0.0
          %2680 = vmatprep.subr.mxu0 0.0
          %2681 = vmatpush1.xpose.msra.mxu0 0.0
          %2682 = vmatprep.subr.mxu0 0.0
          %2683 = vmatpush1.xpose.msra.mxu0 0.0
          %2684 = vmatprep.subr.mxu0 0.0
          %2685 = vmatpush1.xpose.msra.mxu0 0.0
          %2686 = vmatprep.subr.mxu0 0.0
          %2687 = vmatpush1.xpose.msra.mxu0 0.0
          %2688 = vmatprep.subr.mxu0 0.0
          %2689 = vmatpush1.xpose.msra.mxu0 0.0
          %2690 = vmatprep.subr.mxu0 0.0
          %2691 = vmatpush1.xpose.msra.mxu0 0.0
          %2692 = vmatprep.subr.mxu0 0.0
          %2693 = vmatpush1.xpose.msra.mxu0 0.0
          %2694 = vmatprep.subr.mxu0 0.0
          %2695 = vmatpush1.xpose.msra.mxu0 0.0
          %2696 = vmatprep.subr.mxu0 0.0
          %2697 = vmatpush1.xpose.msra.mxu0 0.0
          %2698 = vmatprep.subr.mxu0 0.0
          %2699 = vmatpush1.xpose.msra.mxu0 0.0
          %2700 = vmatprep.subr.mxu0 0.0
          %2701 = vmatpush1.xpose.msra.mxu0 0.0
          %2702 = vmatprep.subr.mxu0 0.0
          %2703 = vmatpush1.xpose.msra.mxu0 0.0
          %2704 = vmatprep.subr.mxu0 0.0
          %2705 = vmatpush1.xpose.msra.mxu0 0.0
          %2706 = vmatprep.subr.mxu0 0.0
          %2707 = vmatpush1.xpose.msra.mxu0 0.0
          %2708 = vmatprep.subr.mxu0 0.0
          %2709 = vmatpush1.xpose.msra.mxu0 0.0
          %2710 = vmatprep.subr.mxu0 0.0
          %2711 = vmatpush1.xpose.msra.mxu0 0.0
          %2712 = vmatprep.subr.mxu0 0.0
          %2713 = vmatpush1.xpose.msra.mxu0 0.0
          %2714 = vmatprep.subr.mxu0 0.0
          %2715 = vmatpush1.xpose.msra.mxu0 0.0
          %2716 = vmatprep.subr.mxu0 0.0
          %2717 = vmatpush1.xpose.msra.mxu0 0.0
          %2718 = vmatprep.subr.mxu0 0.0
          %2719 = vmatpush1.xpose.msra.mxu0 0.0
          %2720 = vmatprep.subr.mxu0 0.0
          %2721 = vmatpush1.xpose.msra.mxu0 0.0
          %2722 = vmatprep.subr.mxu0 0.0
          %2723 = vmatpush1.xpose.msra.mxu0 0.0
          %2724 = vmatprep.subr.mxu0 0.0
          %2725 = vmatpush1.xpose.msra.mxu0 0.0
          %2726 = vmatprep.subr.mxu0 0.0
          %2727 = vmatpush1.xpose.msra.mxu0 0.0
          %2728 = vmatprep.subr.mxu0 0.0
          %2729 = vmatpush1.xpose.msra.mxu0 0.0
          %2730 = vmatprep.subr.mxu0 0.0
          %2731 = vmatpush1.xpose.msra.mxu0 0.0
          %2732 = vmatprep.subr.mxu0 0.0
          %2733 = vmatpush1.xpose.msra.mxu0 0.0
          %2734 = vmatprep.mubr.f32.mxu0 0.0
          %2735 = vmatmul.mubr.f32.gmra.mrb[0].mxu0 %v2654
          %v2736 = vpop.f32.mrb[0].mxu0
          %v2737 = vadd.f32 0.0, %v2736
          %v2738 = vpop.f32.mrb[0].mxu0
          %2739 = vmatprep.mubr.f32.mxu0 0.0
          %2740 = vmatmul.mubr.f32.gmra.mrb[0].mxu0 %v2656
          %v2741 = vpop.f32.mrb[0].mxu0
          %v2742 = vadd.f32 0.0, %v2741
          %v2743 = vpop.f32.mrb[0].mxu0
          %2744 = vmatprep.mubr.f32.mxu0 0.0
          %2745 = vmatmul.mubr.f32.gmra.mrb[0].mxu0 %v2658
          %v2746 = vpop.f32.mrb[0].mxu0
          %v2747 = vadd.f32 0.0, %v2746
          %v2748 = vpop.f32.mrb[0].mxu0
          %2749 = vmatprep.mubr.f32.mxu0 0.0
          %2750 = vmatmul.mubr.f32.gmra.mrb[0].mxu0 %v2660
          %v2751 = vpop.f32.mrb[0].mxu0
          %v2752 = vadd.f32 0.0, %v2751
          %v2753 = vpop.f32.mrb[0].mxu0
          %2754 = vdwg.mxu0
          %s2755 = scalar_lea.vmem [#allocation2], 64
          %v2756 = vld [vmem:[%s2755] sm:$0xff]
          %v2757 = vld [vmem:[%s2755 + $0x8] sm:$0xff]
          %v2758 = vld [vmem:[%s2755 + $0x10] sm:$0xff]
          %v2759 = vld [vmem:[%s2755 + $0x18] sm:$0xff]
          %v2760 = vsel %vm1917, %v2737, -inf
          %2761 = vmax.xlane.f32.xlu0 %v2760
          %v2762 = vpop.xlane.xlu0 %2761
          %v2763 = vsel %vm1917, %v2742, -inf
          %2764 = vmax.xlane.f32.xlu0 %v2763
          %v2765 = vpop.xlane.xlu0 %2764
          %v2766 = vsel %vm1917, %v2747, -inf
          %2767 = vmax.xlane.f32.xlu0 %v2766
          %v2768 = vpop.xlane.xlu0 %2767
          %v2769 = vsel %vm1917, %v2752, -inf
          %2770 = vmax.xlane.f32.xlu0 %v2769
          %v2771 = vpop.xlane.xlu0 %2770
          %v2772 = vmax.f32 %v2756, %v2762
          %v2773 = vmax.f32 %v2757, %v2765
          %v2774 = vmax.f32 %v2758, %v2768
          %v2775 = vmax.f32 %v2759, %v2771
          %v2776 = vsub.f32 %v2756, %v2772
          %v2777 = vsub.f32 %v2757, %v2773
          %v2778 = vsub.f32 %v2758, %v2774
          %v2779 = vsub.f32 %v2759, %v2775
          %v2780 = vmul.f32 %v2776, 1.442695
          %v2781 = vpow.pop %v2780
          %v2782 = vmul.f32 %v2777, 1.442695
          %v2783 = vpow.pop %v2782
          %v2784 = vmul.f32 %v2778, 1.442695
          %v2785 = vpow.pop %v2784
          %v2786 = vmul.f32 %v2779, 1.442695
          %v2787 = vpow.pop %v2786
          %2789 = vset.pattern.permute.xlu0 0
          %2790 = vperm.xlu0 %2789, %v2772
          %v2791 = vpop.permute.xlu0 %2790
          %2794 = vset.pattern.permute.xlu0 0
          %2795 = vperm.xlu0 %2794, %v2773
          %v2796 = vpop.permute.xlu0 %2795
          %2799 = vset.pattern.permute.xlu0 0
          %2800 = vperm.xlu0 %2799, %v2774
          %v2801 = vpop.permute.xlu0 %2800
          %2804 = vset.pattern.permute.xlu0 0
          %2805 = vperm.xlu0 %2804, %v2775
          %v2806 = vpop.permute.xlu0 %2805
          %v2808 = vsub.f32 %v2737, %v2791
          %v2809 = vsub.f32 %v2742, %v2796
          %v2810 = vsub.f32 %v2747, %v2801
          %v2811 = vsub.f32 %v2752, %v2806
          %v2812 = vmul.f32 %v2808, 1.442695
          %v2813 = vpow.pop %v2812
          %v2814 = vmul.f32 %v2809, 1.442695
          %v2815 = vpow.pop %v2814
          %v2816 = vmul.f32 %v2810, 1.442695
          %v2817 = vpow.pop %v2816
          %v2818 = vmul.f32 %v2811, 1.442695
          %v2819 = vpow.pop %v2818
          %s2820 = scalar_lea.vmem [#allocation3], 64
          %v2821 = vld [vmem:[%s2820] sm:$0xff]
          %v2822 = vld [vmem:[%s2820 + $0x8] sm:$0xff]
          %v2823 = vld [vmem:[%s2820 + $0x10] sm:$0xff]
          %v2824 = vld [vmem:[%s2820 + $0x18] sm:$0xff]
          %v2825 = vmul.f32 %v2781, %v2821
          %v2826 = vmul.f32 %v2783, %v2822
          %v2827 = vmul.f32 %v2785, %v2823
          %v2828 = vmul.f32 %v2787, %v2824
          %v2829 = vsel %vm1917, %v2813, 0.0
          %2830 = vadd.xlane.f32.xlu0 %v2829
          %v2831 = vpop.xlane.xlu0 %2830
          %v2832 = vsel %vm1917, %v2815, 0.0
          %2833 = vadd.xlane.f32.xlu0 %v2832
          %v2834 = vpop.xlane.xlu0 %2833
          %v2835 = vsel %vm1917, %v2817, 0.0
          %2836 = vadd.xlane.f32.xlu0 %v2835
          %v2837 = vpop.xlane.xlu0 %2836
          %v2838 = vsel %vm1917, %v2819, 0.0
          %2839 = vadd.xlane.f32.xlu0 %v2838
          %v2840 = vpop.xlane.xlu0 %2839
          %v2841 = vadd.f32 %v2825, %v2831
          %v2842 = vadd.f32 %v2826, %v2834
          %v2843 = vadd.f32 %v2827, %v2837
          %v2844 = vadd.f32 %v2828, %v2840
          %2845 = vst.msk [vmem:[%s2820] sm:$0xff] %vm2115, %v2841
          %2846 = vst.msk [vmem:[%s2820 + $0x8] sm:$0xff] %vm2115, %v2842
          %2847 = vst.msk [vmem:[%s2820 + $0x10] sm:$0xff] %vm2115, %v2843
          %2848 = vst.msk [vmem:[%s2820 + $0x18] sm:$0xff] %vm2115, %v2844
          %2849 = vst.msk [vmem:[%s2755] sm:$0xff] %vm2115, %v2772
          %2850 = vst.msk [vmem:[%s2755 + $0x8] sm:$0xff] %vm2115, %v2773
          %2851 = vst.msk [vmem:[%s2755 + $0x10] sm:$0xff] %vm2115, %v2774
          %2852 = vst.msk [vmem:[%s2755 + $0x18] sm:$0xff] %vm2115, %v2775
          %2853 = vrot.lane.b32.xlu0 %v1913, 64
          %v2854 = vpop.permute.xlu0 %2853
          %2855 = vrot.lane.b32.xlu0 %v1914, 64
          %v2856 = vpop.permute.xlu0 %2855
          %2857 = vrot.lane.b32.xlu0 %v1915, 64
          %v2858 = vpop.permute.xlu0 %2857
          %2859 = vrot.lane.b32.xlu0 %v1916, 64
          %v2860 = vpop.permute.xlu0 %2859
          %v2866 = vsel %vm1917, %v2813, 0
          %v2869 = vsel %vm1917, %v2815, 0
          %v2872 = vsel %vm1917, %v2817, 0
          %v2875 = vsel %vm1917, %v2819, 0
          %2877 = vmatprep.subr.mxu0 0.0
          %2878 = vmatpush1.msra.mxu0 %v2854
          %2879 = vmatprep.subr.mxu0 0.0
          %2880 = vmatpush1.msra.mxu0 %v2856
          %2881 = vmatprep.subr.mxu0 0.0
          %2882 = vmatpush1.msra.mxu0 %v2858
          %2883 = vmatprep.subr.mxu0 0.0
          %2884 = vmatpush1.msra.mxu0 %v2860
          %2885 = vmatprep.subr.mxu0 0.0
          %2886 = vmatpush1.msra.mxu0 0.0
          %2887 = vmatprep.subr.mxu0 0.0
          %2888 = vmatpush1.msra.mxu0 0.0
          %2889 = vmatprep.subr.mxu0 0.0
          %2890 = vmatpush1.msra.mxu0 0.0
          %2891 = vmatprep.subr.mxu0 0.0
          %2892 = vmatpush1.msra.mxu0 0.0
          %2893 = vmatprep.subr.mxu0 0.0
          %2894 = vmatpush1.msra.mxu0 0.0
          %2895 = vmatprep.subr.mxu0 0.0
          %2896 = vmatpush1.msra.mxu0 0.0
          %2897 = vmatprep.subr.mxu0 0.0
          %2898 = vmatpush1.msra.mxu0 0.0
          %2899 = vmatprep.subr.mxu0 0.0
          %2900 = vmatpush1.msra.mxu0 0.0
          %2901 = vmatprep.subr.mxu0 0.0
          %2902 = vmatpush1.msra.mxu0 0.0
          %2903 = vmatprep.subr.mxu0 0.0
          %2904 = vmatpush1.msra.mxu0 0.0
          %2905 = vmatprep.subr.mxu0 0.0
          %2906 = vmatpush1.msra.mxu0 0.0
          %2907 = vmatprep.subr.mxu0 0.0
          %2908 = vmatpush1.msra.mxu0 0.0
          %2909 = vmatprep.subr.mxu0 0.0
          %2910 = vmatpush1.msra.mxu0 0.0
          %2911 = vmatprep.subr.mxu0 0.0
          %2912 = vmatpush1.msra.mxu0 0.0
          %2913 = vmatprep.subr.mxu0 0.0
          %2914 = vmatpush1.msra.mxu0 0.0
          %2915 = vmatprep.subr.mxu0 0.0
          %2916 = vmatpush1.msra.mxu0 0.0
          %2917 = vmatprep.subr.mxu0 0.0
          %2918 = vmatpush1.msra.mxu0 0.0
          %2919 = vmatprep.subr.mxu0 0.0
          %2920 = vmatpush1.msra.mxu0 0.0
          %2921 = vmatprep.subr.mxu0 0.0
          %2922 = vmatpush1.msra.mxu0 0.0
          %2923 = vmatprep.subr.mxu0 0.0
          %2924 = vmatpush1.msra.mxu0 0.0
          %2925 = vmatprep.subr.mxu0 0.0
          %2926 = vmatpush1.msra.mxu0 0.0
          %2927 = vmatprep.subr.mxu0 0.0
          %2928 = vmatpush1.msra.mxu0 0.0
          %2929 = vmatprep.subr.mxu0 0.0
          %2930 = vmatpush1.msra.mxu0 0.0
          %2931 = vmatprep.subr.mxu0 0.0
          %2932 = vmatpush1.msra.mxu0 0.0
          %2933 = vmatprep.subr.mxu0 0.0
          %2934 = vmatpush1.msra.mxu0 0.0
          %2935 = vmatprep.subr.mxu0 0.0
          %2936 = vmatpush1.msra.mxu0 0.0
          %2937 = vmatprep.subr.mxu0 0.0
          %2938 = vmatpush1.msra.mxu0 0.0
          %2939 = vmatprep.subr.mxu0 0.0
          %2940 = vmatpush1.msra.mxu0 0.0
          %2941 = vmatprep.mubr.f32.mxu0 0.0
          %2942 = vmatmul.mubr.f32.gmra.mrb[0].mxu0 %v2866
          %v2943 = vpop.f32.mrb[0].mxu0
          %v2944 = vadd.f32 0.0, %v2943
          %v2945 = vpop.f32.mrb[0].mxu0
          %2946 = vmatprep.mubr.f32.mxu0 0.0
          %2947 = vmatmul.mubr.f32.gmra.mrb[0].mxu0 %v2869
          %v2948 = vpop.f32.mrb[0].mxu0
          %v2949 = vadd.f32 0.0, %v2948
          %v2950 = vpop.f32.mrb[0].mxu0
          %2951 = vmatprep.mubr.f32.mxu0 0.0
          %2952 = vmatmul.mubr.f32.gmra.mrb[0].mxu0 %v2872
          %v2953 = vpop.f32.mrb[0].mxu0
          %v2954 = vadd.f32 0.0, %v2953
          %v2955 = vpop.f32.mrb[0].mxu0
          %2956 = vmatprep.mubr.f32.mxu0 0.0
          %2957 = vmatmul.mubr.f32.gmra.mrb[0].mxu0 %v2875
          %v2958 = vpop.f32.mrb[0].mxu0
          %v2959 = vadd.f32 0.0, %v2958
          %v2960 = vpop.f32.mrb[0].mxu0
          %2961 = vdwg.mxu0
          %v2962 = vld [vmem:[#allocation4] sm:$0xff]
          %v2963 = vld [vmem:[#allocation4 + $0x8] sm:$0xff]
          %v2964 = vld [vmem:[#allocation4 + $0x10] sm:$0xff]
          %v2965 = vld [vmem:[#allocation4 + $0x18] sm:$0xff]
          %2967 = vset.pattern.permute.xlu0 0
          %2968 = vperm.xlu0 %2967, %v2781
          %v2969 = vpop.permute.xlu0 %2968
          %2972 = vset.pattern.permute.xlu0 0
          %2973 = vperm.xlu0 %2972, %v2783
          %v2974 = vpop.permute.xlu0 %2973
          %2977 = vset.pattern.permute.xlu0 0
          %2978 = vperm.xlu0 %2977, %v2785
          %v2979 = vpop.permute.xlu0 %2978
          %2982 = vset.pattern.permute.xlu0 0
          %2983 = vperm.xlu0 %2982, %v2787
          %v2984 = vpop.permute.xlu0 %2983
          %v2986 = vmul.f32 %v2969, %v2962
          %v2987 = vmul.f32 %v2974, %v2963
          %v2988 = vmul.f32 %v2979, %v2964
          %v2989 = vmul.f32 %v2984, %v2965
          %2994 = vrot.lane.b32.xlu0 %v2944, 64
          %v2995 = vpop.permute.xlu0 %2994
          %2996 = vrot.lane.b32.xlu0 %v2949, 64
          %v2997 = vpop.permute.xlu0 %2996
          %2998 = vrot.lane.b32.xlu0 %v2954, 64
          %v2999 = vpop.permute.xlu0 %2998
          %3000 = vrot.lane.b32.xlu0 %v2959, 64
          %v3001 = vpop.permute.xlu0 %3000
          %v3006 = vadd.f32 %v2986, %v2995
          %v3007 = vadd.f32 %v2987, %v2997
          %v3008 = vadd.f32 %v2988, %v2999
          %v3009 = vadd.f32 %v2989, %v3001
          %vm3010 = vcmask 785920
          %3011 = vst.msk [vmem:[#allocation4] sm:$0xff] %vm3010, %v3006
          %3012 = vst.msk [vmem:[#allocation4 + $0x8] sm:$0xff] %vm3010, %v3007
          %3013 = vst.msk [vmem:[#allocation4 + $0x10] sm:$0xff] %vm3010, %v3008
          %3014 = vst.msk [vmem:[#allocation4 + $0x18] sm:$0xff] %vm3010, %v3009
          %3015 = vrot.lane.b32.xlu0 %v1905, 32
          %v3016 = vpop.permute.xlu0 %3015
          %3017 = vrot.lane.b32.xlu0 %v1906, 32
          %v3018 = vpop.permute.xlu0 %3017
          %3019 = vrot.lane.b32.xlu0 %v1907, 32
          %v3020 = vpop.permute.xlu0 %3019
          %3021 = vrot.lane.b32.xlu0 %v1908, 32
          %v3022 = vpop.permute.xlu0 %3021
          %3023 = vrot.lane.b32.xlu0 %v1909, 32
          %v3024 = vpop.permute.xlu0 %3023
          %3025 = vrot.lane.b32.xlu0 %v1910, 32
          %v3026 = vpop.permute.xlu0 %3025
          %3027 = vrot.lane.b32.xlu0 %v1911, 32
          %v3028 = vpop.permute.xlu0 %3027
          %3029 = vrot.lane.b32.xlu0 %v1912, 32
          %v3030 = vpop.permute.xlu0 %3029
          %v3031 = vsel %vm1917, %v3016, 0
          %v3033 = vsel %vm1917, %v3018, 0
          %v3035 = vsel %vm1917, %v3020, 0
          %v3037 = vsel %vm1917, %v3022, 0
          %v3039 = vsel %vm1917, %v3024, 0
          %v3041 = vsel %vm1917, %v3026, 0
          %v3043 = vsel %vm1917, %v3028, 0
          %v3045 = vsel %vm1917, %v3030, 0
          %3047 = vmatprep.subr.mxu0 0.0
          %3048 = vmatpush1.xpose.msra.mxu0 %v3039
          %3049 = vmatprep.subr.mxu0 0.0
          %3050 = vmatpush1.xpose.msra.mxu0 %v3041
          %3051 = vmatprep.subr.mxu0 0.0
          %3052 = vmatpush1.xpose.msra.mxu0 %v3043
          %3053 = vmatprep.subr.mxu0 0.0
          %3054 = vmatpush1.xpose.msra.mxu0 %v3045
          %3055 = vmatprep.subr.mxu0 0.0
          %3056 = vmatpush1.xpose.msra.mxu0 0.0
          %3057 = vmatprep.subr.mxu0 0.0
          %3058 = vmatpush1.xpose.msra.mxu0 0.0
          %3059 = vmatprep.subr.mxu0 0.0
          %3060 = vmatpush1.xpose.msra.mxu0 0.0
          %3061 = vmatprep.subr.mxu0 0.0
          %3062 = vmatpush1.xpose.msra.mxu0 0.0
          %3063 = vmatprep.subr.mxu0 0.0
          %3064 = vmatpush1.xpose.msra.mxu0 0.0
          %3065 = vmatprep.subr.mxu0 0.0
          %3066 = vmatpush1.xpose.msra.mxu0 0.0
          %3067 = vmatprep.subr.mxu0 0.0
          %3068 = vmatpush1.xpose.msra.mxu0 0.0
          %3069 = vmatprep.subr.mxu0 0.0
          %3070 = vmatpush1.xpose.msra.mxu0 0.0
          %3071 = vmatprep.subr.mxu0 0.0
          %3072 = vmatpush1.xpose.msra.mxu0 0.0
          %3073 = vmatprep.subr.mxu0 0.0
          %3074 = vmatpush1.xpose.msra.mxu0 0.0
          %3075 = vmatprep.subr.mxu0 0.0
          %3076 = vmatpush1.xpose.msra.mxu0 0.0
          %3077 = vmatprep.subr.mxu0 0.0
          %3078 = vmatpush1.xpose.msra.mxu0 0.0
          %3079 = vmatprep.subr.mxu0 0.0
          %3080 = vmatpush1.xpose.msra.mxu0 0.0
          %3081 = vmatprep.subr.mxu0 0.0
          %3082 = vmatpush1.xpose.msra.mxu0 0.0
          %3083 = vmatprep.subr.mxu0 0.0
          %3084 = vmatpush1.xpose.msra.mxu0 0.0
          %3085 = vmatprep.subr.mxu0 0.0
          %3086 = vmatpush1.xpose.msra.mxu0 0.0
          %3087 = vmatprep.subr.mxu0 0.0
          %3088 = vmatpush1.xpose.msra.mxu0 0.0
          %3089 = vmatprep.subr.mxu0 0.0
          %3090 = vmatpush1.xpose.msra.mxu0 0.0
          %3091 = vmatprep.subr.mxu0 0.0
          %3092 = vmatpush1.xpose.msra.mxu0 0.0
          %3093 = vmatprep.subr.mxu0 0.0
          %3094 = vmatpush1.xpose.msra.mxu0 0.0
          %3095 = vmatprep.subr.mxu0 0.0
          %3096 = vmatpush1.xpose.msra.mxu0 0.0
          %3097 = vmatprep.subr.mxu0 0.0
          %3098 = vmatpush1.xpose.msra.mxu0 0.0
          %3099 = vmatprep.subr.mxu0 0.0
          %3100 = vmatpush1.xpose.msra.mxu0 0.0
          %3101 = vmatprep.subr.mxu0 0.0
          %3102 = vmatpush1.xpose.msra.mxu0 0.0
          %3103 = vmatprep.subr.mxu0 0.0
          %3104 = vmatpush1.xpose.msra.mxu0 0.0
          %3105 = vmatprep.subr.mxu0 0.0
          %3106 = vmatpush1.xpose.msra.mxu0 0.0
          %3107 = vmatprep.subr.mxu0 0.0
          %3108 = vmatpush1.xpose.msra.mxu0 0.0
          %3109 = vmatprep.subr.mxu0 0.0
          %3110 = vmatpush1.xpose.msra.mxu0 0.0
          %3111 = vmatprep.mubr.f32.mxu0 0.0
          %3112 = vmatmul.mubr.f32.gmra.mrb[0].mxu0 %v3031
          %v3113 = vpop.f32.mrb[0].mxu0
          %v3114 = vadd.f32 0.0, %v3113
          %v3115 = vpop.f32.mrb[0].mxu0
          %3116 = vmatprep.mubr.f32.mxu0 0.0
          %3117 = vmatmul.mubr.f32.gmra.mrb[0].mxu0 %v3033
          %v3118 = vpop.f32.mrb[0].mxu0
          %v3119 = vadd.f32 0.0, %v3118
          %v3120 = vpop.f32.mrb[0].mxu0
          %3121 = vmatprep.mubr.f32.mxu0 0.0
          %3122 = vmatmul.mubr.f32.gmra.mrb[0].mxu0 %v3035
          %v3123 = vpop.f32.mrb[0].mxu0
          %v3124 = vadd.f32 0.0, %v3123
          %v3125 = vpop.f32.mrb[0].mxu0
          %3126 = vmatprep.mubr.f32.mxu0 0.0
          %3127 = vmatmul.mubr.f32.gmra.mrb[0].mxu0 %v3037
          %v3128 = vpop.f32.mrb[0].mxu0
          %v3129 = vadd.f32 0.0, %v3128
          %v3130 = vpop.f32.mrb[0].mxu0
          %3131 = vdwg.mxu0
          %s3132 = scalar_lea.vmem [#allocation2], 96
          %v3133 = vld [vmem:[%s3132] sm:$0xff]
          %v3134 = vld [vmem:[%s3132 + $0x8] sm:$0xff]
          %v3135 = vld [vmem:[%s3132 + $0x10] sm:$0xff]
          %v3136 = vld [vmem:[%s3132 + $0x18] sm:$0xff]
          %v3137 = vsel %vm1917, %v3114, -inf
          %3138 = vmax.xlane.f32.xlu0 %v3137
          %v3139 = vpop.xlane.xlu0 %3138
          %v3140 = vsel %vm1917, %v3119, -inf
          %3141 = vmax.xlane.f32.xlu0 %v3140
          %v3142 = vpop.xlane.xlu0 %3141
          %v3143 = vsel %vm1917, %v3124, -inf
          %3144 = vmax.xlane.f32.xlu0 %v3143
          %v3145 = vpop.xlane.xlu0 %3144
          %v3146 = vsel %vm1917, %v3129, -inf
          %3147 = vmax.xlane.f32.xlu0 %v3146
          %v3148 = vpop.xlane.xlu0 %3147
          %v3149 = vmax.f32 %v3133, %v3139
          %v3150 = vmax.f32 %v3134, %v3142
          %v3151 = vmax.f32 %v3135, %v3145
          %v3152 = vmax.f32 %v3136, %v3148
          %v3153 = vsub.f32 %v3133, %v3149
          %v3154 = vsub.f32 %v3134, %v3150
          %v3155 = vsub.f32 %v3135, %v3151
          %v3156 = vsub.f32 %v3136, %v3152
          %v3157 = vmul.f32 %v3153, 1.442695
          %v3158 = vpow.pop %v3157
          %v3159 = vmul.f32 %v3154, 1.442695
          %v3160 = vpow.pop %v3159
          %v3161 = vmul.f32 %v3155, 1.442695
          %v3162 = vpow.pop %v3161
          %v3163 = vmul.f32 %v3156, 1.442695
          %v3164 = vpow.pop %v3163
          %3166 = vset.pattern.permute.xlu0 0
          %3167 = vperm.xlu0 %3166, %v3149
          %v3168 = vpop.permute.xlu0 %3167
          %3171 = vset.pattern.permute.xlu0 0
          %3172 = vperm.xlu0 %3171, %v3150
          %v3173 = vpop.permute.xlu0 %3172
          %3176 = vset.pattern.permute.xlu0 0
          %3177 = vperm.xlu0 %3176, %v3151
          %v3178 = vpop.permute.xlu0 %3177
          %3181 = vset.pattern.permute.xlu0 0
          %3182 = vperm.xlu0 %3181, %v3152
          %v3183 = vpop.permute.xlu0 %3182
          %v3185 = vsub.f32 %v3114, %v3168
          %v3186 = vsub.f32 %v3119, %v3173
          %v3187 = vsub.f32 %v3124, %v3178
          %v3188 = vsub.f32 %v3129, %v3183
          %v3189 = vmul.f32 %v3185, 1.442695
          %v3190 = vpow.pop %v3189
          %v3191 = vmul.f32 %v3186, 1.442695
          %v3192 = vpow.pop %v3191
          %v3193 = vmul.f32 %v3187, 1.442695
          %v3194 = vpow.pop %v3193
          %v3195 = vmul.f32 %v3188, 1.442695
          %v3196 = vpow.pop %v3195
          %s3197 = scalar_lea.vmem [#allocation3], 96
          %v3198 = vld [vmem:[%s3197] sm:$0xff]
          %v3199 = vld [vmem:[%s3197 + $0x8] sm:$0xff]
          %v3200 = vld [vmem:[%s3197 + $0x10] sm:$0xff]
          %v3201 = vld [vmem:[%s3197 + $0x18] sm:$0xff]
          %v3202 = vmul.f32 %v3158, %v3198
          %v3203 = vmul.f32 %v3160, %v3199
          %v3204 = vmul.f32 %v3162, %v3200
          %v3205 = vmul.f32 %v3164, %v3201
          %v3206 = vsel %vm1917, %v3190, 0.0
          %3207 = vadd.xlane.f32.xlu0 %v3206
          %v3208 = vpop.xlane.xlu0 %3207
          %v3209 = vsel %vm1917, %v3192, 0.0
          %3210 = vadd.xlane.f32.xlu0 %v3209
          %v3211 = vpop.xlane.xlu0 %3210
          %v3212 = vsel %vm1917, %v3194, 0.0
          %3213 = vadd.xlane.f32.xlu0 %v3212
          %v3214 = vpop.xlane.xlu0 %3213
          %v3215 = vsel %vm1917, %v3196, 0.0
          %3216 = vadd.xlane.f32.xlu0 %v3215
          %v3217 = vpop.xlane.xlu0 %3216
          %v3218 = vadd.f32 %v3202, %v3208
          %v3219 = vadd.f32 %v3203, %v3211
          %v3220 = vadd.f32 %v3204, %v3214
          %v3221 = vadd.f32 %v3205, %v3217
          %3222 = vst.msk [vmem:[%s3197] sm:$0xff] %vm2115, %v3218
          %3223 = vst.msk [vmem:[%s3197 + $0x8] sm:$0xff] %vm2115, %v3219
          %3224 = vst.msk [vmem:[%s3197 + $0x10] sm:$0xff] %vm2115, %v3220
          %3225 = vst.msk [vmem:[%s3197 + $0x18] sm:$0xff] %vm2115, %v3221
          %3226 = vst.msk [vmem:[%s3132] sm:$0xff] %vm2115, %v3149
          %3227 = vst.msk [vmem:[%s3132 + $0x8] sm:$0xff] %vm2115, %v3150
          %3228 = vst.msk [vmem:[%s3132 + $0x10] sm:$0xff] %vm2115, %v3151
          %3229 = vst.msk [vmem:[%s3132 + $0x18] sm:$0xff] %vm2115, %v3152
          %3230 = vrot.lane.b32.xlu0 %v1913, 32
          %v3231 = vpop.permute.xlu0 %3230
          %3232 = vrot.lane.b32.xlu0 %v1914, 32
          %v3233 = vpop.permute.xlu0 %3232
          %3234 = vrot.lane.b32.xlu0 %v1915, 32
          %v3235 = vpop.permute.xlu0 %3234
          %3236 = vrot.lane.b32.xlu0 %v1916, 32
          %v3237 = vpop.permute.xlu0 %3236
          %v3243 = vsel %vm1917, %v3190, 0
          %v3246 = vsel %vm1917, %v3192, 0
          %v3249 = vsel %vm1917, %v3194, 0
          %v3252 = vsel %vm1917, %v3196, 0
          %3254 = vmatprep.subr.mxu0 0.0
          %3255 = vmatpush1.msra.mxu0 %v3231
          %3256 = vmatprep.subr.mxu0 0.0
          %3257 = vmatpush1.msra.mxu0 %v3233
          %3258 = vmatprep.subr.mxu0 0.0
          %3259 = vmatpush1.msra.mxu0 %v3235
          %3260 = vmatprep.subr.mxu0 0.0
          %3261 = vmatpush1.msra.mxu0 %v3237
          %3262 = vmatprep.subr.mxu0 0.0
          %3263 = vmatpush1.msra.mxu0 0.0
          %3264 = vmatprep.subr.mxu0 0.0
          %3265 = vmatpush1.msra.mxu0 0.0
          %3266 = vmatprep.subr.mxu0 0.0
          %3267 = vmatpush1.msra.mxu0 0.0
          %3268 = vmatprep.subr.mxu0 0.0
          %3269 = vmatpush1.msra.mxu0 0.0
          %3270 = vmatprep.subr.mxu0 0.0
          %3271 = vmatpush1.msra.mxu0 0.0
          %3272 = vmatprep.subr.mxu0 0.0
          %3273 = vmatpush1.msra.mxu0 0.0
          %3274 = vmatprep.subr.mxu0 0.0
          %3275 = vmatpush1.msra.mxu0 0.0
          %3276 = vmatprep.subr.mxu0 0.0
          %3277 = vmatpush1.msra.mxu0 0.0
          %3278 = vmatprep.subr.mxu0 0.0
          %3279 = vmatpush1.msra.mxu0 0.0
          %3280 = vmatprep.subr.mxu0 0.0
          %3281 = vmatpush1.msra.mxu0 0.0
          %3282 = vmatprep.subr.mxu0 0.0
          %3283 = vmatpush1.msra.mxu0 0.0
          %3284 = vmatprep.subr.mxu0 0.0
          %3285 = vmatpush1.msra.mxu0 0.0
          %3286 = vmatprep.subr.mxu0 0.0
          %3287 = vmatpush1.msra.mxu0 0.0
          %3288 = vmatprep.subr.mxu0 0.0
          %3289 = vmatpush1.msra.mxu0 0.0
          %3290 = vmatprep.subr.mxu0 0.0
          %3291 = vmatpush1.msra.mxu0 0.0
          %3292 = vmatprep.subr.mxu0 0.0
          %3293 = vmatpush1.msra.mxu0 0.0
          %3294 = vmatprep.subr.mxu0 0.0
          %3295 = vmatpush1.msra.mxu0 0.0
          %3296 = vmatprep.subr.mxu0 0.0
          %3297 = vmatpush1.msra.mxu0 0.0
          %3298 = vmatprep.subr.mxu0 0.0
          %3299 = vmatpush1.msra.mxu0 0.0
          %3300 = vmatprep.subr.mxu0 0.0
          %3301 = vmatpush1.msra.mxu0 0.0
          %3302 = vmatprep.subr.mxu0 0.0
          %3303 = vmatpush1.msra.mxu0 0.0
          %3304 = vmatprep.subr.mxu0 0.0
          %3305 = vmatpush1.msra.mxu0 0.0
          %3306 = vmatprep.subr.mxu0 0.0
          %3307 = vmatpush1.msra.mxu0 0.0
          %3308 = vmatprep.subr.mxu0 0.0
          %3309 = vmatpush1.msra.mxu0 0.0
          %3310 = vmatprep.subr.mxu0 0.0
          %3311 = vmatpush1.msra.mxu0 0.0
          %3312 = vmatprep.subr.mxu0 0.0
          %3313 = vmatpush1.msra.mxu0 0.0
          %3314 = vmatprep.subr.mxu0 0.0
          %3315 = vmatpush1.msra.mxu0 0.0
          %3316 = vmatprep.subr.mxu0 0.0
          %3317 = vmatpush1.msra.mxu0 0.0
          %3318 = vmatprep.mubr.f32.mxu0 0.0
          %3319 = vmatmul.mubr.f32.gmra.mrb[0].mxu0 %v3243
          %v3320 = vpop.f32.mrb[0].mxu0
          %v3321 = vadd.f32 0.0, %v3320
          %v3322 = vpop.f32.mrb[0].mxu0
          %3323 = vmatprep.mubr.f32.mxu0 0.0
          %3324 = vmatmul.mubr.f32.gmra.mrb[0].mxu0 %v3246
          %v3325 = vpop.f32.mrb[0].mxu0
          %v3326 = vadd.f32 0.0, %v3325
          %v3327 = vpop.f32.mrb[0].mxu0
          %3328 = vmatprep.mubr.f32.mxu0 0.0
          %3329 = vmatmul.mubr.f32.gmra.mrb[0].mxu0 %v3249
          %v3330 = vpop.f32.mrb[0].mxu0
          %v3331 = vadd.f32 0.0, %v3330
          %v3332 = vpop.f32.mrb[0].mxu0
          %3333 = vmatprep.mubr.f32.mxu0 0.0
          %3334 = vmatmul.mubr.f32.gmra.mrb[0].mxu0 %v3252
          %v3335 = vpop.f32.mrb[0].mxu0
          %v3336 = vadd.f32 0.0, %v3335
          %v3337 = vpop.f32.mrb[0].mxu0
          %3338 = vdwg.mxu0
          %v3339 = vld [vmem:[#allocation4] sm:$0xff]
          %v3340 = vld [vmem:[#allocation4 + $0x8] sm:$0xff]
          %v3341 = vld [vmem:[#allocation4 + $0x10] sm:$0xff]
          %v3342 = vld [vmem:[#allocation4 + $0x18] sm:$0xff]
          %3344 = vset.pattern.permute.xlu0 0
          %3345 = vperm.xlu0 %3344, %v3158
          %v3346 = vpop.permute.xlu0 %3345
          %3349 = vset.pattern.permute.xlu0 0
          %3350 = vperm.xlu0 %3349, %v3160
          %v3351 = vpop.permute.xlu0 %3350
          %3354 = vset.pattern.permute.xlu0 0
          %3355 = vperm.xlu0 %3354, %v3162
          %v3356 = vpop.permute.xlu0 %3355
          %3359 = vset.pattern.permute.xlu0 0
          %3360 = vperm.xlu0 %3359, %v3164
          %v3361 = vpop.permute.xlu0 %3360
          %v3363 = vmul.f32 %v3346, %v3339
          %v3364 = vmul.f32 %v3351, %v3340
          %v3365 = vmul.f32 %v3356, %v3341
          %v3366 = vmul.f32 %v3361, %v3342
          %3371 = vrot.lane.b32.xlu0 %v3321, 96
          %v3372 = vpop.permute.xlu0 %3371
          %3373 = vrot.lane.b32.xlu0 %v3326, 96
          %v3374 = vpop.permute.xlu0 %3373
          %3375 = vrot.lane.b32.xlu0 %v3331, 96
          %v3376 = vpop.permute.xlu0 %3375
          %3377 = vrot.lane.b32.xlu0 %v3336, 96
          %v3378 = vpop.permute.xlu0 %3377
          %v3383 = vadd.f32 %v3363, %v3372
          %v3384 = vadd.f32 %v3364, %v3374
          %v3385 = vadd.f32 %v3365, %v3376
          %v3386 = vadd.f32 %v3366, %v3378
          %vm3387 = vcmask 1048320
          %3388 = vst.msk [vmem:[#allocation4] sm:$0xff] %vm3387, %v3383
          %3389 = vst.msk [vmem:[#allocation4 + $0x8] sm:$0xff] %vm3387, %v3384
          %3390 = vst.msk [vmem:[#allocation4 + $0x10] sm:$0xff] %vm3387, %v3385
          %3391 = vst.msk [vmem:[#allocation4 + $0x18] sm:$0xff] %vm3387, %v3386
        $region56: #{tpu_custom_call.1} parent=31 // pred_fallthru
          _
        %p3392 = scmp.eq.s32.totalorder %s32, 3
        // Predicated region
        $region57: #{tpu_custom_call.1} parent=31 // pred_check
          %p3393 = pneg %p3392
        $region58: #{tpu_custom_call.1} parent=31 // pred_check_branch
          %3395 = sbr.rel (%p3393) target = $region60
        $region59: #{tpu_custom_call.1} parent=31 // pred_region
          %v3396 = vld [vmem:[#allocation3] sm:$0xff]
          %v3397 = vld [vmem:[#allocation3 + $0x8] sm:$0xff]
          %v3398 = vld [vmem:[#allocation3 + $0x10] sm:$0xff]
          %v3399 = vld [vmem:[#allocation3 + $0x18] sm:$0xff]
          %v3400 = vrcp.pop %v3396
          %v3401 = vrcp.pop %v3397
          %v3402 = vrcp.pop %v3398
          %v3403 = vrcp.pop %v3399
          %v3404 = vld [vmem:[#allocation4] sm:$0xff]
          %v3405 = vld [vmem:[#allocation4 + $0x8] sm:$0xff]
          %v3406 = vld [vmem:[#allocation4 + $0x10] sm:$0xff]
          %v3407 = vld [vmem:[#allocation4 + $0x18] sm:$0xff]
          %3409 = vset.pattern.permute.xlu0 0
          %3410 = vperm.xlu0 %3409, %v3400
          %v3411 = vpop.permute.xlu0 %3410
          %3414 = vset.pattern.permute.xlu0 0
          %3415 = vperm.xlu0 %3414, %v3401
          %v3416 = vpop.permute.xlu0 %3415
          %3419 = vset.pattern.permute.xlu0 0
          %3420 = vperm.xlu0 %3419, %v3402
          %v3421 = vpop.permute.xlu0 %3420
          %3424 = vset.pattern.permute.xlu0 0
          %3425 = vperm.xlu0 %3424, %v3403
          %v3426 = vpop.permute.xlu0 %3425
          %v3428 = vmul.f32 %v3404, %v3411
          %v3429 = vmul.f32 %v3405, %v3416
          %v3430 = vmul.f32 %v3406, %v3421
          %v3431 = vmul.f32 %v3407, %v3426
          %vm3432 = vcmask 261120
          %3433 = vst.msk [vmem:[%s316] sm:$0xff] %vm3432, %v3428
          %3434 = vst.msk [vmem:[%s316 + $0x8] sm:$0xff] %vm3432, %v3429
          %3435 = vst.msk [vmem:[%s316 + $0x10] sm:$0xff] %vm3432, %v3430
          %3436 = vst.msk [vmem:[%s316 + $0x18] sm:$0xff] %vm3432, %v3431
          %s3437 = scalar_lea.vmem [#allocation3], 32
          %v3438 = vld [vmem:[%s3437] sm:$0xff]
          %v3439 = vld [vmem:[%s3437 + $0x8] sm:$0xff]
          %v3440 = vld [vmem:[%s3437 + $0x10] sm:$0xff]
          %v3441 = vld [vmem:[%s3437 + $0x18] sm:$0xff]
          %v3442 = vrcp.pop %v3438
          %v3443 = vrcp.pop %v3439
          %v3444 = vrcp.pop %v3440
          %v3445 = vrcp.pop %v3441
          %v3446 = vld [vmem:[#allocation4] sm:$0xff]
          %v3447 = vld [vmem:[#allocation4 + $0x8] sm:$0xff]
          %v3448 = vld [vmem:[#allocation4 + $0x10] sm:$0xff]
          %v3449 = vld [vmem:[#allocation4 + $0x18] sm:$0xff]
          %3451 = vset.pattern.permute.xlu0 0
          %3452 = vperm.xlu0 %3451, %v3442
          %v3453 = vpop.permute.xlu0 %3452
          %3456 = vset.pattern.permute.xlu0 0
          %3457 = vperm.xlu0 %3456, %v3443
          %v3458 = vpop.permute.xlu0 %3457
          %3461 = vset.pattern.permute.xlu0 0
          %3462 = vperm.xlu0 %3461, %v3444
          %v3463 = vpop.permute.xlu0 %3462
          %3466 = vset.pattern.permute.xlu0 0
          %3467 = vperm.xlu0 %3466, %v3445
          %v3468 = vpop.permute.xlu0 %3467
          %v3470 = vmul.f32 %v3446, %v3453
          %v3471 = vmul.f32 %v3447, %v3458
          %v3472 = vmul.f32 %v3448, %v3463
          %v3473 = vmul.f32 %v3449, %v3468
          %vm3474 = vcmask 523520
          %3475 = vst.msk [vmem:[%s316] sm:$0xff] %vm3474, %v3470
          %3476 = vst.msk [vmem:[%s316 + $0x8] sm:$0xff] %vm3474, %v3471
          %3477 = vst.msk [vmem:[%s316 + $0x10] sm:$0xff] %vm3474, %v3472
          %3478 = vst.msk [vmem:[%s316 + $0x18] sm:$0xff] %vm3474, %v3473
          %s3479 = scalar_lea.vmem [#allocation3], 64
          %v3480 = vld [vmem:[%s3479] sm:$0xff]
          %v3481 = vld [vmem:[%s3479 + $0x8] sm:$0xff]
          %v3482 = vld [vmem:[%s3479 + $0x10] sm:$0xff]
          %v3483 = vld [vmem:[%s3479 + $0x18] sm:$0xff]
          %v3484 = vrcp.pop %v3480
          %v3485 = vrcp.pop %v3481
          %v3486 = vrcp.pop %v3482
          %v3487 = vrcp.pop %v3483
          %v3488 = vld [vmem:[#allocation4] sm:$0xff]
          %v3489 = vld [vmem:[#allocation4 + $0x8] sm:$0xff]
          %v3490 = vld [vmem:[#allocation4 + $0x10] sm:$0xff]
          %v3491 = vld [vmem:[#allocation4 + $0x18] sm:$0xff]
          %3493 = vset.pattern.permute.xlu0 0
          %3494 = vperm.xlu0 %3493, %v3484
          %v3495 = vpop.permute.xlu0 %3494
          %3498 = vset.pattern.permute.xlu0 0
          %3499 = vperm.xlu0 %3498, %v3485
          %v3500 = vpop.permute.xlu0 %3499
          %3503 = vset.pattern.permute.xlu0 0
          %3504 = vperm.xlu0 %3503, %v3486
          %v3505 = vpop.permute.xlu0 %3504
          %3508 = vset.pattern.permute.xlu0 0
          %3509 = vperm.xlu0 %3508, %v3487
          %v3510 = vpop.permute.xlu0 %3509
          %v3512 = vmul.f32 %v3488, %v3495
          %v3513 = vmul.f32 %v3489, %v3500
          %v3514 = vmul.f32 %v3490, %v3505
          %v3515 = vmul.f32 %v3491, %v3510
          %vm3516 = vcmask 785920
          %3517 = vst.msk [vmem:[%s316] sm:$0xff] %vm3516, %v3512
          %3518 = vst.msk [vmem:[%s316 + $0x8] sm:$0xff] %vm3516, %v3513
          %3519 = vst.msk [vmem:[%s316 + $0x10] sm:$0xff] %vm3516, %v3514
          %3520 = vst.msk [vmem:[%s316 + $0x18] sm:$0xff] %vm3516, %v3515
          %s3521 = scalar_lea.vmem [#allocation3], 96
          %v3522 = vld [vmem:[%s3521] sm:$0xff]
          %v3523 = vld [vmem:[%s3521 + $0x8] sm:$0xff]
          %v3524 = vld [vmem:[%s3521 + $0x10] sm:$0xff]
          %v3525 = vld [vmem:[%s3521 + $0x18] sm:$0xff]
          %v3526 = vrcp.pop %v3522
          %v3527 = vrcp.pop %v3523
          %v3528 = vrcp.pop %v3524
          %v3529 = vrcp.pop %v3525
          %v3530 = vld [vmem:[#allocation4] sm:$0xff]
          %v3531 = vld [vmem:[#allocation4 + $0x8] sm:$0xff]
          %v3532 = vld [vmem:[#allocation4 + $0x10] sm:$0xff]
          %v3533 = vld [vmem:[#allocation4 + $0x18] sm:$0xff]
          %3535 = vset.pattern.permute.xlu0 0
          %3536 = vperm.xlu0 %3535, %v3526
          %v3537 = vpop.permute.xlu0 %3536
          %3540 = vset.pattern.permute.xlu0 0
          %3541 = vperm.xlu0 %3540, %v3527
          %v3542 = vpop.permute.xlu0 %3541
          %3545 = vset.pattern.permute.xlu0 0
          %3546 = vperm.xlu0 %3545, %v3528
          %v3547 = vpop.permute.xlu0 %3546
          %3550 = vset.pattern.permute.xlu0 0
          %3551 = vperm.xlu0 %3550, %v3529
          %v3552 = vpop.permute.xlu0 %3551
          %v3554 = vmul.f32 %v3530, %v3537
          %v3555 = vmul.f32 %v3531, %v3542
          %v3556 = vmul.f32 %v3532, %v3547
          %v3557 = vmul.f32 %v3533, %v3552
          %vm3558 = vcmask 1048320
          %3559 = vst.msk [vmem:[%s316] sm:$0xff] %vm3558, %v3554
          %3560 = vst.msk [vmem:[%s316 + $0x8] sm:$0xff] %vm3558, %v3555
          %3561 = vst.msk [vmem:[%s316 + $0x10] sm:$0xff] %vm3558, %v3556
          %3562 = vst.msk [vmem:[%s316 + $0x18] sm:$0xff] %vm3558, %v3557
        $region60: #{tpu_custom_call.1} parent=31 // pred_fallthru
          _
        %s3563 = sand.u32 %s151, 1
        %s3564 = scalar_lea.sflag [#allocation7], %s3563
        %s3565 = sand.u32 %s151, 1
        %s3566 = smul.addr %s3565, 32
        %s3567 = scalar_lea.vmem [#allocation11], %s3566
        // Predicated region
        $region61: #{tpu_custom_call.1} parent=31 // pred_check
          %p3568 = pneg %p161
        $region62: #{tpu_custom_call.1} parent=31 // pred_check_branch
          %3570 = sbr.rel (%p3568) target = $region64
        $region63: #{tpu_custom_call.1} parent=31 // pred_region
          %s3571 = smul.u32 4, %s31
          %s3573 = ssub.s32 512, 512
          %3574 = vsyncadd %s3564, %s3573
          %s3575 = sadd.s32 %s30, %s3571
          %s3576 = smul.addr %s29, 16
          %s3577 = sadd.s32 %s3575, %s3576
          %s3578 = smul.addr %s3577, 128
          %s3579 = scalar_lea.hbm %s3, %s3578
          %s3580 = sshll.u32 %s3567, 4
          %s3581 = int_to_ptr.vmem [resolvable:$true] %s3580
          %3586 = dma.vmem_to_hbm [thread:$0]  %s3581, 512, %s3579, %s3564, 128, 128, 8
        $region64: #{tpu_custom_call.1} parent=31 // pred_fallthru
          _
      $region32: #{tpu_custom_call.1} parent=5 // pred_fallthru
        _
      %p3587 = scmp.le.s32.totalorder 2, %s18
      // Predicated region
      $region65: #{tpu_custom_call.1} parent=5 // pred_check
        %p3588 = pneg %p3587
      $region66: #{tpu_custom_call.1} parent=5 // pred_check_branch
        %3590 = sbr.rel (%p3588) target = $region68
      $region67: #{tpu_custom_call.1} parent=5 // pred_region
        %s3591 = ssub.s32 %s18, 2
        // Predicated region
        $region69: #{tpu_custom_call.1} parent=67 // pred_check
          %p3592 = pneg %p167
        $region70: #{tpu_custom_call.1} parent=67 // pred_check_branch
          %3594 = sbr.rel (%p3592) target = $region72
        $region71: #{tpu_custom_call.1} parent=67 // pred_region
          %s3595 = sand.u32 %s152, 1
          %s3596 = scalar_lea.sflag [#allocation7], %s3595
          %s3597 = sand.u32 %s152, 1
          %s3598 = smul.addr %s3597, 32
          %s3599 = scalar_lea.vmem [#allocation11], %s3598
          %3600 = dma.done %s3596, 512
        $region72: #{tpu_custom_call.1} parent=67 // pred_fallthru
          _
      $region68: #{tpu_custom_call.1} parent=5 // pred_fallthru
        _
    $region6: #{tpu_custom_call.1} parent=1 // loop_footer
      %s22 = sadd.s32 1, %s18
    $region7: #{tpu_custom_call.1} parent=1 // loop_footer_branch
      %17 = sbr.rel target = $region3
    $region8: #{tpu_custom_call.1} parent=1 // loop_exit
      _
    %3601 = vsyncpa [#allocation6], 1
    %s3602 = scalar_lea.sflag [#allocation6], 1
    %3603 = vsyncpa %s3602, 1
    %3604 = vsyncpa [#allocation9], 1
    %s3605 = scalar_lea.sflag [#allocation9], 1
    %3606 = vsyncpa %s3605, 1
    %3607 = vsyncpa [#allocation7], 1
    %s3608 = scalar_lea.sflag [#allocation7], 1
    %3609 = vsyncpa %s3608, 1

</llo_original>
